<compile_context>
chip_gen: v5e
topology: v5e:2x2
jax: 0.10.0
libtpu: 0.0.40
codegen_flags: <defaults>
</compile_context>

<pallas_src>
import functools
import math

import numpy as np
import jax
import jax.numpy as jnp
from jax import lax
from jax.experimental import pallas as pl
from jax.experimental.pallas import tpu as pltpu

EPS = 1e-5  # torch.nn.LayerNorm default eps


# ----------------------------- in-kernel math helpers -----------------------------

def _layernorm(x, w, b):
    mu = jnp.mean(x, axis=-1, keepdims=True)
    xc = x - mu
    var = jnp.mean(xc * xc, axis=-1, keepdims=True)
    return xc * lax.rsqrt(var + EPS) * w + b


def _erf(x):
    # Abramowitz & Stegun 7.1.26 polynomial erf (|err| < 1.5e-7).  Exact division
    # here (the approx reciprocal would invalidate the polynomial's error bound).
    a1, a2, a3, a4, a5 = 0.254829592, -0.284496736, 1.421413741, -1.453152027, 1.061405429
    p = 0.3275911
    s = jnp.where(x >= 0.0, 1.0, -1.0)
    ax = jnp.abs(x)
    t = 1.0 / (1.0 + p * ax)
    poly = ((((a5 * t + a4) * t + a3) * t + a2) * t + a1) * t
    return s * (1.0 - poly * jnp.exp(-ax * ax))


def _gelu(x):
    # exact (erf-based) GELU, matching torch.nn.GELU() default
    return 0.5 * x * (1.0 + _erf(x * (1.0 / math.sqrt(2.0))))


# ----------------------------- fused Pallas kernel -----------------------------

def _fused_kernel(x_ref, mask_ref,
                  ln1w_ref, ln1b_ref, wqkv_ref, wout_ref, bout_ref,
                  ln2w_ref, ln2b_ref, w1_ref, b1_ref, w2_ref, b2_ref,
                  lnw_ref, lnb_ref, wh_ref, bh_ref,
                  hid_ref, out_ref, *, batch, seq, inner_pad, num_blocks):
    """Whole MyTransformer forward on the fused (batch*seq, D) row block."""
    f32 = jnp.float32
    IP = inner_pad
    x = x_ref[...].astype(f32)                                 # (R, D), R = batch*seq

    for blk in range(num_blocks):                              # static unroll (small)
        # ---- attention branch: x += to_out(linear_attention(LN1(x)))
        h = _layernorm(x, ln1w_ref[blk], ln1b_ref[blk])
        qkv = jnp.dot(h, wqkv_ref[blk], preferred_element_type=f32)   # (R, 3*IP)
        q = qkv[:, 0:IP]                                       # lane-aligned static slices
        k = qkv[:, IP:2 * IP]
        v = qkv[:, 2 * IP:3 * IP]

        # Per-head softmax over the feature dim.  The row-max stabilizer is shared
        # across heads (exact: softmax is shift-invariant); per-head denominators
        # come from one block-diagonal-mask matmul.  Clamp guards against a head
        # whose logits sit far below the shared max (underflowed denominator).
        eq = jnp.exp(q - jnp.max(q, axis=-1, keepdims=True))
        q_den = jnp.dot(eq, mask_ref[...], preferred_element_type=f32)
        q_soft = eq * pl.reciprocal(jnp.maximum(q_den, 1e-30), approx=True)

        # Attention core: per batch element, softmax over the sequence dim and the
        # two small (IP, IP) matmuls.  N = 16 rows -> sublane-aligned static slices.
        att_parts = []
        for b in range(batch):
            r0 = b * seq
            kb = k[r0:r0 + seq, :]
            vb = v[r0:r0 + seq, :]
            ekb = jnp.exp(kb - jnp.max(kb, axis=0, keepdims=True))
            kb_soft = ekb * pl.reciprocal(jnp.sum(ekb, axis=0, keepdims=True),
                                          approx=True)
            ctx = jnp.einsum('nd,ne->de', kb_soft, vb,
                             preferred_element_type=f32)       # (IP, IP)
            att_parts.append(jnp.dot(q_soft[r0:r0 + seq, :], ctx * mask_ref[...],
                                     preferred_element_type=f32))
        att = jnp.concatenate(att_parts, axis=0)               # (R, IP)

        # to_out on the fused row block (q-scale is folded into wout at pack time;
        # padded rows of wout are zero, killing the padding lanes of att).
        x = x + jnp.dot(att, wout_ref[blk], preferred_element_type=f32) + bout_ref[blk]

        # ---- MLP branch: x += W2 @ GELU(W1 @ LN2(x) + b1) + b2
        h2 = _layernorm(x, ln2w_ref[blk], ln2b_ref[blk])
        m = _gelu(jnp.dot(h2, w1_ref[blk], preferred_element_type=f32) + b1_ref[blk])
        x = x + jnp.dot(m, w2_ref[blk], preferred_element_type=f32) + b2_ref[blk]

    # ---- final LayerNorm + (orthogonal) Linear head; eval mode (no softmax, norm_ = 1)
    hidden = _layernorm(x, lnw_ref[0], lnb_ref[0])
    hid_ref[...] = hidden.astype(hid_ref.dtype)
    out_ref[...] = (jnp.dot(hidden, wh_ref[...], preferred_element_type=f32)
                    + bh_ref[0]).astype(out_ref.dtype)


# ----------------------------- pallas_call wrapper -----------------------------

def _full(shape):
    """BlockSpec covering the full array (single grid step)."""
    n = len(shape)
    return pl.BlockSpec(shape, lambda i, _n=n: (0,) * _n)


def my_transformer_forward(x, kp):
    """Eval-mode MyTransformer.forward: returns (hidden, ret_raw)."""
    B, N, D = x.shape
    R = B * N
    num_blocks = kp['wqkv'].shape[0]
    IP = kp['head_mask'].shape[0]
    M = kp['w1'].shape[-1]
    K = kp['w_head'].shape[-1]

    x2 = x.reshape(R, D)
    kernel = functools.partial(_fused_kernel, batch=B, seq=N,
                               inner_pad=IP, num_blocks=num_blocks)

    hidden, ret_raw = pl.pallas_call(
        kernel,
        out_shape=(jax.ShapeDtypeStruct((R, D), x.dtype),
                   jax.ShapeDtypeStruct((R, K), x.dtype)),
        grid_spec=pltpu.PrefetchScalarGridSpec(
            num_scalar_prefetch=0,
            grid=(1,),
            in_specs=[
                _full((R, D)),                        # activations (B*N, D)
                _full((IP, IP)),                      # block-diagonal head mask
                _full((num_blocks, 1, D)), _full((num_blocks, 1, D)),      # ln1 w/b
                _full((num_blocks, D, 3 * IP)),       # fused, lane-padded qkv weight
                _full((num_blocks, IP, D)),           # padded, scale-folded to_out
                _full((num_blocks, 1, D)),            # to_out bias
                _full((num_blocks, 1, D)), _full((num_blocks, 1, D)),      # ln2 w/b
                _full((num_blocks, D, M)), _full((num_blocks, 1, M)),      # mlp w1/b1
                _full((num_blocks, M, D)), _full((num_blocks, 1, D)),      # mlp w2/b2
                _full((1, 1, D)), _full((1, 1, D)),                        # final ln
                _full((D, K)), _full((1, 1, K)),                           # head
            ],
            out_specs=(_full((R, D)), _full((R, K))),
        ),
        compiler_params=pltpu.CompilerParams(dimension_semantics=("arbitrary",)),
    )(x2, kp['head_mask'],
      kp['ln1_w'], kp['ln1_b'], kp['wqkv'], kp['wout'], kp['bout'],
      kp['ln2_w'], kp['ln2_b'], kp['w1'], kp['b1'], kp['w2'], kp['b2'],
      kp['ln_w'], kp['ln_b'], kp['w_head'], kp['b_head'])

    # TODO(synk): training-mode branches (gumbel_softmax / softmax over dim=-1 and the
    # norm over `normalize_over` dims with clamp(min=1)) are not implemented; in eval
    # mode norm_ == 1 and ret_raw is returned unchanged, which is what we reproduce.
    return hidden.reshape(B, N, D), ret_raw.reshape(B, N, K)


# ----------------------------- parameter packing -----------------------------

def pack_params(p, heads, dim_head):
    """Pack logical (torch-layout) params into the kernel-ready, padded layout."""
    num_blocks, D, inner = p['wq'].shape
    IP = ((inner + 127) // 128) * 128            # pad each q/k/v segment to 128 lanes
    assert IP % dim_head == 0, "padding must align with head groups"
    scale = dim_head ** -0.5

    wqkv = jnp.zeros((num_blocks, D, 3 * IP), jnp.float32)
    wqkv = wqkv.at[:, :, 0:inner].set(p['wq'])
    wqkv = wqkv.at[:, :, IP:IP + inner].set(p['wk'])
    wqkv = wqkv.at[:, :, 2 * IP:2 * IP + inner].set(p['wv'])

    wout = jnp.zeros((num_blocks, IP, D), jnp.float32)
    wout = wout.at[:, 0:inner, :].set(p['wout'] * scale)   # fold q-scale into to_out

    rid = np.arange(IP)[:, None] // dim_head
    cid = np.arange(IP)[None, :] // dim_head
    head_mask = jnp.asarray((rid == cid).astype(np.float32))

    return dict(
        head_mask=head_mask,
        ln1_w=p['ln1_w'][:, None, :], ln1_b=p['ln1_b'][:, None, :],
        wqkv=wqkv, wout=wout, bout=p['bout'][:, None, :],
        ln2_w=p['ln2_w'][:, None, :], ln2_b=p['ln2_b'][:, None, :],
        w1=p['w1'], b1=p['b1'][:, None, :],
        w2=p['w2'], b2=p['b2'][:, None, :],
        ln_w=p['ln_w'][:, None, :], ln_b=p['ln_b'][:, None, :],
        w_head=p['w_head'], b_head=p['b_head'][:, None, :],
    )


# ----------------------------- parameters -----------------------------

def init_params(key, *, num_blocks, d_backbone, k_psi, mlp_dim, head_dim):
    D = d_backbone * 3
    heads = D // head_dim
    inner = heads * head_dim

    def tn(k, shape):  # trunc_normal_(std=0.02)
        return (0.02 * jax.random.truncated_normal(k, -2.0, 2.0, shape)).astype(jnp.float32)

    def stack_tn(ks, shape):
        return jnp.stack([tn(k, shape) for k in ks])

    keys = jax.random.split(key, 6 * num_blocks + 1)
    kq = keys[0:num_blocks]
    kk = keys[num_blocks:2 * num_blocks]
    kv = keys[2 * num_blocks:3 * num_blocks]
    ko = keys[3 * num_blocks:4 * num_blocks]
    k1 = keys[4 * num_blocks:5 * num_blocks]
    k2 = keys[5 * num_blocks:6 * num_blocks]

    params = dict(
        ln1_w=jnp.ones((num_blocks, D), jnp.float32),
        ln1_b=jnp.zeros((num_blocks, D), jnp.float32),
        wq=stack_tn(kq, (D, inner)),              # to_qkv (no bias), split into q/k/v
        wk=stack_tn(kk, (D, inner)),
        wv=stack_tn(kv, (D, inner)),
        wout=stack_tn(ko, (inner, D)),            # to_out
        bout=jnp.zeros((num_blocks, D), jnp.float32),
        ln2_w=jnp.ones((num_blocks, D), jnp.float32),
        ln2_b=jnp.zeros((num_blocks, D), jnp.float32),
        w1=stack_tn(k1, (D, mlp_dim)),
        b1=jnp.zeros((num_blocks, mlp_dim), jnp.float32),
        w2=stack_tn(k2, (mlp_dim, D)),
        b2=jnp.zeros((num_blocks, D), jnp.float32),
        ln_w=jnp.ones((1, D), jnp.float32),
        ln_b=jnp.zeros((1, D), jnp.float32),
        b_head=jnp.zeros((1, k_psi), jnp.float32),
    )
    # orthogonal(nn.Linear(D, k)): realize the orthogonal parametrization via QR so the
    # (k, D) torch weight has orthonormal rows  <=>  our (D, k) matrix has orthonormal cols.
    q_mat, _ = jnp.linalg.qr(jax.random.normal(keys[-1], (D, k_psi), jnp.float32))
    params['w_head'] = q_mat.astype(jnp.float32)
    return params, heads


# ----------------------------- pure-JAX reference (for verification) -----------------------------

def ref_forward(x, p, heads, dim_head, num_blocks):
    from jax.scipy.special import erf

    def ln(z, w, b):
        mu = z.mean(-1, keepdims=True)
        zc = z - mu
        var = (zc * zc).mean(-1, keepdims=True)
        return zc / jnp.sqrt(var + EPS) * w + b

    scale = dim_head ** -0.5
    B, N, _ = x.shape
    inner = heads * dim_head
    for i in range(num_blocks):
        h = ln(x, p['ln1_w'][i], p['ln1_b'][i])
        q = (h @ p['wq'][i]).reshape(B, N, heads, dim_head)
        k = (h @ p['wk'][i]).reshape(B, N, heads, dim_head)
        v = (h @ p['wv'][i]).reshape(B, N, heads, dim_head)
        q = jax.nn.softmax(q, axis=-1) * scale
        k = jax.nn.softmax(k, axis=1)
        ctx = jnp.einsum('bnhd,bnhe->bhde', k, v)
        att = jnp.einsum('bnhd,bhde->bnhe', q, ctx).reshape(B, N, inner)
        x = x + att @ p['wout'][i] + p['bout'][i]
        h2 = ln(x, p['ln2_w'][i], p['ln2_b'][i])
        m = h2 @ p['w1'][i] + p['b1'][i]
        m = 0.5 * m * (1.0 + erf(m / jnp.sqrt(2.0)))
        x = x + m @ p['w2'][i] + p['b2'][i]
    hidden = ln(x, p['ln_w'][0], p['ln_b'][0])
    ret = hidden @ p['w_head'] + p['b_head'][0]
    return hidden, ret


# ----------------------------- main -----------------------------

if __name__ == "__main__":
    # MyTransformer(num_blocks=2, k=16, d_backbone=32, mlp_dim=128, head_dim=32)
    num_blocks, k_psi, d_backbone, mlp_dim, head_dim = 2, 16, 32, 128, 32
    D = d_backbone * 3          # hidden_dim = 96
    B, N = 2, 16                # batch, sequence length

    key = jax.random.PRNGKey(0)
    pkey, xkey = jax.random.split(key)
    params, heads = init_params(pkey, num_blocks=num_blocks, d_backbone=d_backbone,
                                k_psi=k_psi, mlp_dim=mlp_dim, head_dim=head_dim)
    kparams = pack_params(params, heads, head_dim)
    x = jax.random.normal(xkey, (B, N, D), jnp.float32)

    hidden, ret = my_transformer_forward(x, kparams)
    jax.block_until_ready((hidden, ret))

    hid_ref, ret_ref = ref_forward(x, params, heads, head_dim, num_blocks)
    assert hidden.shape == (B, N, D) and ret.shape == (B, N, k_psi)
    assert jnp.allclose(hidden, hid_ref, atol=3e-3, rtol=3e-3), "hidden mismatch vs reference"
    assert jnp.allclose(ret, ret_ref, atol=3e-3, rtol=3e-3), "ret_raw mismatch vs reference"

    print("KERNEL_OK")
</pallas_src>

<mosaic_0001>
module attributes {stable_mosaic.version = 11 : i64} {
  func.func @_fused_kernel(%arg0: i32, %arg1: memref<32x96xf32, #tpu.memory_space<vmem>>, %arg2: memref<128x128xf32, #tpu.memory_space<vmem>>, %arg3: memref<2x1x96xf32, #tpu.memory_space<vmem>>, %arg4: memref<2x1x96xf32, #tpu.memory_space<vmem>>, %arg5: memref<2x96x384xf32, #tpu.memory_space<vmem>>, %arg6: memref<2x128x96xf32, #tpu.memory_space<vmem>>, %arg7: memref<2x1x96xf32, #tpu.memory_space<vmem>>, %arg8: memref<2x1x96xf32, #tpu.memory_space<vmem>>, %arg9: memref<2x1x96xf32, #tpu.memory_space<vmem>>, %arg10: memref<2x96x128xf32, #tpu.memory_space<vmem>>, %arg11: memref<2x1x128xf32, #tpu.memory_space<vmem>>, %arg12: memref<2x128x96xf32, #tpu.memory_space<vmem>>, %arg13: memref<2x1x96xf32, #tpu.memory_space<vmem>>, %arg14: memref<1x1x96xf32, #tpu.memory_space<vmem>>, %arg15: memref<1x1x96xf32, #tpu.memory_space<vmem>>, %arg16: memref<96x16xf32, #tpu.memory_space<vmem>>, %arg17: memref<1x1x16xf32, #tpu.memory_space<vmem>>, %arg18: memref<32x96xf32, #tpu.memory_space<vmem>>, %arg19: memref<32x16xf32, #tpu.memory_space<vmem>>) attributes {dimension_semantics = [#tpu.dimension_semantics<arbitrary>], iteration_bounds = array<i64: 1>, scalar_prefetch = 0 : i64, scratch_operands = 0 : i64, tpu.core_type = #tpu.core_type<tc>, window_params = [{pipeline_mode = #tpu.pipeline_mode<synchronous>, transform_indices = @transform_0, window_bounds = array<i64: 32, 96>}, {pipeline_mode = #tpu.pipeline_mode<synchronous>, transform_indices = @transform_1, window_bounds = array<i64: 128, 128>}, {pipeline_mode = #tpu.pipeline_mode<synchronous>, transform_indices = @transform_2, window_bounds = array<i64: 2, 1, 96>}, {pipeline_mode = #tpu.pipeline_mode<synchronous>, transform_indices = @transform_3, window_bounds = array<i64: 2, 1, 96>}, {pipeline_mode = #tpu.pipeline_mode<synchronous>, transform_indices = @transform_4, window_bounds = array<i64: 2, 96, 384>}, {pipeline_mode = #tpu.pipeline_mode<synchronous>, transform_indices = @transform_5, window_bounds = array<i64: 2, 128, 96>}, {pipeline_mode = #tpu.pipeline_mode<synchronous>, transform_indices = @transform_6, window_bounds = array<i64: 2, 1, 96>}, {pipeline_mode = #tpu.pipeline_mode<synchronous>, transform_indices = @transform_7, window_bounds = array<i64: 2, 1, 96>}, {pipeline_mode = #tpu.pipeline_mode<synchronous>, transform_indices = @transform_8, window_bounds = array<i64: 2, 1, 96>}, {pipeline_mode = #tpu.pipeline_mode<synchronous>, transform_indices = @transform_9, window_bounds = array<i64: 2, 96, 128>}, {pipeline_mode = #tpu.pipeline_mode<synchronous>, transform_indices = @transform_10, window_bounds = array<i64: 2, 1, 128>}, {pipeline_mode = #tpu.pipeline_mode<synchronous>, transform_indices = @transform_11, window_bounds = array<i64: 2, 128, 96>}, {pipeline_mode = #tpu.pipeline_mode<synchronous>, transform_indices = @transform_12, window_bounds = array<i64: 2, 1, 96>}, {pipeline_mode = #tpu.pipeline_mode<synchronous>, transform_indices = @transform_13, window_bounds = array<i64: 1, 1, 96>}, {pipeline_mode = #tpu.pipeline_mode<synchronous>, transform_indices = @transform_14, window_bounds = array<i64: 1, 1, 96>}, {pipeline_mode = #tpu.pipeline_mode<synchronous>, transform_indices = @transform_15, window_bounds = array<i64: 96, 16>}, {pipeline_mode = #tpu.pipeline_mode<synchronous>, transform_indices = @transform_16, window_bounds = array<i64: 1, 1, 16>}, {pipeline_mode = #tpu.pipeline_mode<synchronous>, transform_indices = @transform_17, window_bounds = array<i64: 32, 96>}, {pipeline_mode = #tpu.pipeline_mode<synchronous>, transform_indices = @transform_18, window_bounds = array<i64: 32, 16>}]} {
    %c0 = arith.constant 0 : index
    %c0_0 = arith.constant 0 : index
    %0 = vector.load %arg1[%c0, %c0_0] : memref<32x96xf32, #tpu.memory_space<vmem>>, vector<32x96xf32>
    %c0_1 = arith.constant 0 : index
    %c0_2 = arith.constant 0 : index
    %c0_3 = arith.constant 0 : index
    %1 = vector.load %arg3[%c0_1, %c0_2, %c0_3] : memref<2x1x96xf32, #tpu.memory_space<vmem>>, vector<1x1x96xf32>
    %2 = vector.shape_cast %1 : vector<1x1x96xf32> to vector<1x96xf32>
    %c0_4 = arith.constant 0 : index
    %c0_5 = arith.constant 0 : index
    %c0_6 = arith.constant 0 : index
    %3 = vector.load %arg4[%c0_4, %c0_5, %c0_6] : memref<2x1x96xf32, #tpu.memory_space<vmem>>, vector<1x1x96xf32>
    %4 = vector.shape_cast %3 : vector<1x1x96xf32> to vector<1x96xf32>
    %cst = arith.constant dense<0.000000e+00> : vector<32xf32>
    %5 = vector.multi_reduction <add>, %0, %cst [1] : vector<32x96xf32> to vector<32xf32>
    %6 = vector.shape_cast %5 : vector<32xf32> to vector<32x1xf32>
    %cst_7 = arith.constant 9.600000e+01 : f32
    %7 = vector.broadcast %cst_7 : f32 to vector<32x1xf32>
    %8 = arith.divf %6, %7 : vector<32x1xf32>
    %9 = vector.broadcast %8 : vector<32x1xf32> to vector<32x96xf32>
    %10 = arith.subf %0, %9 : vector<32x96xf32>
    %11 = arith.mulf %10, %10 : vector<32x96xf32>
    %cst_8 = arith.constant dense<0.000000e+00> : vector<32xf32>
    %12 = vector.multi_reduction <add>, %11, %cst_8 [1] : vector<32x96xf32> to vector<32xf32>
    %13 = vector.shape_cast %12 : vector<32xf32> to vector<32x1xf32>
    %cst_9 = arith.constant 9.600000e+01 : f32
    %14 = vector.broadcast %cst_9 : f32 to vector<32x1xf32>
    %15 = arith.divf %13, %14 : vector<32x1xf32>
    %cst_10 = arith.constant 9.99999974E-6 : f32
    %16 = vector.broadcast %cst_10 : f32 to vector<32x1xf32>
    %17 = arith.addf %15, %16 : vector<32x1xf32>
    %18 = math.rsqrt %17 : vector<32x1xf32>
    %19 = vector.broadcast %18 : vector<32x1xf32> to vector<32x96xf32>
    %20 = arith.mulf %10, %19 : vector<32x96xf32>
    %21 = vector.broadcast %2 : vector<1x96xf32> to vector<32x96xf32>
    %22 = arith.mulf %20, %21 : vector<32x96xf32>
    %23 = vector.broadcast %4 : vector<1x96xf32> to vector<32x96xf32>
    %24 = arith.addf %22, %23 : vector<32x96xf32>
    %c0_11 = arith.constant 0 : index
    %c0_12 = arith.constant 0 : index
    %c0_13 = arith.constant 0 : index
    %25 = vector.load %arg5[%c0_11, %c0_12, %c0_13] : memref<2x96x384xf32, #tpu.memory_space<vmem>>, vector<1x96x384xf32>
    %26 = vector.shape_cast %25 : vector<1x96x384xf32> to vector<96x384xf32>
    %cst_14 = arith.constant dense<0.000000e+00> : vector<32x384xf32>
    %27 = tpu.matmul %24, %26, %cst_14 {dimension_numbers = #tpu.dot_dimension_numbers<[1], [0], [0], [1], [0, 0, 1, 1], [], []>} : vector<32x96xf32>, vector<96x384xf32>, vector<32x384xf32> -> vector<32x384xf32>
    %28 = vector.extract_strided_slice %27 {offsets = [0, 0], sizes = [32, 128], strides = [1, 1]} : vector<32x384xf32> to vector<32x128xf32>
    %29 = vector.extract_strided_slice %27 {offsets = [0, 128], sizes = [32, 128], strides = [1, 1]} : vector<32x384xf32> to vector<32x128xf32>
    %30 = vector.extract_strided_slice %27 {offsets = [0, 256], sizes = [32, 128], strides = [1, 1]} : vector<32x384xf32> to vector<32x128xf32>
    %cst_15 = arith.constant dense<0xFF800000> : vector<32xf32>
    %31 = vector.multi_reduction <maximumf>, %28, %cst_15 [1] : vector<32x128xf32> to vector<32xf32>
    %32 = vector.shape_cast %31 : vector<32xf32> to vector<32x1xf32>
    %33 = vector.broadcast %32 : vector<32x1xf32> to vector<32x128xf32>
    %34 = arith.subf %28, %33 : vector<32x128xf32>
    %35 = math.exp %34 : vector<32x128xf32>
    %c0_16 = arith.constant 0 : index
    %c0_17 = arith.constant 0 : index
    %36 = vector.load %arg2[%c0_16, %c0_17] : memref<128x128xf32, #tpu.memory_space<vmem>>, vector<128x128xf32>
    %cst_18 = arith.constant dense<0.000000e+00> : vector<32x128xf32>
    %37 = tpu.matmul %35, %36, %cst_18 {dimension_numbers = #tpu.dot_dimension_numbers<[1], [0], [0], [1], [0, 0, 1, 1], [], []>} : vector<32x128xf32>, vector<128x128xf32>, vector<32x128xf32> -> vector<32x128xf32>
    %cst_19 = arith.constant 1.000000e-30 : f32
    %38 = vector.broadcast %cst_19 : f32 to vector<32x128xf32>
    %39 = arith.maximumf %37, %38 : vector<32x128xf32>
    %40 = tpu.reciprocal %39 {approx = true} : vector<32x128xf32> -> vector<32x128xf32>
    %41 = arith.mulf %35, %40 : vector<32x128xf32>
    %42 = vector.extract_strided_slice %29 {offsets = [0, 0], sizes = [16, 128], strides = [1, 1]} : vector<32x128xf32> to vector<16x128xf32>
    %43 = vector.extract_strided_slice %30 {offsets = [0, 0], sizes = [16, 128], strides = [1, 1]} : vector<32x128xf32> to vector<16x128xf32>
    %cst_20 = arith.constant dense<0xFF800000> : vector<128xf32>
    %44 = vector.multi_reduction <maximumf>, %42, %cst_20 [0] : vector<16x128xf32> to vector<128xf32>
    %45 = vector.shape_cast %44 : vector<128xf32> to vector<1x128xf32>
    %46 = vector.broadcast %45 : vector<1x128xf32> to vector<16x128xf32>
    %47 = arith.subf %42, %46 : vector<16x128xf32>
    %48 = math.exp %47 : vector<16x128xf32>
    %cst_21 = arith.constant dense<0.000000e+00> : vector<128xf32>
    %49 = vector.multi_reduction <add>, %48, %cst_21 [0] : vector<16x128xf32> to vector<128xf32>
    %50 = vector.shape_cast %49 : vector<128xf32> to vector<1x128xf32>
    %51 = tpu.reciprocal %50 {approx = true} : vector<1x128xf32> -> vector<1x128xf32>
    %52 = vector.broadcast %51 : vector<1x128xf32> to vector<16x128xf32>
    %53 = arith.mulf %48, %52 : vector<16x128xf32>
    "tpu.trace_start"() <{level = 10 : i32, message = "nd,ne->de"}> : () -> ()
    %cst_22 = arith.constant dense<0.000000e+00> : vector<128x128xf32>
    %54 = tpu.matmul %53, %43, %cst_22 {dimension_numbers = #tpu.dot_dimension_numbers<[0], [0], [1], [1], [0, 1, 1, 1], [], []>} : vector<16x128xf32>, vector<16x128xf32>, vector<128x128xf32> -> vector<128x128xf32>
    "tpu.trace_stop"() : () -> ()
    %55 = vector.extract_strided_slice %41 {offsets = [0, 0], sizes = [16, 128], strides = [1, 1]} : vector<32x128xf32> to vector<16x128xf32>
    %c0_23 = arith.constant 0 : index
    %c0_24 = arith.constant 0 : index
    %56 = vector.load %arg2[%c0_23, %c0_24] : memref<128x128xf32, #tpu.memory_space<vmem>>, vector<128x128xf32>
    %57 = arith.mulf %54, %56 : vector<128x128xf32>
    %cst_25 = arith.constant dense<0.000000e+00> : vector<16x128xf32>
    %58 = tpu.matmul %55, %57, %cst_25 {dimension_numbers = #tpu.dot_dimension_numbers<[1], [0], [0], [1], [0, 0, 1, 1], [], []>} : vector<16x128xf32>, vector<128x128xf32>, vector<16x128xf32> -> vector<16x128xf32>
    %59 = vector.extract_strided_slice %29 {offsets = [16, 0], sizes = [16, 128], strides = [1, 1]} : vector<32x128xf32> to vector<16x128xf32>
    %60 = vector.extract_strided_slice %30 {offsets = [16, 0], sizes = [16, 128], strides = [1, 1]} : vector<32x128xf32> to vector<16x128xf32>
    %cst_26 = arith.constant dense<0xFF800000> : vector<128xf32>
    %61 = vector.multi_reduction <maximumf>, %59, %cst_26 [0] : vector<16x128xf32> to vector<128xf32>
    %62 = vector.shape_cast %61 : vector<128xf32> to vector<1x128xf32>
    %63 = vector.broadcast %62 : vector<1x128xf32> to vector<16x128xf32>
    %64 = arith.subf %59, %63 : vector<16x128xf32>
    %65 = math.exp %64 : vector<16x128xf32>
    %cst_27 = arith.constant dense<0.000000e+00> : vector<128xf32>
    %66 = vector.multi_reduction <add>, %65, %cst_27 [0] : vector<16x128xf32> to vector<128xf32>
    %67 = vector.shape_cast %66 : vector<128xf32> to vector<1x128xf32>
    %68 = tpu.reciprocal %67 {approx = true} : vector<1x128xf32> -> vector<1x128xf32>
    %69 = vector.broadcast %68 : vector<1x128xf32> to vector<16x128xf32>
    %70 = arith.mulf %65, %69 : vector<16x128xf32>
    "tpu.trace_start"() <{level = 10 : i32, message = "nd,ne->de"}> : () -> ()
    %cst_28 = arith.constant dense<0.000000e+00> : vector<128x128xf32>
    %71 = tpu.matmul %70, %60, %cst_28 {dimension_numbers = #tpu.dot_dimension_numbers<[0], [0], [1], [1], [0, 1, 1, 1], [], []>} : vector<16x128xf32>, vector<16x128xf32>, vector<128x128xf32> -> vector<128x128xf32>
    "tpu.trace_stop"() : () -> ()
    %72 = vector.extract_strided_slice %41 {offsets = [16, 0], sizes = [16, 128], strides = [1, 1]} : vector<32x128xf32> to vector<16x128xf32>
    %c0_29 = arith.constant 0 : index
    %c0_30 = arith.constant 0 : index
    %73 = vector.load %arg2[%c0_29, %c0_30] : memref<128x128xf32, #tpu.memory_space<vmem>>, vector<128x128xf32>
    %74 = arith.mulf %71, %73 : vector<128x128xf32>
    %cst_31 = arith.constant dense<0.000000e+00> : vector<16x128xf32>
    %75 = tpu.matmul %72, %74, %cst_31 {dimension_numbers = #tpu.dot_dimension_numbers<[1], [0], [0], [1], [0, 0, 1, 1], [], []>} : vector<16x128xf32>, vector<128x128xf32>, vector<16x128xf32> -> vector<16x128xf32>
    %76 = tpu.concatenate %58, %75 in 0 : vector<16x128xf32>, vector<16x128xf32> -> vector<32x128xf32>
    %c0_32 = arith.constant 0 : index
    %c0_33 = arith.constant 0 : index
    %c0_34 = arith.constant 0 : index
    %77 = vector.load %arg6[%c0_32, %c0_33, %c0_34] : memref<2x128x96xf32, #tpu.memory_space<vmem>>, vector<1x128x96xf32>
    %78 = vector.shape_cast %77 : vector<1x128x96xf32> to vector<128x96xf32>
    %cst_35 = arith.constant dense<0.000000e+00> : vector<32x96xf32>
    %79 = tpu.matmul %76, %78, %cst_35 {dimension_numbers = #tpu.dot_dimension_numbers<[1], [0], [0], [1], [0, 0, 1, 1], [], []>} : vector<32x128xf32>, vector<128x96xf32>, vector<32x96xf32> -> vector<32x96xf32>
    %80 = arith.addf %0, %79 : vector<32x96xf32>
    %c0_36 = arith.constant 0 : index
    %c0_37 = arith.constant 0 : index
    %c0_38 = arith.constant 0 : index
    %81 = vector.load %arg7[%c0_36, %c0_37, %c0_38] : memref<2x1x96xf32, #tpu.memory_space<vmem>>, vector<1x1x96xf32>
    %82 = vector.shape_cast %81 : vector<1x1x96xf32> to vector<1x96xf32>
    %83 = vector.broadcast %82 : vector<1x96xf32> to vector<32x96xf32>
    %84 = arith.addf %80, %83 : vector<32x96xf32>
    %c0_39 = arith.constant 0 : index
    %c0_40 = arith.constant 0 : index
    %c0_41 = arith.constant 0 : index
    %85 = vector.load %arg8[%c0_39, %c0_40, %c0_41] : memref<2x1x96xf32, #tpu.memory_space<vmem>>, vector<1x1x96xf32>
    %86 = vector.shape_cast %85 : vector<1x1x96xf32> to vector<1x96xf32>
    %c0_42 = arith.constant 0 : index
    %c0_43 = arith.constant 0 : index
    %c0_44 = arith.constant 0 : index
    %87 = vector.load %arg9[%c0_42, %c0_43, %c0_44] : memref<2x1x96xf32, #tpu.memory_space<vmem>>, vector<1x1x96xf32>
    %88 = vector.shape_cast %87 : vector<1x1x96xf32> to vector<1x96xf32>
    %cst_45 = arith.constant dense<0.000000e+00> : vector<32xf32>
    %89 = vector.multi_reduction <add>, %84, %cst_45 [1] : vector<32x96xf32> to vector<32xf32>
    %90 = vector.shape_cast %89 : vector<32xf32> to vector<32x1xf32>
    %cst_46 = arith.constant 9.600000e+01 : f32
    %91 = vector.broadcast %cst_46 : f32 to vector<32x1xf32>
    %92 = arith.divf %90, %91 : vector<32x1xf32>
    %93 = vector.broadcast %92 : vector<32x1xf32> to vector<32x96xf32>
    %94 = arith.subf %84, %93 : vector<32x96xf32>
    %95 = arith.mulf %94, %94 : vector<32x96xf32>
    %cst_47 = arith.constant dense<0.000000e+00> : vector<32xf32>
    %96 = vector.multi_reduction <add>, %95, %cst_47 [1] : vector<32x96xf32> to vector<32xf32>
    %97 = vector.shape_cast %96 : vector<32xf32> to vector<32x1xf32>
    %cst_48 = arith.constant 9.600000e+01 : f32
    %98 = vector.broadcast %cst_48 : f32 to vector<32x1xf32>
    %99 = arith.divf %97, %98 : vector<32x1xf32>
    %cst_49 = arith.constant 9.99999974E-6 : f32
    %100 = vector.broadcast %cst_49 : f32 to vector<32x1xf32>
    %101 = arith.addf %99, %100 : vector<32x1xf32>
    %102 = math.rsqrt %101 : vector<32x1xf32>
    %103 = vector.broadcast %102 : vector<32x1xf32> to vector<32x96xf32>
    %104 = arith.mulf %94, %103 : vector<32x96xf32>
    %105 = vector.broadcast %86 : vector<1x96xf32> to vector<32x96xf32>
    %106 = arith.mulf %104, %105 : vector<32x96xf32>
    %107 = vector.broadcast %88 : vector<1x96xf32> to vector<32x96xf32>
    %108 = arith.addf %106, %107 : vector<32x96xf32>
    %c0_50 = arith.constant 0 : index
    %c0_51 = arith.constant 0 : index
    %c0_52 = arith.constant 0 : index
    %109 = vector.load %arg10[%c0_50, %c0_51, %c0_52] : memref<2x96x128xf32, #tpu.memory_space<vmem>>, vector<1x96x128xf32>
    %110 = vector.shape_cast %109 : vector<1x96x128xf32> to vector<96x128xf32>
    %cst_53 = arith.constant dense<0.000000e+00> : vector<32x128xf32>
    %111 = tpu.matmul %108, %110, %cst_53 {dimension_numbers = #tpu.dot_dimension_numbers<[1], [0], [0], [1], [0, 0, 1, 1], [], []>} : vector<32x96xf32>, vector<96x128xf32>, vector<32x128xf32> -> vector<32x128xf32>
    %c0_54 = arith.constant 0 : index
    %c0_55 = arith.constant 0 : index
    %c0_56 = arith.constant 0 : index
    %112 = vector.load %arg11[%c0_54, %c0_55, %c0_56] : memref<2x1x128xf32, #tpu.memory_space<vmem>>, vector<1x1x128xf32>
    %113 = vector.shape_cast %112 : vector<1x1x128xf32> to vector<1x128xf32>
    %114 = vector.broadcast %113 : vector<1x128xf32> to vector<32x128xf32>
    %115 = arith.addf %111, %114 : vector<32x128xf32>
    %cst_57 = arith.constant 5.000000e-01 : f32
    %116 = vector.broadcast %cst_57 : f32 to vector<32x128xf32>
    %117 = arith.mulf %116, %115 : vector<32x128xf32>
    %cst_58 = arith.constant 0.707106769 : f32
    %118 = vector.broadcast %cst_58 : f32 to vector<32x128xf32>
    %119 = arith.mulf %115, %118 : vector<32x128xf32>
    %cst_59 = arith.constant 0.000000e+00 : f32
    %120 = vector.broadcast %cst_59 : f32 to vector<32x128xf32>
    %121 = arith.cmpf oge, %119, %120 : vector<32x128xf32>
    %cst_60 = arith.constant 1.000000e+00 : f32
    %cst_61 = arith.constant -1.000000e+00 : f32
    %122 = vector.broadcast %cst_60 : f32 to vector<32x128xf32>
    %123 = vector.broadcast %cst_61 : f32 to vector<32x128xf32>
    %124 = arith.select %121, %122, %123 : vector<32x128xi1>, vector<32x128xf32>
    %125 = math.absf %119 : vector<32x128xf32>
    %cst_62 = arith.constant 0.327591091 : f32
    %126 = vector.broadcast %cst_62 : f32 to vector<32x128xf32>
    %127 = arith.mulf %126, %125 : vector<32x128xf32>
    %cst_63 = arith.constant 1.000000e+00 : f32
    %128 = vector.broadcast %cst_63 : f32 to vector<32x128xf32>
    %129 = arith.addf %128, %127 : vector<32x128xf32>
    %cst_64 = arith.constant 1.000000e+00 : f32
    %130 = vector.broadcast %cst_64 : f32 to vector<32x128xf32>
    %131 = arith.divf %130, %129 : vector<32x128xf32>
    %cst_65 = arith.constant 1.06140542 : f32
    %132 = vector.broadcast %cst_65 : f32 to vector<32x128xf32>
    %133 = arith.mulf %132, %131 : vector<32x128xf32>
    %cst_66 = arith.constant -1.45315206 : f32
    %134 = vector.broadcast %cst_66 : f32 to vector<32x128xf32>
    %135 = arith.addf %133, %134 : vector<32x128xf32>
    %136 = arith.mulf %135, %131 : vector<32x128xf32>
    %cst_67 = arith.constant 1.42141378 : f32
    %137 = vector.broadcast %cst_67 : f32 to vector<32x128xf32>
    %138 = arith.addf %136, %137 : vector<32x128xf32>
    %139 = arith.mulf %138, %131 : vector<32x128xf32>
    %cst_68 = arith.constant -0.284496725 : f32
    %140 = vector.broadcast %cst_68 : f32 to vector<32x128xf32>
    %141 = arith.addf %139, %140 : vector<32x128xf32>
    %142 = arith.mulf %141, %131 : vector<32x128xf32>
    %cst_69 = arith.constant 0.254829586 : f32
    %143 = vector.broadcast %cst_69 : f32 to vector<32x128xf32>
    %144 = arith.addf %142, %143 : vector<32x128xf32>
    %145 = arith.mulf %144, %131 : vector<32x128xf32>
    %cst_70 = arith.constant 0.000000e+00 : f32
    %146 = vector.broadcast %cst_70 : f32 to vector<32x128xf32>
    %147 = arith.subf %146, %125 : vector<32x128xf32>
    %148 = arith.mulf %147, %125 : vector<32x128xf32>
    %149 = math.exp %148 : vector<32x128xf32>
    %150 = arith.mulf %145, %149 : vector<32x128xf32>
    %cst_71 = arith.constant 1.000000e+00 : f32
    %151 = vector.broadcast %cst_71 : f32 to vector<32x128xf32>
    %152 = arith.subf %151, %150 : vector<32x128xf32>
    %153 = arith.mulf %124, %152 : vector<32x128xf32>
    %cst_72 = arith.constant 1.000000e+00 : f32
    %154 = vector.broadcast %cst_72 : f32 to vector<32x128xf32>
    %155 = arith.addf %154, %153 : vector<32x128xf32>
    %156 = arith.mulf %117, %155 : vector<32x128xf32>
    %c0_73 = arith.constant 0 : index
    %c0_74 = arith.constant 0 : index
    %c0_75 = arith.constant 0 : index
    %157 = vector.load %arg12[%c0_73, %c0_74, %c0_75] : memref<2x128x96xf32, #tpu.memory_space<vmem>>, vector<1x128x96xf32>
    %158 = vector.shape_cast %157 : vector<1x128x96xf32> to vector<128x96xf32>
    %cst_76 = arith.constant dense<0.000000e+00> : vector<32x96xf32>
    %159 = tpu.matmul %156, %158, %cst_76 {dimension_numbers = #tpu.dot_dimension_numbers<[1], [0], [0], [1], [0, 0, 1, 1], [], []>} : vector<32x128xf32>, vector<128x96xf32>, vector<32x96xf32> -> vector<32x96xf32>
    %160 = arith.addf %84, %159 : vector<32x96xf32>
    %c0_77 = arith.constant 0 : index
    %c0_78 = arith.constant 0 : index
    %c0_79 = arith.constant 0 : index
    %161 = vector.load %arg13[%c0_77, %c0_78, %c0_79] : memref<2x1x96xf32, #tpu.memory_space<vmem>>, vector<1x1x96xf32>
    %162 = vector.shape_cast %161 : vector<1x1x96xf32> to vector<1x96xf32>
    %163 = vector.broadcast %162 : vector<1x96xf32> to vector<32x96xf32>
    %164 = arith.addf %160, %163 : vector<32x96xf32>
    %c1 = arith.constant 1 : index
    %c0_80 = arith.constant 0 : index
    %c0_81 = arith.constant 0 : index
    %165 = vector.load %arg3[%c1, %c0_80, %c0_81] : memref<2x1x96xf32, #tpu.memory_space<vmem>>, vector<1x1x96xf32>
    %166 = vector.shape_cast %165 : vector<1x1x96xf32> to vector<1x96xf32>
    %c1_82 = arith.constant 1 : index
    %c0_83 = arith.constant 0 : index
    %c0_84 = arith.constant 0 : index
    %167 = vector.load %arg4[%c1_82, %c0_83, %c0_84] : memref<2x1x96xf32, #tpu.memory_space<vmem>>, vector<1x1x96xf32>
    %168 = vector.shape_cast %167 : vector<1x1x96xf32> to vector<1x96xf32>
    %cst_85 = arith.constant dense<0.000000e+00> : vector<32xf32>
    %169 = vector.multi_reduction <add>, %164, %cst_85 [1] : vector<32x96xf32> to vector<32xf32>
    %170 = vector.shape_cast %169 : vector<32xf32> to vector<32x1xf32>
    %cst_86 = arith.constant 9.600000e+01 : f32
    %171 = vector.broadcast %cst_86 : f32 to vector<32x1xf32>
    %172 = arith.divf %170, %171 : vector<32x1xf32>
    %173 = vector.broadcast %172 : vector<32x1xf32> to vector<32x96xf32>
    %174 = arith.subf %164, %173 : vector<32x96xf32>
    %175 = arith.mulf %174, %174 : vector<32x96xf32>
    %cst_87 = arith.constant dense<0.000000e+00> : vector<32xf32>
    %176 = vector.multi_reduction <add>, %175, %cst_87 [1] : vector<32x96xf32> to vector<32xf32>
    %177 = vector.shape_cast %176 : vector<32xf32> to vector<32x1xf32>
    %cst_88 = arith.constant 9.600000e+01 : f32
    %178 = vector.broadcast %cst_88 : f32 to vector<32x1xf32>
    %179 = arith.divf %177, %178 : vector<32x1xf32>
    %cst_89 = arith.constant 9.99999974E-6 : f32
    %180 = vector.broadcast %cst_89 : f32 to vector<32x1xf32>
    %181 = arith.addf %179, %180 : vector<32x1xf32>
    %182 = math.rsqrt %181 : vector<32x1xf32>
    %183 = vector.broadcast %182 : vector<32x1xf32> to vector<32x96xf32>
    %184 = arith.mulf %174, %183 : vector<32x96xf32>
    %185 = vector.broadcast %166 : vector<1x96xf32> to vector<32x96xf32>
    %186 = arith.mulf %184, %185 : vector<32x96xf32>
    %187 = vector.broadcast %168 : vector<1x96xf32> to vector<32x96xf32>
    %188 = arith.addf %186, %187 : vector<32x96xf32>
    %c1_90 = arith.constant 1 : index
    %c0_91 = arith.constant 0 : index
    %c0_92 = arith.constant 0 : index
    %189 = vector.load %arg5[%c1_90, %c0_91, %c0_92] : memref<2x96x384xf32, #tpu.memory_space<vmem>>, vector<1x96x384xf32>
    %190 = vector.shape_cast %189 : vector<1x96x384xf32> to vector<96x384xf32>
    %cst_93 = arith.constant dense<0.000000e+00> : vector<32x384xf32>
    %191 = tpu.matmul %188, %190, %cst_93 {dimension_numbers = #tpu.dot_dimension_numbers<[1], [0], [0], [1], [0, 0, 1, 1], [], []>} : vector<32x96xf32>, vector<96x384xf32>, vector<32x384xf32> -> vector<32x384xf32>
    %192 = vector.extract_strided_slice %191 {offsets = [0, 0], sizes = [32, 128], strides = [1, 1]} : vector<32x384xf32> to vector<32x128xf32>
    %193 = vector.extract_strided_slice %191 {offsets = [0, 128], sizes = [32, 128], strides = [1, 1]} : vector<32x384xf32> to vector<32x128xf32>
    %194 = vector.extract_strided_slice %191 {offsets = [0, 256], sizes = [32, 128], strides = [1, 1]} : vector<32x384xf32> to vector<32x128xf32>
    %cst_94 = arith.constant dense<0xFF800000> : vector<32xf32>
    %195 = vector.multi_reduction <maximumf>, %192, %cst_94 [1] : vector<32x128xf32> to vector<32xf32>
    %196 = vector.shape_cast %195 : vector<32xf32> to vector<32x1xf32>
    %197 = vector.broadcast %196 : vector<32x1xf32> to vector<32x128xf32>
    %198 = arith.subf %192, %197 : vector<32x128xf32>
    %199 = math.exp %198 : vector<32x128xf32>
    %c0_95 = arith.constant 0 : index
    %c0_96 = arith.constant 0 : index
    %200 = vector.load %arg2[%c0_95, %c0_96] : memref<128x128xf32, #tpu.memory_space<vmem>>, vector<128x128xf32>
    %cst_97 = arith.constant dense<0.000000e+00> : vector<32x128xf32>
    %201 = tpu.matmul %199, %200, %cst_97 {dimension_numbers = #tpu.dot_dimension_numbers<[1], [0], [0], [1], [0, 0, 1, 1], [], []>} : vector<32x128xf32>, vector<128x128xf32>, vector<32x128xf32> -> vector<32x128xf32>
    %cst_98 = arith.constant 1.000000e-30 : f32
    %202 = vector.broadcast %cst_98 : f32 to vector<32x128xf32>
    %203 = arith.maximumf %201, %202 : vector<32x128xf32>
    %204 = tpu.reciprocal %203 {approx = true} : vector<32x128xf32> -> vector<32x128xf32>
    %205 = arith.mulf %199, %204 : vector<32x128xf32>
    %206 = vector.extract_strided_slice %193 {offsets = [0, 0], sizes = [16, 128], strides = [1, 1]} : vector<32x128xf32> to vector<16x128xf32>
    %207 = vector.extract_strided_slice %194 {offsets = [0, 0], sizes = [16, 128], strides = [1, 1]} : vector<32x128xf32> to vector<16x128xf32>
    %cst_99 = arith.constant dense<0xFF800000> : vector<128xf32>
    %208 = vector.multi_reduction <maximumf>, %206, %cst_99 [0] : vector<16x128xf32> to vector<128xf32>
    %209 = vector.shape_cast %208 : vector<128xf32> to vector<1x128xf32>
    %210 = vector.broadcast %209 : vector<1x128xf32> to vector<16x128xf32>
    %211 = arith.subf %206, %210 : vector<16x128xf32>
    %212 = math.exp %211 : vector<16x128xf32>
    %cst_100 = arith.constant dense<0.000000e+00> : vector<128xf32>
    %213 = vector.multi_reduction <add>, %212, %cst_100 [0] : vector<16x128xf32> to vector<128xf32>
    %214 = vector.shape_cast %213 : vector<128xf32> to vector<1x128xf32>
    %215 = tpu.reciprocal %214 {approx = true} : vector<1x128xf32> -> vector<1x128xf32>
    %216 = vector.broadcast %215 : vector<1x128xf32> to vector<16x128xf32>
    %217 = arith.mulf %212, %216 : vector<16x128xf32>
    "tpu.trace_start"() <{level = 10 : i32, message = "nd,ne->de"}> : () -> ()
    %cst_101 = arith.constant dense<0.000000e+00> : vector<128x128xf32>
    %218 = tpu.matmul %217, %207, %cst_101 {dimension_numbers = #tpu.dot_dimension_numbers<[0], [0], [1], [1], [0, 1, 1, 1], [], []>} : vector<16x128xf32>, vector<16x128xf32>, vector<128x128xf32> -> vector<128x128xf32>
    "tpu.trace_stop"() : () -> ()
    %219 = vector.extract_strided_slice %205 {offsets = [0, 0], sizes = [16, 128], strides = [1, 1]} : vector<32x128xf32> to vector<16x128xf32>
    %c0_102 = arith.constant 0 : index
    %c0_103 = arith.constant 0 : index
    %220 = vector.load %arg2[%c0_102, %c0_103] : memref<128x128xf32, #tpu.memory_space<vmem>>, vector<128x128xf32>
    %221 = arith.mulf %218, %220 : vector<128x128xf32>
    %cst_104 = arith.constant dense<0.000000e+00> : vector<16x128xf32>
    %222 = tpu.matmul %219, %221, %cst_104 {dimension_numbers = #tpu.dot_dimension_numbers<[1], [0], [0], [1], [0, 0, 1, 1], [], []>} : vector<16x128xf32>, vector<128x128xf32>, vector<16x128xf32> -> vector<16x128xf32>
    %223 = vector.extract_strided_slice %193 {offsets = [16, 0], sizes = [16, 128], strides = [1, 1]} : vector<32x128xf32> to vector<16x128xf32>
    %224 = vector.extract_strided_slice %194 {offsets = [16, 0], sizes = [16, 128], strides = [1, 1]} : vector<32x128xf32> to vector<16x128xf32>
    %cst_105 = arith.constant dense<0xFF800000> : vector<128xf32>
    %225 = vector.multi_reduction <maximumf>, %223, %cst_105 [0] : vector<16x128xf32> to vector<128xf32>
    %226 = vector.shape_cast %225 : vector<128xf32> to vector<1x128xf32>
    %227 = vector.broadcast %226 : vector<1x128xf32> to vector<16x128xf32>
    %228 = arith.subf %223, %227 : vector<16x128xf32>
    %229 = math.exp %228 : vector<16x128xf32>
    %cst_106 = arith.constant dense<0.000000e+00> : vector<128xf32>
    %230 = vector.multi_reduction <add>, %229, %cst_106 [0] : vector<16x128xf32> to vector<128xf32>
    %231 = vector.shape_cast %230 : vector<128xf32> to vector<1x128xf32>
    %232 = tpu.reciprocal %231 {approx = true} : vector<1x128xf32> -> vector<1x128xf32>
    %233 = vector.broadcast %232 : vector<1x128xf32> to vector<16x128xf32>
    %234 = arith.mulf %229, %233 : vector<16x128xf32>
    "tpu.trace_start"() <{level = 10 : i32, message = "nd,ne->de"}> : () -> ()
    %cst_107 = arith.constant dense<0.000000e+00> : vector<128x128xf32>
    %235 = tpu.matmul %234, %224, %cst_107 {dimension_numbers = #tpu.dot_dimension_numbers<[0], [0], [1], [1], [0, 1, 1, 1], [], []>} : vector<16x128xf32>, vector<16x128xf32>, vector<128x128xf32> -> vector<128x128xf32>
    "tpu.trace_stop"() : () -> ()
    %236 = vector.extract_strided_slice %205 {offsets = [16, 0], sizes = [16, 128], strides = [1, 1]} : vector<32x128xf32> to vector<16x128xf32>
    %c0_108 = arith.constant 0 : index
    %c0_109 = arith.constant 0 : index
    %237 = vector.load %arg2[%c0_108, %c0_109] : memref<128x128xf32, #tpu.memory_space<vmem>>, vector<128x128xf32>
    %238 = arith.mulf %235, %237 : vector<128x128xf32>
    %cst_110 = arith.constant dense<0.000000e+00> : vector<16x128xf32>
    %239 = tpu.matmul %236, %238, %cst_110 {dimension_numbers = #tpu.dot_dimension_numbers<[1], [0], [0], [1], [0, 0, 1, 1], [], []>} : vector<16x128xf32>, vector<128x128xf32>, vector<16x128xf32> -> vector<16x128xf32>
    %240 = tpu.concatenate %222, %239 in 0 : vector<16x128xf32>, vector<16x128xf32> -> vector<32x128xf32>
    %c1_111 = arith.constant 1 : index
    %c0_112 = arith.constant 0 : index
    %c0_113 = arith.constant 0 : index
    %241 = vector.load %arg6[%c1_111, %c0_112, %c0_113] : memref<2x128x96xf32, #tpu.memory_space<vmem>>, vector<1x128x96xf32>
    %242 = vector.shape_cast %241 : vector<1x128x96xf32> to vector<128x96xf32>
    %cst_114 = arith.constant dense<0.000000e+00> : vector<32x96xf32>
    %243 = tpu.matmul %240, %242, %cst_114 {dimension_numbers = #tpu.dot_dimension_numbers<[1], [0], [0], [1], [0, 0, 1, 1], [], []>} : vector<32x128xf32>, vector<128x96xf32>, vector<32x96xf32> -> vector<32x96xf32>
    %244 = arith.addf %164, %243 : vector<32x96xf32>
    %c1_115 = arith.constant 1 : index
    %c0_116 = arith.constant 0 : index
    %c0_117 = arith.constant 0 : index
    %245 = vector.load %arg7[%c1_115, %c0_116, %c0_117] : memref<2x1x96xf32, #tpu.memory_space<vmem>>, vector<1x1x96xf32>
    %246 = vector.shape_cast %245 : vector<1x1x96xf32> to vector<1x96xf32>
    %247 = vector.broadcast %246 : vector<1x96xf32> to vector<32x96xf32>
    %248 = arith.addf %244, %247 : vector<32x96xf32>
    %c1_118 = arith.constant 1 : index
    %c0_119 = arith.constant 0 : index
    %c0_120 = arith.constant 0 : index
    %249 = vector.load %arg8[%c1_118, %c0_119, %c0_120] : memref<2x1x96xf32, #tpu.memory_space<vmem>>, vector<1x1x96xf32>
    %250 = vector.shape_cast %249 : vector<1x1x96xf32> to vector<1x96xf32>
    %c1_121 = arith.constant 1 : index
    %c0_122 = arith.constant 0 : index
    %c0_123 = arith.constant 0 : index
    %251 = vector.load %arg9[%c1_121, %c0_122, %c0_123] : memref<2x1x96xf32, #tpu.memory_space<vmem>>, vector<1x1x96xf32>
    %252 = vector.shape_cast %251 : vector<1x1x96xf32> to vector<1x96xf32>
    %cst_124 = arith.constant dense<0.000000e+00> : vector<32xf32>
    %253 = vector.multi_reduction <add>, %248, %cst_124 [1] : vector<32x96xf32> to vector<32xf32>
    %254 = vector.shape_cast %253 : vector<32xf32> to vector<32x1xf32>
    %cst_125 = arith.constant 9.600000e+01 : f32
    %255 = vector.broadcast %cst_125 : f32 to vector<32x1xf32>
    %256 = arith.divf %254, %255 : vector<32x1xf32>
    %257 = vector.broadcast %256 : vector<32x1xf32> to vector<32x96xf32>
    %258 = arith.subf %248, %257 : vector<32x96xf32>
    %259 = arith.mulf %258, %258 : vector<32x96xf32>
    %cst_126 = arith.constant dense<0.000000e+00> : vector<32xf32>
    %260 = vector.multi_reduction <add>, %259, %cst_126 [1] : vector<32x96xf32> to vector<32xf32>
    %261 = vector.shape_cast %260 : vector<32xf32> to vector<32x1xf32>
    %cst_127 = arith.constant 9.600000e+01 : f32
    %262 = vector.broadcast %cst_127 : f32 to vector<32x1xf32>
    %263 = arith.divf %261, %262 : vector<32x1xf32>
    %cst_128 = arith.constant 9.99999974E-6 : f32
    %264 = vector.broadcast %cst_128 : f32 to vector<32x1xf32>
    %265 = arith.addf %263, %264 : vector<32x1xf32>
    %266 = math.rsqrt %265 : vector<32x1xf32>
    %267 = vector.broadcast %266 : vector<32x1xf32> to vector<32x96xf32>
    %268 = arith.mulf %258, %267 : vector<32x96xf32>
    %269 = vector.broadcast %250 : vector<1x96xf32> to vector<32x96xf32>
    %270 = arith.mulf %268, %269 : vector<32x96xf32>
    %271 = vector.broadcast %252 : vector<1x96xf32> to vector<32x96xf32>
    %272 = arith.addf %270, %271 : vector<32x96xf32>
    %c1_129 = arith.constant 1 : index
    %c0_130 = arith.constant 0 : index
    %c0_131 = arith.constant 0 : index
    %273 = vector.load %arg10[%c1_129, %c0_130, %c0_131] : memref<2x96x128xf32, #tpu.memory_space<vmem>>, vector<1x96x128xf32>
    %274 = vector.shape_cast %273 : vector<1x96x128xf32> to vector<96x128xf32>
    %cst_132 = arith.constant dense<0.000000e+00> : vector<32x128xf32>
    %275 = tpu.matmul %272, %274, %cst_132 {dimension_numbers = #tpu.dot_dimension_numbers<[1], [0], [0], [1], [0, 0, 1, 1], [], []>} : vector<32x96xf32>, vector<96x128xf32>, vector<32x128xf32> -> vector<32x128xf32>
    %c1_133 = arith.constant 1 : index
    %c0_134 = arith.constant 0 : index
    %c0_135 = arith.constant 0 : index
    %276 = vector.load %arg11[%c1_133, %c0_134, %c0_135] : memref<2x1x128xf32, #tpu.memory_space<vmem>>, vector<1x1x128xf32>
    %277 = vector.shape_cast %276 : vector<1x1x128xf32> to vector<1x128xf32>
    %278 = vector.broadcast %277 : vector<1x128xf32> to vector<32x128xf32>
    %279 = arith.addf %275, %278 : vector<32x128xf32>
    %cst_136 = arith.constant 5.000000e-01 : f32
    %280 = vector.broadcast %cst_136 : f32 to vector<32x128xf32>
    %281 = arith.mulf %280, %279 : vector<32x128xf32>
    %cst_137 = arith.constant 0.707106769 : f32
    %282 = vector.broadcast %cst_137 : f32 to vector<32x128xf32>
    %283 = arith.mulf %279, %282 : vector<32x128xf32>
    %cst_138 = arith.constant 0.000000e+00 : f32
    %284 = vector.broadcast %cst_138 : f32 to vector<32x128xf32>
    %285 = arith.cmpf oge, %283, %284 : vector<32x128xf32>
    %cst_139 = arith.constant 1.000000e+00 : f32
    %cst_140 = arith.constant -1.000000e+00 : f32
    %286 = vector.broadcast %cst_139 : f32 to vector<32x128xf32>
    %287 = vector.broadcast %cst_140 : f32 to vector<32x128xf32>
    %288 = arith.select %285, %286, %287 : vector<32x128xi1>, vector<32x128xf32>
    %289 = math.absf %283 : vector<32x128xf32>
    %cst_141 = arith.constant 0.327591091 : f32
    %290 = vector.broadcast %cst_141 : f32 to vector<32x128xf32>
    %291 = arith.mulf %290, %289 : vector<32x128xf32>
    %cst_142 = arith.constant 1.000000e+00 : f32
    %292 = vector.broadcast %cst_142 : f32 to vector<32x128xf32>
    %293 = arith.addf %292, %291 : vector<32x128xf32>
    %cst_143 = arith.constant 1.000000e+00 : f32
    %294 = vector.broadcast %cst_143 : f32 to vector<32x128xf32>
    %295 = arith.divf %294, %293 : vector<32x128xf32>
    %cst_144 = arith.constant 1.06140542 : f32
    %296 = vector.broadcast %cst_144 : f32 to vector<32x128xf32>
    %297 = arith.mulf %296, %295 : vector<32x128xf32>
    %cst_145 = arith.constant -1.45315206 : f32
    %298 = vector.broadcast %cst_145 : f32 to vector<32x128xf32>
    %299 = arith.addf %297, %298 : vector<32x128xf32>
    %300 = arith.mulf %299, %295 : vector<32x128xf32>
    %cst_146 = arith.constant 1.42141378 : f32
    %301 = vector.broadcast %cst_146 : f32 to vector<32x128xf32>
    %302 = arith.addf %300, %301 : vector<32x128xf32>
    %303 = arith.mulf %302, %295 : vector<32x128xf32>
    %cst_147 = arith.constant -0.284496725 : f32
    %304 = vector.broadcast %cst_147 : f32 to vector<32x128xf32>
    %305 = arith.addf %303, %304 : vector<32x128xf32>
    %306 = arith.mulf %305, %295 : vector<32x128xf32>
    %cst_148 = arith.constant 0.254829586 : f32
    %307 = vector.broadcast %cst_148 : f32 to vector<32x128xf32>
    %308 = arith.addf %306, %307 : vector<32x128xf32>
    %309 = arith.mulf %308, %295 : vector<32x128xf32>
    %cst_149 = arith.constant 0.000000e+00 : f32
    %310 = vector.broadcast %cst_149 : f32 to vector<32x128xf32>
    %311 = arith.subf %310, %289 : vector<32x128xf32>
    %312 = arith.mulf %311, %289 : vector<32x128xf32>
    %313 = math.exp %312 : vector<32x128xf32>
    %314 = arith.mulf %309, %313 : vector<32x128xf32>
    %cst_150 = arith.constant 1.000000e+00 : f32
    %315 = vector.broadcast %cst_150 : f32 to vector<32x128xf32>
    %316 = arith.subf %315, %314 : vector<32x128xf32>
    %317 = arith.mulf %288, %316 : vector<32x128xf32>
    %cst_151 = arith.constant 1.000000e+00 : f32
    %318 = vector.broadcast %cst_151 : f32 to vector<32x128xf32>
    %319 = arith.addf %318, %317 : vector<32x128xf32>
    %320 = arith.mulf %281, %319 : vector<32x128xf32>
    %c1_152 = arith.constant 1 : index
    %c0_153 = arith.constant 0 : index
    %c0_154 = arith.constant 0 : index
    %321 = vector.load %arg12[%c1_152, %c0_153, %c0_154] : memref<2x128x96xf32, #tpu.memory_space<vmem>>, vector<1x128x96xf32>
    %322 = vector.shape_cast %321 : vector<1x128x96xf32> to vector<128x96xf32>
    %cst_155 = arith.constant dense<0.000000e+00> : vector<32x96xf32>
    %323 = tpu.matmul %320, %322, %cst_155 {dimension_numbers = #tpu.dot_dimension_numbers<[1], [0], [0], [1], [0, 0, 1, 1], [], []>} : vector<32x128xf32>, vector<128x96xf32>, vector<32x96xf32> -> vector<32x96xf32>
    %324 = arith.addf %248, %323 : vector<32x96xf32>
    %c1_156 = arith.constant 1 : index
    %c0_157 = arith.constant 0 : index
    %c0_158 = arith.constant 0 : index
    %325 = vector.load %arg13[%c1_156, %c0_157, %c0_158] : memref<2x1x96xf32, #tpu.memory_space<vmem>>, vector<1x1x96xf32>
    %326 = vector.shape_cast %325 : vector<1x1x96xf32> to vector<1x96xf32>
    %327 = vector.broadcast %326 : vector<1x96xf32> to vector<32x96xf32>
    %328 = arith.addf %324, %327 : vector<32x96xf32>
    %c0_159 = arith.constant 0 : index
    %c0_160 = arith.constant 0 : index
    %c0_161 = arith.constant 0 : index
    %329 = vector.load %arg14[%c0_159, %c0_160, %c0_161] : memref<1x1x96xf32, #tpu.memory_space<vmem>>, vector<1x1x96xf32>
    %330 = vector.shape_cast %329 : vector<1x1x96xf32> to vector<1x96xf32>
    %c0_162 = arith.constant 0 : index
    %c0_163 = arith.constant 0 : index
    %c0_164 = arith.constant 0 : index
    %331 = vector.load %arg15[%c0_162, %c0_163, %c0_164] : memref<1x1x96xf32, #tpu.memory_space<vmem>>, vector<1x1x96xf32>
    %332 = vector.shape_cast %331 : vector<1x1x96xf32> to vector<1x96xf32>
    %cst_165 = arith.constant dense<0.000000e+00> : vector<32xf32>
    %333 = vector.multi_reduction <add>, %328, %cst_165 [1] : vector<32x96xf32> to vector<32xf32>
    %334 = vector.shape_cast %333 : vector<32xf32> to vector<32x1xf32>
    %cst_166 = arith.constant 9.600000e+01 : f32
    %335 = vector.broadcast %cst_166 : f32 to vector<32x1xf32>
    %336 = arith.divf %334, %335 : vector<32x1xf32>
    %337 = vector.broadcast %336 : vector<32x1xf32> to vector<32x96xf32>
    %338 = arith.subf %328, %337 : vector<32x96xf32>
    %339 = arith.mulf %338, %338 : vector<32x96xf32>
    %cst_167 = arith.constant dense<0.000000e+00> : vector<32xf32>
    %340 = vector.multi_reduction <add>, %339, %cst_167 [1] : vector<32x96xf32> to vector<32xf32>
    %341 = vector.shape_cast %340 : vector<32xf32> to vector<32x1xf32>
    %cst_168 = arith.constant 9.600000e+01 : f32
    %342 = vector.broadcast %cst_168 : f32 to vector<32x1xf32>
    %343 = arith.divf %341, %342 : vector<32x1xf32>
    %cst_169 = arith.constant 9.99999974E-6 : f32
    %344 = vector.broadcast %cst_169 : f32 to vector<32x1xf32>
    %345 = arith.addf %343, %344 : vector<32x1xf32>
    %346 = math.rsqrt %345 : vector<32x1xf32>
    %347 = vector.broadcast %346 : vector<32x1xf32> to vector<32x96xf32>
    %348 = arith.mulf %338, %347 : vector<32x96xf32>
    %349 = vector.broadcast %330 : vector<1x96xf32> to vector<32x96xf32>
    %350 = arith.mulf %348, %349 : vector<32x96xf32>
    %351 = vector.broadcast %332 : vector<1x96xf32> to vector<32x96xf32>
    %352 = arith.addf %350, %351 : vector<32x96xf32>
    %c0_170 = arith.constant 0 : index
    %c0_171 = arith.constant 0 : index
    %353 = vector.load %arg18[%c0_170, %c0_171] : memref<32x96xf32, #tpu.memory_space<vmem>>, vector<32x96xf32>
    tpu.vector_store %arg18[%c0_170, %c0_171], %352 {strides = array<i32>} : memref<32x96xf32, #tpu.memory_space<vmem>>, vector<32x96xf32>,
    %c0_172 = arith.constant 0 : index
    %c0_173 = arith.constant 0 : index
    %354 = vector.load %arg16[%c0_172, %c0_173] : memref<96x16xf32, #tpu.memory_space<vmem>>, vector<96x16xf32>
    %cst_174 = arith.constant dense<0.000000e+00> : vector<32x16xf32>
    %355 = tpu.matmul %352, %354, %cst_174 {dimension_numbers = #tpu.dot_dimension_numbers<[1], [0], [0], [1], [0, 0, 1, 1], [], []>} : vector<32x96xf32>, vector<96x16xf32>, vector<32x16xf32> -> vector<32x16xf32>
    %c0_175 = arith.constant 0 : index
    %c0_176 = arith.constant 0 : index
    %c0_177 = arith.constant 0 : index
    %356 = vector.load %arg17[%c0_175, %c0_176, %c0_177] : memref<1x1x16xf32, #tpu.memory_space<vmem>>, vector<1x1x16xf32>
    %357 = vector.shape_cast %356 : vector<1x1x16xf32> to vector<1x16xf32>
    %358 = vector.broadcast %357 : vector<1x16xf32> to vector<32x16xf32>
    %359 = arith.addf %355, %358 : vector<32x16xf32>
    %c0_178 = arith.constant 0 : index
    %c0_179 = arith.constant 0 : index
    %360 = vector.load %arg19[%c0_178, %c0_179] : memref<32x16xf32, #tpu.memory_space<vmem>>, vector<32x16xf32>
    tpu.vector_store %arg19[%c0_178, %c0_179], %359 {strides = array<i32>} : memref<32x16xf32, #tpu.memory_space<vmem>>, vector<32x16xf32>,
    return
  }
  func.func @transform_0(%arg0: i32) -> (i32, i32) {
    %c0_i32 = arith.constant 0 : i32
    %c0_i32_0 = arith.constant 0 : i32
    %c0_i32_1 = arith.constant 0 : i32
    return %c0_i32, %c0_i32_0 : i32, i32
  }
  func.func @transform_1(%arg0: i32) -> (i32, i32) {
    %c0_i32 = arith.constant 0 : i32
    %c0_i32_0 = arith.constant 0 : i32
    %c0_i32_1 = arith.constant 0 : i32
    return %c0_i32, %c0_i32_0 : i32, i32
  }
  func.func @transform_2(%arg0: i32) -> (i32, i32, i32) {
    %c0_i32 = arith.constant 0 : i32
    %c0_i32_0 = arith.constant 0 : i32
    %c0_i32_1 = arith.constant 0 : i32
    %c0_i32_2 = arith.constant 0 : i32
    return %c0_i32, %c0_i32_0, %c0_i32_1 : i32, i32, i32
  }
  func.func @transform_3(%arg0: i32) -> (i32, i32, i32) {
    %c0_i32 = arith.constant 0 : i32
    %c0_i32_0 = arith.constant 0 : i32
    %c0_i32_1 = arith.constant 0 : i32
    %c0_i32_2 = arith.constant 0 : i32
    return %c0_i32, %c0_i32_0, %c0_i32_1 : i32, i32, i32
  }
  func.func @transform_4(%arg0: i32) -> (i32, i32, i32) {
    %c0_i32 = arith.constant 0 : i32
    %c0_i32_0 = arith.constant 0 : i32
    %c0_i32_1 = arith.constant 0 : i32
    %c0_i32_2 = arith.constant 0 : i32
    return %c0_i32, %c0_i32_0, %c0_i32_1 : i32, i32, i32
  }
  func.func @transform_5(%arg0: i32) -> (i32, i32, i32) {
    %c0_i32 = arith.constant 0 : i32
    %c0_i32_0 = arith.constant 0 : i32
    %c0_i32_1 = arith.constant 0 : i32
    %c0_i32_2 = arith.constant 0 : i32
    return %c0_i32, %c0_i32_0, %c0_i32_1 : i32, i32, i32
  }
  func.func @transform_6(%arg0: i32) -> (i32, i32, i32) {
    %c0_i32 = arith.constant 0 : i32
    %c0_i32_0 = arith.constant 0 : i32
    %c0_i32_1 = arith.constant 0 : i32
    %c0_i32_2 = arith.constant 0 : i32
    return %c0_i32, %c0_i32_0, %c0_i32_1 : i32, i32, i32
  }
  func.func @transform_7(%arg0: i32) -> (i32, i32, i32) {
    %c0_i32 = arith.constant 0 : i32
    %c0_i32_0 = arith.constant 0 : i32
    %c0_i32_1 = arith.constant 0 : i32
    %c0_i32_2 = arith.constant 0 : i32
    return %c0_i32, %c0_i32_0, %c0_i32_1 : i32, i32, i32
  }
  func.func @transform_8(%arg0: i32) -> (i32, i32, i32) {
    %c0_i32 = arith.constant 0 : i32
    %c0_i32_0 = arith.constant 0 : i32
    %c0_i32_1 = arith.constant 0 : i32
    %c0_i32_2 = arith.constant 0 : i32
    return %c0_i32, %c0_i32_0, %c0_i32_1 : i32, i32, i32
  }
  func.func @transform_9(%arg0: i32) -> (i32, i32, i32) {
    %c0_i32 = arith.constant 0 : i32
    %c0_i32_0 = arith.constant 0 : i32
    %c0_i32_1 = arith.constant 0 : i32
    %c0_i32_2 = arith.constant 0 : i32
    return %c0_i32, %c0_i32_0, %c0_i32_1 : i32, i32, i32
  }
  func.func @transform_10(%arg0: i32) -> (i32, i32, i32) {
    %c0_i32 = arith.constant 0 : i32
    %c0_i32_0 = arith.constant 0 : i32
    %c0_i32_1 = arith.constant 0 : i32
    %c0_i32_2 = arith.constant 0 : i32
    return %c0_i32, %c0_i32_0, %c0_i32_1 : i32, i32, i32
  }
  func.func @transform_11(%arg0: i32) -> (i32, i32, i32) {
    %c0_i32 = arith.constant 0 : i32
    %c0_i32_0 = arith.constant 0 : i32
    %c0_i32_1 = arith.constant 0 : i32
    %c0_i32_2 = arith.constant 0 : i32
    return %c0_i32, %c0_i32_0, %c0_i32_1 : i32, i32, i32
  }
  func.func @transform_12(%arg0: i32) -> (i32, i32, i32) {
    %c0_i32 = arith.constant 0 : i32
    %c0_i32_0 = arith.constant 0 : i32
    %c0_i32_1 = arith.constant 0 : i32
    %c0_i32_2 = arith.constant 0 : i32
    return %c0_i32, %c0_i32_0, %c0_i32_1 : i32, i32, i32
  }
  func.func @transform_13(%arg0: i32) -> (i32, i32, i32) {
    %c0_i32 = arith.constant 0 : i32
    %c0_i32_0 = arith.constant 0 : i32
    %c0_i32_1 = arith.constant 0 : i32
    %c0_i32_2 = arith.constant 0 : i32
    return %c0_i32, %c0_i32_0, %c0_i32_1 : i32, i32, i32
  }
  func.func @transform_14(%arg0: i32) -> (i32, i32, i32) {
    %c0_i32 = arith.constant 0 : i32
    %c0_i32_0 = arith.constant 0 : i32
    %c0_i32_1 = arith.constant 0 : i32
    %c0_i32_2 = arith.constant 0 : i32
    return %c0_i32, %c0_i32_0, %c0_i32_1 : i32, i32, i32
  }
  func.func @transform_15(%arg0: i32) -> (i32, i32) {
    %c0_i32 = arith.constant 0 : i32
    %c0_i32_0 = arith.constant 0 : i32
    %c0_i32_1 = arith.constant 0 : i32
    return %c0_i32, %c0_i32_0 : i32, i32
  }
  func.func @transform_16(%arg0: i32) -> (i32, i32, i32) {
    %c0_i32 = arith.constant 0 : i32
    %c0_i32_0 = arith.constant 0 : i32
    %c0_i32_1 = arith.constant 0 : i32
    %c0_i32_2 = arith.constant 0 : i32
    return %c0_i32, %c0_i32_0, %c0_i32_1 : i32, i32, i32
  }
  func.func @transform_17(%arg0: i32) -> (i32, i32) {
    %c0_i32 = arith.constant 0 : i32
    %c0_i32_0 = arith.constant 0 : i32
    %c0_i32_1 = arith.constant 0 : i32
    return %c0_i32, %c0_i32_0 : i32, i32
  }
  func.func @transform_18(%arg0: i32) -> (i32, i32) {
    %c0_i32 = arith.constant 0 : i32
    %c0_i32_0 = arith.constant 0 : i32
    %c0_i32_1 = arith.constant 0 : i32
    return %c0_i32, %c0_i32_0 : i32, i32
  }
}

</mosaic_0001>

<llo_original>
// kernel: tpu_custom_call.1
$region0: #{tpu_custom_call.1}
  #allocation0 [shape = 'u32[]', space=smem, size = 0x4, offset = 0x4, fixed_abs, tag = 'smem constant byte address 0x4 - core index']
  #allocation1 [shape = 'u32[72,128]{1,0:T(1,128)}', space=vmem, size = 0x9000, scoped, tag = 'internal scratch']
  %s0 = inlined_call_operand.vmem [shape: f32[32,96], index: 0, kind: input, shape index: {}]
  %s1 = inlined_call_operand.hbm [shape: f32[128,128], index: 1, kind: input, shape index: {}]
  %s2 = inlined_call_operand.vmem [shape: f32[2,1,96], index: 2, kind: input, shape index: {}]
  %s3 = inlined_call_operand.vmem [shape: f32[2,1,96], index: 3, kind: input, shape index: {}]
  %s4 = inlined_call_operand.vmem [shape: f32[2,96,384], index: 4, kind: input, shape index: {}]
  %s5 = inlined_call_operand.vmem [shape: f32[2,128,96], index: 5, kind: input, shape index: {}]
  %s6 = inlined_call_operand.vmem [shape: f32[2,1,96], index: 6, kind: input, shape index: {}]
  %s7 = inlined_call_operand.vmem [shape: f32[2,1,96], index: 7, kind: input, shape index: {}]
  %s8 = inlined_call_operand.vmem [shape: f32[2,1,96], index: 8, kind: input, shape index: {}]
  %s9 = inlined_call_operand.vmem [shape: f32[2,96,128], index: 9, kind: input, shape index: {}]
  %s10 = inlined_call_operand.vmem [shape: f32[2,1,128], index: 10, kind: input, shape index: {}]
  %s11 = inlined_call_operand.vmem [shape: f32[2,128,96], index: 11, kind: input, shape index: {}]
  %s12 = inlined_call_operand.vmem [shape: f32[2,1,96], index: 12, kind: input, shape index: {}]
  %s13 = inlined_call_operand.vmem [shape: f32[1,1,96], index: 13, kind: input, shape index: {}]
  %s14 = inlined_call_operand.vmem [shape: f32[1,1,96], index: 14, kind: input, shape index: {}]
  %s15 = inlined_call_operand.vmem [shape: f32[96,16], index: 15, kind: input, shape index: {}]
  %s16 = inlined_call_operand.vmem [shape: f32[1,1,16], index: 16, kind: input, shape index: {}]
  %s17 = inlined_call_operand.hbm [shape: f32[32,96], index: 17, kind: output, shape index: {0}]
  %s18 = inlined_call_operand.vmem [shape: f32[32,16], index: 18, kind: output, shape index: {1}]
  %19 = xla_tuple %s17, %s18
  %s20 = sld [smem:[#allocation0]]
  $region90: #{tpu_custom_call.1} parent=0
    _
  %s22 = ssub.s32 1, %s20
  %s23 = scalar_select 0, %s22, %s20
  $region1: #{tpu_custom_call.1} parent=0
    #allocation2 [shape = 'u8[65536]{0}', space=vmem, size = 0x10000, scoped, tag = 'input window, operand 1, single buffered']
    #allocation3 [shape = 's32[1]{0}', space=sflag, size = 0x4, scoped, tag = 'scoped memory for tpu_custom_call.1']
    #allocation4 [shape = 's32[1]{0}', space=sflag, size = 0x4, scoped, tag = 'scoped memory for tpu_custom_call.1']
    #allocation5 [shape = 'u8[16384]{0}', space=vmem, size = 0x4000, scoped, tag = 'output window, operand 0, single buffered']
    %24 = vsyncpa [#allocation3], 0
    %25 = vsyncpa [#allocation4], 0
    // Predicated region
    $region2: #{tpu_custom_call.1} parent=1 // pred_check
      _
    $region3: #{tpu_custom_call.1} parent=1 // pred_check_branch
      %27 = sbr.rel (0) target = $region5
    $region4: #{tpu_custom_call.1} parent=1 // pred_region
      _
    $region5: #{tpu_custom_call.1} parent=1 // pred_fallthru
      _
    // Predicated region
    $region6: #{tpu_custom_call.1} parent=1 // pred_check
      _
    $region7: #{tpu_custom_call.1} parent=1 // pred_check_branch
      %29 = sbr.rel (0) target = $region9
    $region8: #{tpu_custom_call.1} parent=1 // pred_region
      %31 = vsyncadd [#allocation3], 0
      %s32 = sshll.u32 %s1, 4
      %s33 = int_to_ptr.hbm [resolvable:$true] %s32
      %s34 = sshll.u32 [#allocation2], 4
      %s35 = int_to_ptr.vmem [resolvable:$true] %s34
      %40 = dma.hbm_to_vmem [thread:$0]  %s33, 2048, %s35, [#allocation3], 128, 128, 8
    $region9: #{tpu_custom_call.1} parent=1 // pred_fallthru
      _
    // Predicated region
    $region10: #{tpu_custom_call.1} parent=1 // pred_check
      _
    $region11: #{tpu_custom_call.1} parent=1 // pred_check_branch
      %42 = sbr.rel (0) target = $region13
    $region12: #{tpu_custom_call.1} parent=1 // pred_region
      _
    $region13: #{tpu_custom_call.1} parent=1 // pred_fallthru
      _
    // Predicated region
    $region14: #{tpu_custom_call.1} parent=1 // pred_check
      _
    $region15: #{tpu_custom_call.1} parent=1 // pred_check_branch
      %44 = sbr.rel (0) target = $region17
    $region16: #{tpu_custom_call.1} parent=1 // pred_region
      _
    $region17: #{tpu_custom_call.1} parent=1 // pred_fallthru
      _
    // Predicated region
    $region18: #{tpu_custom_call.1} parent=1 // pred_check
      _
    $region19: #{tpu_custom_call.1} parent=1 // pred_check_branch
      %46 = sbr.rel (0) target = $region21
    $region20: #{tpu_custom_call.1} parent=1 // pred_region
      _
    $region21: #{tpu_custom_call.1} parent=1 // pred_fallthru
      _
    // Predicated region
    $region22: #{tpu_custom_call.1} parent=1 // pred_check
      _
    $region23: #{tpu_custom_call.1} parent=1 // pred_check_branch
      %48 = sbr.rel (0) target = $region25
    $region24: #{tpu_custom_call.1} parent=1 // pred_region
      _
    $region25: #{tpu_custom_call.1} parent=1 // pred_fallthru
      _
    // Predicated region
    $region26: #{tpu_custom_call.1} parent=1 // pred_check
      _
    $region27: #{tpu_custom_call.1} parent=1 // pred_check_branch
      %50 = sbr.rel (0) target = $region29
    $region28: #{tpu_custom_call.1} parent=1 // pred_region
      _
    $region29: #{tpu_custom_call.1} parent=1 // pred_fallthru
      _
    // Predicated region
    $region30: #{tpu_custom_call.1} parent=1 // pred_check
      _
    $region31: #{tpu_custom_call.1} parent=1 // pred_check_branch
      %52 = sbr.rel (0) target = $region33
    $region32: #{tpu_custom_call.1} parent=1 // pred_region
      _
    $region33: #{tpu_custom_call.1} parent=1 // pred_fallthru
      _
    // Predicated region
    $region34: #{tpu_custom_call.1} parent=1 // pred_check
      _
    $region35: #{tpu_custom_call.1} parent=1 // pred_check_branch
      %54 = sbr.rel (0) target = $region37
    $region36: #{tpu_custom_call.1} parent=1 // pred_region
      _
    $region37: #{tpu_custom_call.1} parent=1 // pred_fallthru
      _
    // Predicated region
    $region38: #{tpu_custom_call.1} parent=1 // pred_check
      _
    $region39: #{tpu_custom_call.1} parent=1 // pred_check_branch
      %56 = sbr.rel (0) target = $region41
    $region40: #{tpu_custom_call.1} parent=1 // pred_region
      _
    $region41: #{tpu_custom_call.1} parent=1 // pred_fallthru
      _
    // Predicated region
    $region42: #{tpu_custom_call.1} parent=1 // pred_check
      _
    $region43: #{tpu_custom_call.1} parent=1 // pred_check_branch
      %58 = sbr.rel (0) target = $region45
    $region44: #{tpu_custom_call.1} parent=1 // pred_region
      _
    $region45: #{tpu_custom_call.1} parent=1 // pred_fallthru
      _
    // Predicated region
    $region46: #{tpu_custom_call.1} parent=1 // pred_check
      _
    $region47: #{tpu_custom_call.1} parent=1 // pred_check_branch
      %60 = sbr.rel (0) target = $region49
    $region48: #{tpu_custom_call.1} parent=1 // pred_region
      _
    $region49: #{tpu_custom_call.1} parent=1 // pred_fallthru
      _
    // Predicated region
    $region50: #{tpu_custom_call.1} parent=1 // pred_check
      _
    $region51: #{tpu_custom_call.1} parent=1 // pred_check_branch
      %62 = sbr.rel (0) target = $region53
    $region52: #{tpu_custom_call.1} parent=1 // pred_region
      _
    $region53: #{tpu_custom_call.1} parent=1 // pred_fallthru
      _
    // Predicated region
    $region54: #{tpu_custom_call.1} parent=1 // pred_check
      _
    $region55: #{tpu_custom_call.1} parent=1 // pred_check_branch
      %64 = sbr.rel (0) target = $region57
    $region56: #{tpu_custom_call.1} parent=1 // pred_region
      _
    $region57: #{tpu_custom_call.1} parent=1 // pred_fallthru
      _
    // Predicated region
    $region58: #{tpu_custom_call.1} parent=1 // pred_check
      _
    $region59: #{tpu_custom_call.1} parent=1 // pred_check_branch
      %66 = sbr.rel (0) target = $region61
    $region60: #{tpu_custom_call.1} parent=1 // pred_region
      _
    $region61: #{tpu_custom_call.1} parent=1 // pred_fallthru
      _
    // Predicated region
    $region62: #{tpu_custom_call.1} parent=1 // pred_check
      _
    $region63: #{tpu_custom_call.1} parent=1 // pred_check_branch
      %68 = sbr.rel (0) target = $region65
    $region64: #{tpu_custom_call.1} parent=1 // pred_region
      _
    $region65: #{tpu_custom_call.1} parent=1 // pred_fallthru
      _
    // Predicated region
    $region66: #{tpu_custom_call.1} parent=1 // pred_check
      _
    $region67: #{tpu_custom_call.1} parent=1 // pred_check_branch
      %70 = sbr.rel (0) target = $region69
    $region68: #{tpu_custom_call.1} parent=1 // pred_region
      _
    $region69: #{tpu_custom_call.1} parent=1 // pred_fallthru
      _
    // Predicated region
    $region70: #{tpu_custom_call.1} parent=1 // pred_check
      _
    $region71: #{tpu_custom_call.1} parent=1 // pred_check_branch
      %72 = sbr.rel (0) target = $region73
    $region72: #{tpu_custom_call.1} parent=1 // pred_region
      %74 = dma.done [#allocation3], 2048
    $region73: #{tpu_custom_call.1} parent=1 // pred_fallthru
      _
    %v75 = vld [vmem:[%s0] sm:$0xff]
    %v76 = vld [vmem:[%s0 + $0x8] sm:$0xff]
    %v77 = vld [vmem:[%s0 + $0x10] sm:$0xff]
    %v78 = vld [vmem:[%s0 + $0x18] sm:$0xff]
    %v79 = vld [vmem:[%s2] sm:$0x1]
    %v80 = vld [vmem:[%s3] sm:$0x1]
    %vm81 = vcmask 785408
    %v82 = vsel %vm81, %v75, 0.0
    %83 = vadd.xlane.f32.xlu0 %v82
    %v84 = vpop.xlane.xlu0 %83
    %v85 = vsel %vm81, %v76, 0.0
    %86 = vadd.xlane.f32.xlu0 %v85
    %v87 = vpop.xlane.xlu0 %86
    %v88 = vsel %vm81, %v77, 0.0
    %89 = vadd.xlane.f32.xlu0 %v88
    %v90 = vpop.xlane.xlu0 %89
    %v91 = vsel %vm81, %v78, 0.0
    %92 = vadd.xlane.f32.xlu0 %v91
    %v93 = vpop.xlane.xlu0 %92
    %v94 = vrcp.pop 96.0
    %v95 = vmul.f32 96.0, %v94
    %v96 = vsub.f32 1.0, %v95
    %v97 = vmul.f32 %v94, %v96
    %v98 = vadd.f32 %v94, %v97
    %vm99 = vweird.f32 %v94
    %v100 = vsel %vm99, %v94, %v98
    %v101 = vmul.f32 %v84, %v100
    %v102 = vmul.f32 %v87, %v100
    %v103 = vmul.f32 %v90, %v100
    %v104 = vmul.f32 %v93, %v100
    %v105 = vsub.f32 %v75, %v101
    %v106 = vsub.f32 %v76, %v102
    %v107 = vsub.f32 %v77, %v103
    %v108 = vsub.f32 %v78, %v104
    %v109 = vmul.f32 %v105, %v105
    %v110 = vmul.f32 %v106, %v106
    %v111 = vmul.f32 %v107, %v107
    %v112 = vmul.f32 %v108, %v108
    %v113 = vsel %vm81, %v109, 0.0
    %114 = vadd.xlane.f32.xlu0 %v113
    %v115 = vpop.xlane.xlu0 %114
    %v116 = vsel %vm81, %v110, 0.0
    %117 = vadd.xlane.f32.xlu0 %v116
    %v118 = vpop.xlane.xlu0 %117
    %v119 = vsel %vm81, %v111, 0.0
    %120 = vadd.xlane.f32.xlu0 %v119
    %v121 = vpop.xlane.xlu0 %120
    %v122 = vsel %vm81, %v112, 0.0
    %123 = vadd.xlane.f32.xlu0 %v122
    %v124 = vpop.xlane.xlu0 %123
    %v125 = vmul.f32 %v115, %v100
    %v126 = vmul.f32 %v118, %v100
    %v127 = vmul.f32 %v121, %v100
    %v128 = vmul.f32 %v124, %v100
    %v129 = vadd.f32 %v125, 1e-05
    %v130 = vadd.f32 %v126, 1e-05
    %v131 = vadd.f32 %v127, 1e-05
    %v132 = vadd.f32 %v128, 1e-05
    %v133 = vrsqrt.pop %v129
    %v134 = vmul.f32 %v133, %v129
    %v135 = vmul.f32 %v134, %v133
    %v136 = vmul.f32 0.5, %v135
    %v137 = vsub.f32 1.5, %v136
    %v138 = vmul.f32 %v133, %v137
    %vm139 = vweird.f32 %v129
    %vm140 = vweird.f32 %v133
    %vm141 = vmor %vm139, %vm140
    %v142 = vsel %vm141, %v133, %v138
    %v143 = vrsqrt.pop %v130
    %v144 = vmul.f32 %v143, %v130
    %v145 = vmul.f32 %v144, %v143
    %v146 = vmul.f32 0.5, %v145
    %v147 = vsub.f32 1.5, %v146
    %v148 = vmul.f32 %v143, %v147
    %vm149 = vweird.f32 %v130
    %vm150 = vweird.f32 %v143
    %vm151 = vmor %vm149, %vm150
    %v152 = vsel %vm151, %v143, %v148
    %v153 = vrsqrt.pop %v131
    %v154 = vmul.f32 %v153, %v131
    %v155 = vmul.f32 %v154, %v153
    %v156 = vmul.f32 0.5, %v155
    %v157 = vsub.f32 1.5, %v156
    %v158 = vmul.f32 %v153, %v157
    %vm159 = vweird.f32 %v131
    %vm160 = vweird.f32 %v153
    %vm161 = vmor %vm159, %vm160
    %v162 = vsel %vm161, %v153, %v158
    %v163 = vrsqrt.pop %v132
    %v164 = vmul.f32 %v163, %v132
    %v165 = vmul.f32 %v164, %v163
    %v166 = vmul.f32 0.5, %v165
    %v167 = vsub.f32 1.5, %v166
    %v168 = vmul.f32 %v163, %v167
    %vm169 = vweird.f32 %v132
    %vm170 = vweird.f32 %v163
    %vm171 = vmor %vm169, %vm170
    %v172 = vsel %vm171, %v163, %v168
    %v173 = vmul.f32 %v105, %v142
    %v174 = vmul.f32 %v106, %v152
    %v175 = vmul.f32 %v107, %v162
    %v176 = vmul.f32 %v108, %v172
    %v178 = vperm.slane %v79, 0
    %v180 = vmul.f32 %v173, %v178
    %v181 = vmul.f32 %v174, %v178
    %v182 = vmul.f32 %v175, %v178
    %v183 = vmul.f32 %v176, %v178
    %v185 = vperm.slane %v80, 0
    %v187 = vadd.f32 %v180, %v185
    %v188 = vadd.f32 %v181, %v185
    %v189 = vadd.f32 %v182, %v185
    %v190 = vadd.f32 %v183, %v185
    %v191 = vld [vmem:[%s4] sm:$0xff]
    %v192 = vld [vmem:[%s4 + $0x8] sm:$0xff]
    %v193 = vld [vmem:[%s4 + $0x10] sm:$0xff]
    %v194 = vld [vmem:[%s4 + $0x18] sm:$0xff]
    %v195 = vld [vmem:[%s4 + $0x20] sm:$0xff]
    %v196 = vld [vmem:[%s4 + $0x28] sm:$0xff]
    %v197 = vld [vmem:[%s4 + $0x30] sm:$0xff]
    %v198 = vld [vmem:[%s4 + $0x38] sm:$0xff]
    %v199 = vld [vmem:[%s4 + $0x40] sm:$0xff]
    %v200 = vld [vmem:[%s4 + $0x48] sm:$0xff]
    %v201 = vld [vmem:[%s4 + $0x50] sm:$0xff]
    %v202 = vld [vmem:[%s4 + $0x58] sm:$0xff]
    %v203 = vld [vmem:[%s4 + $0x60] sm:$0xff]
    %v204 = vld [vmem:[%s4 + $0x68] sm:$0xff]
    %v205 = vld [vmem:[%s4 + $0x70] sm:$0xff]
    %v206 = vld [vmem:[%s4 + $0x78] sm:$0xff]
    %v207 = vld [vmem:[%s4 + $0x80] sm:$0xff]
    %v208 = vld [vmem:[%s4 + $0x88] sm:$0xff]
    %v209 = vld [vmem:[%s4 + $0x90] sm:$0xff]
    %v210 = vld [vmem:[%s4 + $0x98] sm:$0xff]
    %v211 = vld [vmem:[%s4 + $0xa0] sm:$0xff]
    %v212 = vld [vmem:[%s4 + $0xa8] sm:$0xff]
    %v213 = vld [vmem:[%s4 + $0xb0] sm:$0xff]
    %v214 = vld [vmem:[%s4 + $0xb8] sm:$0xff]
    %v215 = vld [vmem:[%s4 + $0xc0] sm:$0xff]
    %v216 = vld [vmem:[%s4 + $0xc8] sm:$0xff]
    %v217 = vld [vmem:[%s4 + $0xd0] sm:$0xff]
    %v218 = vld [vmem:[%s4 + $0xd8] sm:$0xff]
    %v219 = vld [vmem:[%s4 + $0xe0] sm:$0xff]
    %v220 = vld [vmem:[%s4 + $0xe8] sm:$0xff]
    %v221 = vld [vmem:[%s4 + $0xf0] sm:$0xff]
    %v222 = vld [vmem:[%s4 + $0xf8] sm:$0xff]
    %v223 = vld [vmem:[%s4 + $0x100] sm:$0xff]
    %v224 = vld [vmem:[%s4 + $0x108] sm:$0xff]
    %v225 = vld [vmem:[%s4 + $0x110] sm:$0xff]
    %v226 = vld [vmem:[%s4 + $0x118] sm:$0xff]
    %v228 = vsel %vm81, %v187, 0
    %v231 = vsel %vm81, %v188, 0
    %v234 = vsel %vm81, %v189, 0
    %v237 = vsel %vm81, %v190, 0
    %239 = vmatpush.msra.mxu0 0.0
    %240 = vmatpush.msra.mxu0 0.0
    %241 = vmatpush.msra.mxu0 0.0
    %242 = vmatpush.msra.mxu0 0.0
    %243 = vmatpush.msra.mxu0 %v224
    %244 = vmatpush.msra.mxu0 %v221
    %245 = vmatpush.msra.mxu0 %v218
    %246 = vmatpush.msra.mxu0 %v215
    %247 = vmatpush.msra.mxu0 %v212
    %248 = vmatpush.msra.mxu0 %v209
    %249 = vmatpush.msra.mxu0 %v206
    %250 = vmatpush.msra.mxu0 %v203
    %251 = vmatpush.msra.mxu0 %v200
    %252 = vmatpush.msra.mxu0 %v197
    %253 = vmatpush.msra.mxu0 %v194
    %254 = vmatpush.msra.mxu0 %v191
    %255 = vmatmul.f32.gmra.mxu0 %v228
    %v256 = vpop.f32.mrf.mxu0
    %v257 = vadd.f32 0.0, %v256
    %258 = vmatmul.f32.gmra.mxu0 %v231
    %v259 = vpop.f32.mrf.mxu0
    %v260 = vadd.f32 0.0, %v259
    %261 = vmatmul.f32.gmra.mxu0 %v234
    %v262 = vpop.f32.mrf.mxu0
    %v263 = vadd.f32 0.0, %v262
    %264 = vmatmul.f32.gmra.mxu0 %v237
    %v265 = vpop.f32.mrf.mxu0
    %v266 = vadd.f32 0.0, %v265
    %267 = vdwg.mxu0
    %268 = vmatpush.msra.mxu0 0.0
    %269 = vmatpush.msra.mxu0 0.0
    %270 = vmatpush.msra.mxu0 0.0
    %271 = vmatpush.msra.mxu0 0.0
    %272 = vmatpush.msra.mxu0 %v225
    %273 = vmatpush.msra.mxu0 %v222
    %274 = vmatpush.msra.mxu0 %v219
    %275 = vmatpush.msra.mxu0 %v216
    %276 = vmatpush.msra.mxu0 %v213
    %277 = vmatpush.msra.mxu0 %v210
    %278 = vmatpush.msra.mxu0 %v207
    %279 = vmatpush.msra.mxu0 %v204
    %280 = vmatpush.msra.mxu0 %v201
    %281 = vmatpush.msra.mxu0 %v198
    %282 = vmatpush.msra.mxu0 %v195
    %283 = vmatpush.msra.mxu0 %v192
    %284 = vmatmul.f32.gmra.mxu0 %v228
    %v285 = vpop.f32.mrf.mxu0
    %v286 = vadd.f32 0.0, %v285
    %287 = vmatmul.f32.gmra.mxu0 %v231
    %v288 = vpop.f32.mrf.mxu0
    %v289 = vadd.f32 0.0, %v288
    %290 = vmatmul.f32.gmra.mxu0 %v234
    %v291 = vpop.f32.mrf.mxu0
    %v292 = vadd.f32 0.0, %v291
    %293 = vmatmul.f32.gmra.mxu0 %v237
    %v294 = vpop.f32.mrf.mxu0
    %v295 = vadd.f32 0.0, %v294
    %296 = vdwg.mxu0
    %297 = vmatpush.msra.mxu0 0.0
    %298 = vmatpush.msra.mxu0 0.0
    %299 = vmatpush.msra.mxu0 0.0
    %300 = vmatpush.msra.mxu0 0.0
    %301 = vmatpush.msra.mxu0 %v226
    %302 = vmatpush.msra.mxu0 %v223
    %303 = vmatpush.msra.mxu0 %v220
    %304 = vmatpush.msra.mxu0 %v217
    %305 = vmatpush.msra.mxu0 %v214
    %306 = vmatpush.msra.mxu0 %v211
    %307 = vmatpush.msra.mxu0 %v208
    %308 = vmatpush.msra.mxu0 %v205
    %309 = vmatpush.msra.mxu0 %v202
    %310 = vmatpush.msra.mxu0 %v199
    %311 = vmatpush.msra.mxu0 %v196
    %312 = vmatpush.msra.mxu0 %v193
    %313 = vmatmul.f32.gmra.mxu0 %v228
    %v314 = vpop.f32.mrf.mxu0
    %v315 = vadd.f32 0.0, %v314
    %316 = vmatmul.f32.gmra.mxu0 %v231
    %v317 = vpop.f32.mrf.mxu0
    %v318 = vadd.f32 0.0, %v317
    %319 = vmatmul.f32.gmra.mxu0 %v234
    %v320 = vpop.f32.mrf.mxu0
    %v321 = vadd.f32 0.0, %v320
    %322 = vmatmul.f32.gmra.mxu0 %v237
    %v323 = vpop.f32.mrf.mxu0
    %v324 = vadd.f32 0.0, %v323
    %325 = vdwg.mxu0
    %326 = vmax.xlane.f32.xlu0 %v257
    %v327 = vpop.xlane.xlu0 %326
    %328 = vmax.xlane.f32.xlu0 %v260
    %v329 = vpop.xlane.xlu0 %328
    %330 = vmax.xlane.f32.xlu0 %v263
    %v331 = vpop.xlane.xlu0 %330
    %332 = vmax.xlane.f32.xlu0 %v266
    %v333 = vpop.xlane.xlu0 %332
    %v334 = vsub.f32 %v257, %v327
    %v335 = vsub.f32 %v260, %v329
    %v336 = vsub.f32 %v263, %v331
    %v337 = vsub.f32 %v266, %v333
    %v338 = vmul.f32 %v334, 1.442695
    %v339 = vpow.pop %v338
    %v340 = vmul.f32 %v335, 1.442695
    %v341 = vpow.pop %v340
    %v342 = vmul.f32 %v336, 1.442695
    %v343 = vpow.pop %v342
    %v344 = vmul.f32 %v337, 1.442695
    %v345 = vpow.pop %v344
    %v346 = vld [vmem:[#allocation2] sm:$0xff]
    %v347 = vld [vmem:[#allocation2 + $0x8] sm:$0xff]
    %v348 = vld [vmem:[#allocation2 + $0x10] sm:$0xff]
    %v349 = vld [vmem:[#allocation2 + $0x18] sm:$0xff]
    %v350 = vld [vmem:[#allocation2 + $0x20] sm:$0xff]
    %v351 = vld [vmem:[#allocation2 + $0x28] sm:$0xff]
    %v352 = vld [vmem:[#allocation2 + $0x30] sm:$0xff]
    %v353 = vld [vmem:[#allocation2 + $0x38] sm:$0xff]
    %v354 = vld [vmem:[#allocation2 + $0x40] sm:$0xff]
    %v355 = vld [vmem:[#allocation2 + $0x48] sm:$0xff]
    %v356 = vld [vmem:[#allocation2 + $0x50] sm:$0xff]
    %v357 = vld [vmem:[#allocation2 + $0x58] sm:$0xff]
    %v358 = vld [vmem:[#allocation2 + $0x60] sm:$0xff]
    %v359 = vld [vmem:[#allocation2 + $0x68] sm:$0xff]
    %v360 = vld [vmem:[#allocation2 + $0x70] sm:$0xff]
    %v361 = vld [vmem:[#allocation2 + $0x78] sm:$0xff]
    %362 = vmatpush.msra.mxu0 %v361
    %363 = vmatpush.msra.mxu0 %v360
    %364 = vmatpush.msra.mxu0 %v359
    %365 = vmatpush.msra.mxu0 %v358
    %366 = vmatpush.msra.mxu0 %v357
    %367 = vmatpush.msra.mxu0 %v356
    %368 = vmatpush.msra.mxu0 %v355
    %369 = vmatpush.msra.mxu0 %v354
    %370 = vmatpush.msra.mxu0 %v353
    %371 = vmatpush.msra.mxu0 %v352
    %372 = vmatpush.msra.mxu0 %v351
    %373 = vmatpush.msra.mxu0 %v350
    %374 = vmatpush.msra.mxu0 %v349
    %375 = vmatpush.msra.mxu0 %v348
    %376 = vmatpush.msra.mxu0 %v347
    %377 = vmatpush.msra.mxu0 %v346
    %378 = vmatmul.f32.gmra.mxu0 %v339
    %v379 = vpop.f32.mrf.mxu0
    %v380 = vadd.f32 0.0, %v379
    %381 = vmatmul.f32.gmra.mxu0 %v341
    %v382 = vpop.f32.mrf.mxu0
    %v383 = vadd.f32 0.0, %v382
    %384 = vmatmul.f32.gmra.mxu0 %v343
    %v385 = vpop.f32.mrf.mxu0
    %v386 = vadd.f32 0.0, %v385
    %387 = vmatmul.f32.gmra.mxu0 %v345
    %v388 = vpop.f32.mrf.mxu0
    %v389 = vadd.f32 0.0, %v388
    %390 = vdwg.mxu0
    %v391 = vmax.f32 %v380, 1e-30
    %v392 = vmax.f32 %v383, 1e-30
    %v393 = vmax.f32 %v386, 1e-30
    %v394 = vmax.f32 %v389, 1e-30
    %v395 = vrcp.pop %v391
    %v396 = vrcp.pop %v392
    %v397 = vrcp.pop %v393
    %v398 = vrcp.pop %v394
    %v399 = vmul.f32 %v339, %v395
    %v400 = vmul.f32 %v341, %v396
    %v401 = vmul.f32 %v343, %v397
    %v402 = vmul.f32 %v345, %v398
    %v403 = vmax.f32 %v286, %v289
    %v404 = vrot.slane %v403, 4
    %v405 = vmax.f32 %v403, %v404
    %v406 = vrot.slane %v405, 2
    %v407 = vmax.f32 %v405, %v406
    %v408 = vrot.slane %v407, 1
    %v409 = vmax.f32 %v407, %v408
    %v410 = vsub.f32 %v286, %v409
    %v411 = vsub.f32 %v289, %v409
    %v412 = vmul.f32 %v410, 1.442695
    %v413 = vpow.pop %v412
    %v414 = vmul.f32 %v411, 1.442695
    %v415 = vpow.pop %v414
    %v416 = vadd.f32 %v413, %v415
    %v417 = vrot.slane %v416, 4
    %v418 = vadd.f32 %v416, %v417
    %v419 = vrot.slane %v418, 2
    %v420 = vadd.f32 %v418, %v419
    %v421 = vrot.slane %v420, 1
    %v422 = vadd.f32 %v420, %v421
    %v423 = vrcp.pop %v422
    %v424 = vmul.f32 %v413, %v423
    %v425 = vmul.f32 %v415, %v423
    %426 = vxpose.xlu0.b32.start [1/16] %v424, 128
    %427 = vxpose.xlu0.b32.cont [2/16] %v425, 128
    %428 = vxpose.xlu0.b32.cont [3/16] 0.0, 128
    %429 = vxpose.xlu0.b32.cont [4/16] 0.0, 128
    %430 = vxpose.xlu0.b32.cont [5/16] 0.0, 128
    %431 = vxpose.xlu0.b32.cont [6/16] 0.0, 128
    %432 = vxpose.xlu0.b32.cont [7/16] 0.0, 128
    %433 = vxpose.xlu0.b32.cont [8/16] 0.0, 128
    %434 = vxpose.xlu0.b32.cont [9/16] 0.0, 128
    %435 = vxpose.xlu0.b32.cont [10/16] 0.0, 128
    %436 = vxpose.xlu0.b32.cont [11/16] 0.0, 128
    %437 = vxpose.xlu0.b32.cont [12/16] 0.0, 128
    %438 = vxpose.xlu0.b32.cont [13/16] 0.0, 128
    %439 = vxpose.xlu0.b32.cont [14/16] 0.0, 128
    %440 = vxpose.xlu0.b32.cont [15/16] 0.0, 128
    %441 = vxpose.xlu0.b32.end [16/16] 0.0, 128
    %v442 = vpop.trf.xlu0
    %v443 = vpop.trf.xlu0
    %v444 = vpop.trf.xlu0
    %v445 = vpop.trf.xlu0
    %v446 = vpop.trf.xlu0
    %v447 = vpop.trf.xlu0
    %v448 = vpop.trf.xlu0
    %v449 = vpop.trf.xlu0
    %v450 = vpop.trf.xlu0
    %v451 = vpop.trf.xlu0
    %v452 = vpop.trf.xlu0
    %v453 = vpop.trf.xlu0
    %v454 = vpop.trf.xlu0
    %v455 = vpop.trf.xlu0
    %v456 = vpop.trf.xlu0
    %v457 = vpop.trf.xlu0
    %vm458 = vcmask 130048
    %v460 = vsel %vm458, %v442, 0
    %v463 = vsel %vm458, %v443, 0
    %v466 = vsel %vm458, %v444, 0
    %v469 = vsel %vm458, %v445, 0
    %v472 = vsel %vm458, %v446, 0
    %v475 = vsel %vm458, %v447, 0
    %v478 = vsel %vm458, %v448, 0
    %v481 = vsel %vm458, %v449, 0
    %v484 = vsel %vm458, %v450, 0
    %v487 = vsel %vm458, %v451, 0
    %v490 = vsel %vm458, %v452, 0
    %v493 = vsel %vm458, %v453, 0
    %v496 = vsel %vm458, %v454, 0
    %v499 = vsel %vm458, %v455, 0
    %v502 = vsel %vm458, %v456, 0
    %v505 = vsel %vm458, %v457, 0
    %507 = vmatpush.msra.mxu0 0.0
    %508 = vmatpush.msra.mxu0 0.0
    %509 = vmatpush.msra.mxu0 0.0
    %510 = vmatpush.msra.mxu0 0.0
    %511 = vmatpush.msra.mxu0 0.0
    %512 = vmatpush.msra.mxu0 0.0
    %513 = vmatpush.msra.mxu0 0.0
    %514 = vmatpush.msra.mxu0 0.0
    %515 = vmatpush.msra.mxu0 0.0
    %516 = vmatpush.msra.mxu0 0.0
    %517 = vmatpush.msra.mxu0 0.0
    %518 = vmatpush.msra.mxu0 0.0
    %519 = vmatpush.msra.mxu0 0.0
    %520 = vmatpush.msra.mxu0 0.0
    %521 = vmatpush.msra.mxu0 %v318
    %522 = vmatpush.msra.mxu0 %v315
    %523 = vmatmul.f32.gmra.mxu0 %v460
    %v524 = vpop.f32.mrf.mxu0
    %v525 = vadd.f32 0.0, %v524
    %526 = vmatmul.f32.gmra.mxu0 %v463
    %v527 = vpop.f32.mrf.mxu0
    %v528 = vadd.f32 0.0, %v527
    %529 = vmatmul.f32.gmra.mxu0 %v466
    %v530 = vpop.f32.mrf.mxu0
    %v531 = vadd.f32 0.0, %v530
    %532 = vmatmul.f32.gmra.mxu0 %v469
    %v533 = vpop.f32.mrf.mxu0
    %v534 = vadd.f32 0.0, %v533
    %535 = vmatmul.f32.gmra.mxu0 %v472
    %v536 = vpop.f32.mrf.mxu0
    %v537 = vadd.f32 0.0, %v536
    %538 = vmatmul.f32.gmra.mxu0 %v475
    %v539 = vpop.f32.mrf.mxu0
    %v540 = vadd.f32 0.0, %v539
    %541 = vmatmul.f32.gmra.mxu0 %v478
    %v542 = vpop.f32.mrf.mxu0
    %v543 = vadd.f32 0.0, %v542
    %544 = vmatmul.f32.gmra.mxu0 %v481
    %v545 = vpop.f32.mrf.mxu0
    %v546 = vadd.f32 0.0, %v545
    %547 = vmatmul.f32.gmra.mxu0 %v484
    %v548 = vpop.f32.mrf.mxu0
    %v549 = vadd.f32 0.0, %v548
    %550 = vmatmul.f32.gmra.mxu0 %v487
    %v551 = vpop.f32.mrf.mxu0
    %v552 = vadd.f32 0.0, %v551
    %553 = vmatmul.f32.gmra.mxu0 %v490
    %v554 = vpop.f32.mrf.mxu0
    %v555 = vadd.f32 0.0, %v554
    %556 = vmatmul.f32.gmra.mxu0 %v493
    %v557 = vpop.f32.mrf.mxu0
    %v558 = vadd.f32 0.0, %v557
    %559 = vmatmul.f32.gmra.mxu0 %v496
    %v560 = vpop.f32.mrf.mxu0
    %v561 = vadd.f32 0.0, %v560
    %562 = vmatmul.f32.gmra.mxu0 %v499
    %v563 = vpop.f32.mrf.mxu0
    %v564 = vadd.f32 0.0, %v563
    %565 = vmatmul.f32.gmra.mxu0 %v502
    %v566 = vpop.f32.mrf.mxu0
    %v567 = vadd.f32 0.0, %v566
    %568 = vmatmul.f32.gmra.mxu0 %v505
    %v569 = vpop.f32.mrf.mxu0
    %v570 = vadd.f32 0.0, %v569
    %571 = vdwg.mxu0
    %v572 = vld [vmem:[#allocation2] sm:$0xff]
    %v573 = vld [vmem:[#allocation2 + $0x8] sm:$0xff]
    %v574 = vld [vmem:[#allocation2 + $0x10] sm:$0xff]
    %v575 = vld [vmem:[#allocation2 + $0x18] sm:$0xff]
    %v576 = vld [vmem:[#allocation2 + $0x20] sm:$0xff]
    %v577 = vld [vmem:[#allocation2 + $0x28] sm:$0xff]
    %v578 = vld [vmem:[#allocation2 + $0x30] sm:$0xff]
    %v579 = vld [vmem:[#allocation2 + $0x38] sm:$0xff]
    %v580 = vld [vmem:[#allocation2 + $0x40] sm:$0xff]
    %v581 = vld [vmem:[#allocation2 + $0x48] sm:$0xff]
    %v582 = vld [vmem:[#allocation2 + $0x50] sm:$0xff]
    %v583 = vld [vmem:[#allocation2 + $0x58] sm:$0xff]
    %v584 = vld [vmem:[#allocation2 + $0x60] sm:$0xff]
    %v585 = vld [vmem:[#allocation2 + $0x68] sm:$0xff]
    %v586 = vld [vmem:[#allocation2 + $0x70] sm:$0xff]
    %v587 = vld [vmem:[#allocation2 + $0x78] sm:$0xff]
    %v588 = vmul.f32 %v525, %v572
    %v589 = vmul.f32 %v528, %v573
    %v590 = vmul.f32 %v531, %v574
    %v591 = vmul.f32 %v534, %v575
    %v592 = vmul.f32 %v537, %v576
    %v593 = vmul.f32 %v540, %v577
    %v594 = vmul.f32 %v543, %v578
    %v595 = vmul.f32 %v546, %v579
    %v596 = vmul.f32 %v549, %v580
    %v597 = vmul.f32 %v552, %v581
    %v598 = vmul.f32 %v555, %v582
    %v599 = vmul.f32 %v558, %v583
    %v600 = vmul.f32 %v561, %v584
    %v601 = vmul.f32 %v564, %v585
    %v602 = vmul.f32 %v567, %v586
    %v603 = vmul.f32 %v570, %v587
    %604 = vmatpush.msra.mxu0 %v603
    %605 = vmatpush.msra.mxu0 %v602
    %606 = vmatpush.msra.mxu0 %v601
    %607 = vmatpush.msra.mxu0 %v600
    %608 = vmatpush.msra.mxu0 %v599
    %609 = vmatpush.msra.mxu0 %v598
    %610 = vmatpush.msra.mxu0 %v597
    %611 = vmatpush.msra.mxu0 %v596
    %612 = vmatpush.msra.mxu0 %v595
    %613 = vmatpush.msra.mxu0 %v594
    %614 = vmatpush.msra.mxu0 %v593
    %615 = vmatpush.msra.mxu0 %v592
    %616 = vmatpush.msra.mxu0 %v591
    %617 = vmatpush.msra.mxu0 %v590
    %618 = vmatpush.msra.mxu0 %v589
    %619 = vmatpush.msra.mxu0 %v588
    %620 = vmatmul.f32.gmra.mxu0 %v399
    %v621 = vpop.f32.mrf.mxu0
    %v622 = vadd.f32 0.0, %v621
    %623 = vmatmul.f32.gmra.mxu0 %v400
    %v624 = vpop.f32.mrf.mxu0
    %v625 = vadd.f32 0.0, %v624
    %626 = vdwg.mxu0
    %v627 = vmax.f32 %v292, %v295
    %v628 = vrot.slane %v627, 4
    %v629 = vmax.f32 %v627, %v628
    %v630 = vrot.slane %v629, 2
    %v631 = vmax.f32 %v629, %v630
    %v632 = vrot.slane %v631, 1
    %v633 = vmax.f32 %v631, %v632
    %v634 = vsub.f32 %v292, %v633
    %v635 = vsub.f32 %v295, %v633
    %v636 = vmul.f32 %v634, 1.442695
    %v637 = vpow.pop %v636
    %v638 = vmul.f32 %v635, 1.442695
    %v639 = vpow.pop %v638
    %v640 = vadd.f32 %v637, %v639
    %v641 = vrot.slane %v640, 4
    %v642 = vadd.f32 %v640, %v641
    %v643 = vrot.slane %v642, 2
    %v644 = vadd.f32 %v642, %v643
    %v645 = vrot.slane %v644, 1
    %v646 = vadd.f32 %v644, %v645
    %v647 = vrcp.pop %v646
    %v648 = vmul.f32 %v637, %v647
    %v649 = vmul.f32 %v639, %v647
    %650 = vxpose.xlu0.b32.start [1/16] %v648, 128
    %651 = vxpose.xlu0.b32.cont [2/16] %v649, 128
    %652 = vxpose.xlu0.b32.cont [3/16] 0.0, 128
    %653 = vxpose.xlu0.b32.cont [4/16] 0.0, 128
    %654 = vxpose.xlu0.b32.cont [5/16] 0.0, 128
    %655 = vxpose.xlu0.b32.cont [6/16] 0.0, 128
    %656 = vxpose.xlu0.b32.cont [7/16] 0.0, 128
    %657 = vxpose.xlu0.b32.cont [8/16] 0.0, 128
    %658 = vxpose.xlu0.b32.cont [9/16] 0.0, 128
    %659 = vxpose.xlu0.b32.cont [10/16] 0.0, 128
    %660 = vxpose.xlu0.b32.cont [11/16] 0.0, 128
    %661 = vxpose.xlu0.b32.cont [12/16] 0.0, 128
    %662 = vxpose.xlu0.b32.cont [13/16] 0.0, 128
    %663 = vxpose.xlu0.b32.cont [14/16] 0.0, 128
    %664 = vxpose.xlu0.b32.cont [15/16] 0.0, 128
    %665 = vxpose.xlu0.b32.end [16/16] 0.0, 128
    %v666 = vpop.trf.xlu0
    %v667 = vpop.trf.xlu0
    %v668 = vpop.trf.xlu0
    %v669 = vpop.trf.xlu0
    %v670 = vpop.trf.xlu0
    %v671 = vpop.trf.xlu0
    %v672 = vpop.trf.xlu0
    %v673 = vpop.trf.xlu0
    %v674 = vpop.trf.xlu0
    %v675 = vpop.trf.xlu0
    %v676 = vpop.trf.xlu0
    %v677 = vpop.trf.xlu0
    %v678 = vpop.trf.xlu0
    %v679 = vpop.trf.xlu0
    %v680 = vpop.trf.xlu0
    %v681 = vpop.trf.xlu0
    %v683 = vsel %vm458, %v666, 0
    %v686 = vsel %vm458, %v667, 0
    %v689 = vsel %vm458, %v668, 0
    %v692 = vsel %vm458, %v669, 0
    %v695 = vsel %vm458, %v670, 0
    %v698 = vsel %vm458, %v671, 0
    %v701 = vsel %vm458, %v672, 0
    %v704 = vsel %vm458, %v673, 0
    %v707 = vsel %vm458, %v674, 0
    %v710 = vsel %vm458, %v675, 0
    %v713 = vsel %vm458, %v676, 0
    %v716 = vsel %vm458, %v677, 0
    %v719 = vsel %vm458, %v678, 0
    %v722 = vsel %vm458, %v679, 0
    %v725 = vsel %vm458, %v680, 0
    %v728 = vsel %vm458, %v681, 0
    %730 = vmatpush.msra.mxu0 0.0
    %731 = vmatpush.msra.mxu0 0.0
    %732 = vmatpush.msra.mxu0 0.0
    %733 = vmatpush.msra.mxu0 0.0
    %734 = vmatpush.msra.mxu0 0.0
    %735 = vmatpush.msra.mxu0 0.0
    %736 = vmatpush.msra.mxu0 0.0
    %737 = vmatpush.msra.mxu0 0.0
    %738 = vmatpush.msra.mxu0 0.0
    %739 = vmatpush.msra.mxu0 0.0
    %740 = vmatpush.msra.mxu0 0.0
    %741 = vmatpush.msra.mxu0 0.0
    %742 = vmatpush.msra.mxu0 0.0
    %743 = vmatpush.msra.mxu0 0.0
    %744 = vmatpush.msra.mxu0 %v324
    %745 = vmatpush.msra.mxu0 %v321
    %746 = vmatmul.f32.gmra.mxu0 %v683
    %v747 = vpop.f32.mrf.mxu0
    %v748 = vadd.f32 0.0, %v747
    %749 = vmatmul.f32.gmra.mxu0 %v686
    %v750 = vpop.f32.mrf.mxu0
    %v751 = vadd.f32 0.0, %v750
    %752 = vmatmul.f32.gmra.mxu0 %v689
    %v753 = vpop.f32.mrf.mxu0
    %v754 = vadd.f32 0.0, %v753
    %755 = vmatmul.f32.gmra.mxu0 %v692
    %v756 = vpop.f32.mrf.mxu0
    %v757 = vadd.f32 0.0, %v756
    %758 = vmatmul.f32.gmra.mxu0 %v695
    %v759 = vpop.f32.mrf.mxu0
    %v760 = vadd.f32 0.0, %v759
    %761 = vmatmul.f32.gmra.mxu0 %v698
    %v762 = vpop.f32.mrf.mxu0
    %v763 = vadd.f32 0.0, %v762
    %764 = vmatmul.f32.gmra.mxu0 %v701
    %v765 = vpop.f32.mrf.mxu0
    %v766 = vadd.f32 0.0, %v765
    %767 = vmatmul.f32.gmra.mxu0 %v704
    %v768 = vpop.f32.mrf.mxu0
    %v769 = vadd.f32 0.0, %v768
    %770 = vmatmul.f32.gmra.mxu0 %v707
    %v771 = vpop.f32.mrf.mxu0
    %v772 = vadd.f32 0.0, %v771
    %773 = vmatmul.f32.gmra.mxu0 %v710
    %v774 = vpop.f32.mrf.mxu0
    %v775 = vadd.f32 0.0, %v774
    %776 = vmatmul.f32.gmra.mxu0 %v713
    %v777 = vpop.f32.mrf.mxu0
    %v778 = vadd.f32 0.0, %v777
    %779 = vmatmul.f32.gmra.mxu0 %v716
    %v780 = vpop.f32.mrf.mxu0
    %v781 = vadd.f32 0.0, %v780
    %782 = vmatmul.f32.gmra.mxu0 %v719
    %v783 = vpop.f32.mrf.mxu0
    %v784 = vadd.f32 0.0, %v783
    %785 = vmatmul.f32.gmra.mxu0 %v722
    %v786 = vpop.f32.mrf.mxu0
    %v787 = vadd.f32 0.0, %v786
    %788 = vmatmul.f32.gmra.mxu0 %v725
    %v789 = vpop.f32.mrf.mxu0
    %v790 = vadd.f32 0.0, %v789
    %791 = vmatmul.f32.gmra.mxu0 %v728
    %v792 = vpop.f32.mrf.mxu0
    %v793 = vadd.f32 0.0, %v792
    %794 = vdwg.mxu0
    %v795 = vld [vmem:[#allocation2] sm:$0xff]
    %v796 = vld [vmem:[#allocation2 + $0x8] sm:$0xff]
    %v797 = vld [vmem:[#allocation2 + $0x10] sm:$0xff]
    %v798 = vld [vmem:[#allocation2 + $0x18] sm:$0xff]
    %v799 = vld [vmem:[#allocation2 + $0x20] sm:$0xff]
    %v800 = vld [vmem:[#allocation2 + $0x28] sm:$0xff]
    %v801 = vld [vmem:[#allocation2 + $0x30] sm:$0xff]
    %v802 = vld [vmem:[#allocation2 + $0x38] sm:$0xff]
    %v803 = vld [vmem:[#allocation2 + $0x40] sm:$0xff]
    %v804 = vld [vmem:[#allocation2 + $0x48] sm:$0xff]
    %v805 = vld [vmem:[#allocation2 + $0x50] sm:$0xff]
    %v806 = vld [vmem:[#allocation2 + $0x58] sm:$0xff]
    %v807 = vld [vmem:[#allocation2 + $0x60] sm:$0xff]
    %v808 = vld [vmem:[#allocation2 + $0x68] sm:$0xff]
    %v809 = vld [vmem:[#allocation2 + $0x70] sm:$0xff]
    %v810 = vld [vmem:[#allocation2 + $0x78] sm:$0xff]
    %v811 = vmul.f32 %v748, %v795
    %v812 = vmul.f32 %v751, %v796
    %v813 = vmul.f32 %v754, %v797
    %v814 = vmul.f32 %v757, %v798
    %v815 = vmul.f32 %v760, %v799
    %v816 = vmul.f32 %v763, %v800
    %v817 = vmul.f32 %v766, %v801
    %v818 = vmul.f32 %v769, %v802
    %v819 = vmul.f32 %v772, %v803
    %v820 = vmul.f32 %v775, %v804
    %v821 = vmul.f32 %v778, %v805
    %v822 = vmul.f32 %v781, %v806
    %v823 = vmul.f32 %v784, %v807
    %v824 = vmul.f32 %v787, %v808
    %v825 = vmul.f32 %v790, %v809
    %v826 = vmul.f32 %v793, %v810
    %827 = vmatpush.msra.mxu0 %v826
    %828 = vmatpush.msra.mxu0 %v825
    %829 = vmatpush.msra.mxu0 %v824
    %830 = vmatpush.msra.mxu0 %v823
    %831 = vmatpush.msra.mxu0 %v822
    %832 = vmatpush.msra.mxu0 %v821
    %833 = vmatpush.msra.mxu0 %v820
    %834 = vmatpush.msra.mxu0 %v819
    %835 = vmatpush.msra.mxu0 %v818
    %836 = vmatpush.msra.mxu0 %v817
    %837 = vmatpush.msra.mxu0 %v816
    %838 = vmatpush.msra.mxu0 %v815
    %839 = vmatpush.msra.mxu0 %v814
    %840 = vmatpush.msra.mxu0 %v813
    %841 = vmatpush.msra.mxu0 %v812
    %842 = vmatpush.msra.mxu0 %v811
    %843 = vmatmul.f32.gmra.mxu0 %v401
    %v844 = vpop.f32.mrf.mxu0
    %v845 = vadd.f32 0.0, %v844
    %846 = vmatmul.f32.gmra.mxu0 %v402
    %v847 = vpop.f32.mrf.mxu0
    %v848 = vadd.f32 0.0, %v847
    %849 = vdwg.mxu0
    %v850 = vld [vmem:[%s5] sm:$0xff]
    %v851 = vld [vmem:[%s5 + $0x8] sm:$0xff]
    %v852 = vld [vmem:[%s5 + $0x10] sm:$0xff]
    %v853 = vld [vmem:[%s5 + $0x18] sm:$0xff]
    %v854 = vld [vmem:[%s5 + $0x20] sm:$0xff]
    %v855 = vld [vmem:[%s5 + $0x28] sm:$0xff]
    %v856 = vld [vmem:[%s5 + $0x30] sm:$0xff]
    %v857 = vld [vmem:[%s5 + $0x38] sm:$0xff]
    %v858 = vld [vmem:[%s5 + $0x40] sm:$0xff]
    %v859 = vld [vmem:[%s5 + $0x48] sm:$0xff]
    %v860 = vld [vmem:[%s5 + $0x50] sm:$0xff]
    %v861 = vld [vmem:[%s5 + $0x58] sm:$0xff]
    %v862 = vld [vmem:[%s5 + $0x60] sm:$0xff]
    %v863 = vld [vmem:[%s5 + $0x68] sm:$0xff]
    %v864 = vld [vmem:[%s5 + $0x70] sm:$0xff]
    %v865 = vld [vmem:[%s5 + $0x78] sm:$0xff]
    %866 = vmatpush.msra.mxu0 %v865
    %867 = vmatpush.msra.mxu0 %v864
    %868 = vmatpush.msra.mxu0 %v863
    %869 = vmatpush.msra.mxu0 %v862
    %870 = vmatpush.msra.mxu0 %v861
    %871 = vmatpush.msra.mxu0 %v860
    %872 = vmatpush.msra.mxu0 %v859
    %873 = vmatpush.msra.mxu0 %v858
    %874 = vmatpush.msra.mxu0 %v857
    %875 = vmatpush.msra.mxu0 %v856
    %876 = vmatpush.msra.mxu0 %v855
    %877 = vmatpush.msra.mxu0 %v854
    %878 = vmatpush.msra.mxu0 %v853
    %879 = vmatpush.msra.mxu0 %v852
    %880 = vmatpush.msra.mxu0 %v851
    %881 = vmatpush.msra.mxu0 %v850
    %882 = vmatmul.f32.gmra.mxu0 %v622
    %v883 = vpop.f32.mrf.mxu0
    %v884 = vadd.f32 0.0, %v883
    %885 = vmatmul.f32.gmra.mxu0 %v625
    %v886 = vpop.f32.mrf.mxu0
    %v887 = vadd.f32 0.0, %v886
    %888 = vmatmul.f32.gmra.mxu0 %v845
    %v889 = vpop.f32.mrf.mxu0
    %v890 = vadd.f32 0.0, %v889
    %891 = vmatmul.f32.gmra.mxu0 %v848
    %v892 = vpop.f32.mrf.mxu0
    %v893 = vadd.f32 0.0, %v892
    %894 = vdwg.mxu0
    %v895 = vadd.f32 %v75, %v884
    %v896 = vadd.f32 %v76, %v887
    %v897 = vadd.f32 %v77, %v890
    %v898 = vadd.f32 %v78, %v893
    %v899 = vld [vmem:[%s6] sm:$0x1]
    %v901 = vperm.slane %v899, 0
    %v903 = vadd.f32 %v895, %v901
    %v904 = vadd.f32 %v896, %v901
    %v905 = vadd.f32 %v897, %v901
    %v906 = vadd.f32 %v898, %v901
    %v907 = vld [vmem:[%s7] sm:$0x1]
    %v908 = vld [vmem:[%s8] sm:$0x1]
    %v909 = vsel %vm81, %v903, 0.0
    %910 = vadd.xlane.f32.xlu0 %v909
    %v911 = vpop.xlane.xlu0 %910
    %v912 = vsel %vm81, %v904, 0.0
    %913 = vadd.xlane.f32.xlu0 %v912
    %v914 = vpop.xlane.xlu0 %913
    %v915 = vsel %vm81, %v905, 0.0
    %916 = vadd.xlane.f32.xlu0 %v915
    %v917 = vpop.xlane.xlu0 %916
    %v918 = vsel %vm81, %v906, 0.0
    %919 = vadd.xlane.f32.xlu0 %v918
    %v920 = vpop.xlane.xlu0 %919
    %v921 = vmul.f32 %v911, %v100
    %v922 = vmul.f32 %v914, %v100
    %v923 = vmul.f32 %v917, %v100
    %v924 = vmul.f32 %v920, %v100
    %v925 = vsub.f32 %v903, %v921
    %v926 = vsub.f32 %v904, %v922
    %v927 = vsub.f32 %v905, %v923
    %v928 = vsub.f32 %v906, %v924
    %v929 = vmul.f32 %v925, %v925
    %v930 = vmul.f32 %v926, %v926
    %v931 = vmul.f32 %v927, %v927
    %v932 = vmul.f32 %v928, %v928
    %v933 = vsel %vm81, %v929, 0.0
    %934 = vadd.xlane.f32.xlu0 %v933
    %v935 = vpop.xlane.xlu0 %934
    %v936 = vsel %vm81, %v930, 0.0
    %937 = vadd.xlane.f32.xlu0 %v936
    %v938 = vpop.xlane.xlu0 %937
    %v939 = vsel %vm81, %v931, 0.0
    %940 = vadd.xlane.f32.xlu0 %v939
    %v941 = vpop.xlane.xlu0 %940
    %v942 = vsel %vm81, %v932, 0.0
    %943 = vadd.xlane.f32.xlu0 %v942
    %v944 = vpop.xlane.xlu0 %943
    %v945 = vmul.f32 %v935, %v100
    %v946 = vmul.f32 %v938, %v100
    %v947 = vmul.f32 %v941, %v100
    %v948 = vmul.f32 %v944, %v100
    %v949 = vadd.f32 %v945, 1e-05
    %v950 = vadd.f32 %v946, 1e-05
    %v951 = vadd.f32 %v947, 1e-05
    %v952 = vadd.f32 %v948, 1e-05
    %v953 = vrsqrt.pop %v949
    %v954 = vmul.f32 %v953, %v949
    %v955 = vmul.f32 %v954, %v953
    %v956 = vmul.f32 0.5, %v955
    %v957 = vsub.f32 1.5, %v956
    %v958 = vmul.f32 %v953, %v957
    %vm959 = vweird.f32 %v949
    %vm960 = vweird.f32 %v953
    %vm961 = vmor %vm959, %vm960
    %v962 = vsel %vm961, %v953, %v958
    %v963 = vrsqrt.pop %v950
    %v964 = vmul.f32 %v963, %v950
    %v965 = vmul.f32 %v964, %v963
    %v966 = vmul.f32 0.5, %v965
    %v967 = vsub.f32 1.5, %v966
    %v968 = vmul.f32 %v963, %v967
    %vm969 = vweird.f32 %v950
    %vm970 = vweird.f32 %v963
    %vm971 = vmor %vm969, %vm970
    %v972 = vsel %vm971, %v963, %v968
    %v973 = vrsqrt.pop %v951
    %v974 = vmul.f32 %v973, %v951
    %v975 = vmul.f32 %v974, %v973
    %v976 = vmul.f32 0.5, %v975
    %v977 = vsub.f32 1.5, %v976
    %v978 = vmul.f32 %v973, %v977
    %vm979 = vweird.f32 %v951
    %vm980 = vweird.f32 %v973
    %vm981 = vmor %vm979, %vm980
    %v982 = vsel %vm981, %v973, %v978
    %v983 = vrsqrt.pop %v952
    %v984 = vmul.f32 %v983, %v952
    %v985 = vmul.f32 %v984, %v983
    %v986 = vmul.f32 0.5, %v985
    %v987 = vsub.f32 1.5, %v986
    %v988 = vmul.f32 %v983, %v987
    %vm989 = vweird.f32 %v952
    %vm990 = vweird.f32 %v983
    %vm991 = vmor %vm989, %vm990
    %v992 = vsel %vm991, %v983, %v988
    %v993 = vmul.f32 %v925, %v962
    %v994 = vmul.f32 %v926, %v972
    %v995 = vmul.f32 %v927, %v982
    %v996 = vmul.f32 %v928, %v992
    %v998 = vperm.slane %v907, 0
    %v1000 = vmul.f32 %v993, %v998
    %v1001 = vmul.f32 %v994, %v998
    %v1002 = vmul.f32 %v995, %v998
    %v1003 = vmul.f32 %v996, %v998
    %v1005 = vperm.slane %v908, 0
    %v1007 = vadd.f32 %v1000, %v1005
    %v1008 = vadd.f32 %v1001, %v1005
    %v1009 = vadd.f32 %v1002, %v1005
    %v1010 = vadd.f32 %v1003, %v1005
    %v1011 = vld [vmem:[%s9] sm:$0xff]
    %v1012 = vld [vmem:[%s9 + $0x8] sm:$0xff]
    %v1013 = vld [vmem:[%s9 + $0x10] sm:$0xff]
    %v1014 = vld [vmem:[%s9 + $0x18] sm:$0xff]
    %v1015 = vld [vmem:[%s9 + $0x20] sm:$0xff]
    %v1016 = vld [vmem:[%s9 + $0x28] sm:$0xff]
    %v1017 = vld [vmem:[%s9 + $0x30] sm:$0xff]
    %v1018 = vld [vmem:[%s9 + $0x38] sm:$0xff]
    %v1019 = vld [vmem:[%s9 + $0x40] sm:$0xff]
    %v1020 = vld [vmem:[%s9 + $0x48] sm:$0xff]
    %v1021 = vld [vmem:[%s9 + $0x50] sm:$0xff]
    %v1022 = vld [vmem:[%s9 + $0x58] sm:$0xff]
    %v1023 = vld [vmem:[%s10] sm:$0x1]
    %v1025 = vperm.slane %v1023, 0
    %v1028 = vsel %vm81, %v1007, 0
    %v1031 = vsel %vm81, %v1008, 0
    %v1034 = vsel %vm81, %v1009, 0
    %v1037 = vsel %vm81, %v1010, 0
    %1039 = vmatpush.msra.mxu0 0.0
    %1040 = vmatpush.msra.mxu0 0.0
    %1041 = vmatpush.msra.mxu0 0.0
    %1042 = vmatpush.msra.mxu0 0.0
    %1043 = vmatpush.msra.mxu0 %v1022
    %1044 = vmatpush.msra.mxu0 %v1021
    %1045 = vmatpush.msra.mxu0 %v1020
    %1046 = vmatpush.msra.mxu0 %v1019
    %1047 = vmatpush.msra.mxu0 %v1018
    %1048 = vmatpush.msra.mxu0 %v1017
    %1049 = vmatpush.msra.mxu0 %v1016
    %1050 = vmatpush.msra.mxu0 %v1015
    %1051 = vmatpush.msra.mxu0 %v1014
    %1052 = vmatpush.msra.mxu0 %v1013
    %1053 = vmatpush.msra.mxu0 %v1012
    %1054 = vmatpush.msra.mxu0 %v1011
    %1055 = vmatmul.f32.gmra.mxu0 %v1028
    %v1056 = vpop.f32.mrf.mxu0
    %v1057 = vadd.f32 %v1025, %v1056
    %1058 = vmatmul.f32.gmra.mxu0 %v1031
    %v1059 = vpop.f32.mrf.mxu0
    %v1060 = vadd.f32 %v1025, %v1059
    %1061 = vmatmul.f32.gmra.mxu0 %v1034
    %v1062 = vpop.f32.mrf.mxu0
    %v1063 = vadd.f32 %v1025, %v1062
    %1064 = vmatmul.f32.gmra.mxu0 %v1037
    %v1065 = vpop.f32.mrf.mxu0
    %v1066 = vadd.f32 %v1025, %v1065
    %1067 = vdwg.mxu0
    %v1068 = vmul.f32 %v1057, 0.5
    %v1069 = vmul.f32 %v1060, 0.5
    %v1070 = vmul.f32 %v1063, 0.5
    %v1071 = vmul.f32 %v1066, 0.5
    %v1072 = vmul.f32 %v1057, 0.70710677
    %v1073 = vmul.f32 %v1060, 0.70710677
    %v1074 = vmul.f32 %v1063, 0.70710677
    %v1075 = vmul.f32 %v1066, 0.70710677
    %vm1076 = vcmp.ge.f32.partialorder %v1072, 0.0
    %vm1077 = vcmp.ge.f32.partialorder %v1073, 0.0
    %vm1078 = vcmp.ge.f32.partialorder %v1074, 0.0
    %vm1079 = vcmp.ge.f32.partialorder %v1075, 0.0
    %v1080 = vsel %vm1076, 1.0, -1.0
    %v1081 = vsel %vm1077, 1.0, -1.0
    %v1082 = vsel %vm1078, 1.0, -1.0
    %v1083 = vsel %vm1079, 1.0, -1.0
    %v1084 = vand.u32 2147483647, %v1072
    %v1085 = vand.u32 2147483647, %v1073
    %v1086 = vand.u32 2147483647, %v1074
    %v1087 = vand.u32 2147483647, %v1075
    %v1088 = vmul.f32 %v1084, 0.3275911
    %v1089 = vmul.f32 %v1085, 0.3275911
    %v1090 = vmul.f32 %v1086, 0.3275911
    %v1091 = vmul.f32 %v1087, 0.3275911
    %v1092 = vadd.f32 %v1088, 1.0
    %v1093 = vadd.f32 %v1089, 1.0
    %v1094 = vadd.f32 %v1090, 1.0
    %v1095 = vadd.f32 %v1091, 1.0
    %v1096 = vrcp.pop %v1092
    %v1097 = vmul.f32 %v1092, %v1096
    %v1098 = vsub.f32 1.0, %v1097
    %v1099 = vmul.f32 %v1096, %v1098
    %v1100 = vadd.f32 %v1096, %v1099
    %vm1101 = vweird.f32 %v1092
    %vm1102 = vweird.f32 %v1096
    %vm1103 = vmor %vm1101, %vm1102
    %v1104 = vsel %vm1103, %v1096, %v1100
    %v1105 = vand.u32 2147483647, %v1092
    %vm1106 = vcmp.eq.f32.partialorder %v1105, 8.507059e+37
    %v1107 = vand.u32 %v1092, 2147483648
    %v1108 = vor.u32 1.1754944e-38, %v1107
    %v1109 = vsel %vm1106, %v1108, %v1104
    %v1110 = vmul.f32 1.0, %v1109
    %v1111 = vrcp.pop %v1093
    %v1112 = vmul.f32 %v1093, %v1111
    %v1113 = vsub.f32 1.0, %v1112
    %v1114 = vmul.f32 %v1111, %v1113
    %v1115 = vadd.f32 %v1111, %v1114
    %vm1116 = vweird.f32 %v1093
    %vm1117 = vweird.f32 %v1111
    %vm1118 = vmor %vm1116, %vm1117
    %v1119 = vsel %vm1118, %v1111, %v1115
    %v1120 = vand.u32 2147483647, %v1093
    %vm1121 = vcmp.eq.f32.partialorder %v1120, 8.507059e+37
    %v1122 = vand.u32 %v1093, 2147483648
    %v1123 = vor.u32 1.1754944e-38, %v1122
    %v1124 = vsel %vm1121, %v1123, %v1119
    %v1125 = vmul.f32 1.0, %v1124
    %v1126 = vrcp.pop %v1094
    %v1127 = vmul.f32 %v1094, %v1126
    %v1128 = vsub.f32 1.0, %v1127
    %v1129 = vmul.f32 %v1126, %v1128
    %v1130 = vadd.f32 %v1126, %v1129
    %vm1131 = vweird.f32 %v1094
    %vm1132 = vweird.f32 %v1126
    %vm1133 = vmor %vm1131, %vm1132
    %v1134 = vsel %vm1133, %v1126, %v1130
    %v1135 = vand.u32 2147483647, %v1094
    %vm1136 = vcmp.eq.f32.partialorder %v1135, 8.507059e+37
    %v1137 = vand.u32 %v1094, 2147483648
    %v1138 = vor.u32 1.1754944e-38, %v1137
    %v1139 = vsel %vm1136, %v1138, %v1134
    %v1140 = vmul.f32 1.0, %v1139
    %v1141 = vrcp.pop %v1095
    %v1142 = vmul.f32 %v1095, %v1141
    %v1143 = vsub.f32 1.0, %v1142
    %v1144 = vmul.f32 %v1141, %v1143
    %v1145 = vadd.f32 %v1141, %v1144
    %vm1146 = vweird.f32 %v1095
    %vm1147 = vweird.f32 %v1141
    %vm1148 = vmor %vm1146, %vm1147
    %v1149 = vsel %vm1148, %v1141, %v1145
    %v1150 = vand.u32 2147483647, %v1095
    %vm1151 = vcmp.eq.f32.partialorder %v1150, 8.507059e+37
    %v1152 = vand.u32 %v1095, 2147483648
    %v1153 = vor.u32 1.1754944e-38, %v1152
    %v1154 = vsel %vm1151, %v1153, %v1149
    %v1155 = vmul.f32 1.0, %v1154
    %v1156 = vmul.f32 %v1110, 1.0614054
    %v1157 = vmul.f32 %v1125, 1.0614054
    %v1158 = vmul.f32 %v1140, 1.0614054
    %v1159 = vmul.f32 %v1155, 1.0614054
    %v1160 = vadd.f32 %v1156, -1.4531521
    %v1161 = vadd.f32 %v1157, -1.4531521
    %v1162 = vadd.f32 %v1158, -1.4531521
    %v1163 = vadd.f32 %v1159, -1.4531521
    %v1164 = vmul.f32 %v1160, %v1110
    %v1165 = vmul.f32 %v1161, %v1125
    %v1166 = vmul.f32 %v1162, %v1140
    %v1167 = vmul.f32 %v1163, %v1155
    %v1168 = vadd.f32 %v1164, 1.4214138
    %v1169 = vadd.f32 %v1165, 1.4214138
    %v1170 = vadd.f32 %v1166, 1.4214138
    %v1171 = vadd.f32 %v1167, 1.4214138
    %v1172 = vmul.f32 %v1168, %v1110
    %v1173 = vmul.f32 %v1169, %v1125
    %v1174 = vmul.f32 %v1170, %v1140
    %v1175 = vmul.f32 %v1171, %v1155
    %v1176 = vadd.f32 %v1172, -0.28449672
    %v1177 = vadd.f32 %v1173, -0.28449672
    %v1178 = vadd.f32 %v1174, -0.28449672
    %v1179 = vadd.f32 %v1175, -0.28449672
    %v1180 = vmul.f32 %v1176, %v1110
    %v1181 = vmul.f32 %v1177, %v1125
    %v1182 = vmul.f32 %v1178, %v1140
    %v1183 = vmul.f32 %v1179, %v1155
    %v1184 = vadd.f32 %v1180, 0.2548296
    %v1185 = vadd.f32 %v1181, 0.2548296
    %v1186 = vadd.f32 %v1182, 0.2548296
    %v1187 = vadd.f32 %v1183, 0.2548296
    %v1188 = vmul.f32 %v1184, %v1110
    %v1189 = vmul.f32 %v1185, %v1125
    %v1190 = vmul.f32 %v1186, %v1140
    %v1191 = vmul.f32 %v1187, %v1155
    %v1192 = vsub.f32 0.0, %v1084
    %v1193 = vsub.f32 0.0, %v1085
    %v1194 = vsub.f32 0.0, %v1086
    %v1195 = vsub.f32 0.0, %v1087
    %v1196 = vmul.f32 %v1192, %v1084
    %v1197 = vmul.f32 %v1193, %v1085
    %v1198 = vmul.f32 %v1194, %v1086
    %v1199 = vmul.f32 %v1195, %v1087
    %v1200 = vmul.f32 %v1196, 1.442695
    %v1201 = vpow.pop %v1200
    %v1202 = vmul.f32 %v1197, 1.442695
    %v1203 = vpow.pop %v1202
    %v1204 = vmul.f32 %v1198, 1.442695
    %v1205 = vpow.pop %v1204
    %v1206 = vmul.f32 %v1199, 1.442695
    %v1207 = vpow.pop %v1206
    %v1208 = vmul.f32 %v1188, %v1201
    %v1209 = vmul.f32 %v1189, %v1203
    %v1210 = vmul.f32 %v1190, %v1205
    %v1211 = vmul.f32 %v1191, %v1207
    %v1212 = vsub.f32 1.0, %v1208
    %v1213 = vsub.f32 1.0, %v1209
    %v1214 = vsub.f32 1.0, %v1210
    %v1215 = vsub.f32 1.0, %v1211
    %v1216 = vmul.f32 %v1080, %v1212
    %v1217 = vmul.f32 %v1081, %v1213
    %v1218 = vmul.f32 %v1082, %v1214
    %v1219 = vmul.f32 %v1083, %v1215
    %v1220 = vadd.f32 %v1216, 1.0
    %v1221 = vadd.f32 %v1217, 1.0
    %v1222 = vadd.f32 %v1218, 1.0
    %v1223 = vadd.f32 %v1219, 1.0
    %v1224 = vmul.f32 %v1068, %v1220
    %v1225 = vmul.f32 %v1069, %v1221
    %v1226 = vmul.f32 %v1070, %v1222
    %v1227 = vmul.f32 %v1071, %v1223
    %v1228 = vld [vmem:[%s11] sm:$0xff]
    %v1229 = vld [vmem:[%s11 + $0x8] sm:$0xff]
    %v1230 = vld [vmem:[%s11 + $0x10] sm:$0xff]
    %v1231 = vld [vmem:[%s11 + $0x18] sm:$0xff]
    %v1232 = vld [vmem:[%s11 + $0x20] sm:$0xff]
    %v1233 = vld [vmem:[%s11 + $0x28] sm:$0xff]
    %v1234 = vld [vmem:[%s11 + $0x30] sm:$0xff]
    %v1235 = vld [vmem:[%s11 + $0x38] sm:$0xff]
    %v1236 = vld [vmem:[%s11 + $0x40] sm:$0xff]
    %v1237 = vld [vmem:[%s11 + $0x48] sm:$0xff]
    %v1238 = vld [vmem:[%s11 + $0x50] sm:$0xff]
    %v1239 = vld [vmem:[%s11 + $0x58] sm:$0xff]
    %v1240 = vld [vmem:[%s11 + $0x60] sm:$0xff]
    %v1241 = vld [vmem:[%s11 + $0x68] sm:$0xff]
    %v1242 = vld [vmem:[%s11 + $0x70] sm:$0xff]
    %v1243 = vld [vmem:[%s11 + $0x78] sm:$0xff]
    %1244 = vmatpush.msra.mxu0 %v1243
    %1245 = vmatpush.msra.mxu0 %v1242
    %1246 = vmatpush.msra.mxu0 %v1241
    %1247 = vmatpush.msra.mxu0 %v1240
    %1248 = vmatpush.msra.mxu0 %v1239
    %1249 = vmatpush.msra.mxu0 %v1238
    %1250 = vmatpush.msra.mxu0 %v1237
    %1251 = vmatpush.msra.mxu0 %v1236
    %1252 = vmatpush.msra.mxu0 %v1235
    %1253 = vmatpush.msra.mxu0 %v1234
    %1254 = vmatpush.msra.mxu0 %v1233
    %1255 = vmatpush.msra.mxu0 %v1232
    %1256 = vmatpush.msra.mxu0 %v1231
    %1257 = vmatpush.msra.mxu0 %v1230
    %1258 = vmatpush.msra.mxu0 %v1229
    %1259 = vmatpush.msra.mxu0 %v1228
    %1260 = vmatmul.f32.gmra.mxu0 %v1224
    %v1261 = vpop.f32.mrf.mxu0
    %v1262 = vadd.f32 0.0, %v1261
    %1263 = vmatmul.f32.gmra.mxu0 %v1225
    %v1264 = vpop.f32.mrf.mxu0
    %v1265 = vadd.f32 0.0, %v1264
    %1266 = vmatmul.f32.gmra.mxu0 %v1226
    %v1267 = vpop.f32.mrf.mxu0
    %v1268 = vadd.f32 0.0, %v1267
    %1269 = vmatmul.f32.gmra.mxu0 %v1227
    %v1270 = vpop.f32.mrf.mxu0
    %v1271 = vadd.f32 0.0, %v1270
    %1272 = vdwg.mxu0
    %v1273 = vadd.f32 %v903, %v1262
    %v1274 = vadd.f32 %v904, %v1265
    %v1275 = vadd.f32 %v905, %v1268
    %v1276 = vadd.f32 %v906, %v1271
    %v1277 = vld [vmem:[%s12] sm:$0x1]
    %v1279 = vperm.slane %v1277, 0
    %v1281 = vadd.f32 %v1273, %v1279
    %v1282 = vadd.f32 %v1274, %v1279
    %v1283 = vadd.f32 %v1275, %v1279
    %v1284 = vadd.f32 %v1276, %v1279
    %s1285 = scalar_lea.vmem %s2, 1
    %v1286 = vld [vmem:[%s1285] sm:$0x1]
    %s1287 = scalar_lea.vmem %s3, 1
    %v1288 = vld [vmem:[%s1287] sm:$0x1]
    %v1289 = vsel %vm81, %v1281, 0.0
    %1290 = vadd.xlane.f32.xlu0 %v1289
    %v1291 = vpop.xlane.xlu0 %1290
    %v1292 = vsel %vm81, %v1282, 0.0
    %1293 = vadd.xlane.f32.xlu0 %v1292
    %v1294 = vpop.xlane.xlu0 %1293
    %v1295 = vsel %vm81, %v1283, 0.0
    %1296 = vadd.xlane.f32.xlu0 %v1295
    %v1297 = vpop.xlane.xlu0 %1296
    %v1298 = vsel %vm81, %v1284, 0.0
    %1299 = vadd.xlane.f32.xlu0 %v1298
    %v1300 = vpop.xlane.xlu0 %1299
    %v1301 = vmul.f32 %v1291, %v100
    %v1302 = vmul.f32 %v1294, %v100
    %v1303 = vmul.f32 %v1297, %v100
    %v1304 = vmul.f32 %v1300, %v100
    %v1305 = vsub.f32 %v1281, %v1301
    %v1306 = vsub.f32 %v1282, %v1302
    %v1307 = vsub.f32 %v1283, %v1303
    %v1308 = vsub.f32 %v1284, %v1304
    %v1309 = vmul.f32 %v1305, %v1305
    %v1310 = vmul.f32 %v1306, %v1306
    %v1311 = vmul.f32 %v1307, %v1307
    %v1312 = vmul.f32 %v1308, %v1308
    %v1313 = vsel %vm81, %v1309, 0.0
    %1314 = vadd.xlane.f32.xlu0 %v1313
    %v1315 = vpop.xlane.xlu0 %1314
    %v1316 = vsel %vm81, %v1310, 0.0
    %1317 = vadd.xlane.f32.xlu0 %v1316
    %v1318 = vpop.xlane.xlu0 %1317
    %v1319 = vsel %vm81, %v1311, 0.0
    %1320 = vadd.xlane.f32.xlu0 %v1319
    %v1321 = vpop.xlane.xlu0 %1320
    %v1322 = vsel %vm81, %v1312, 0.0
    %1323 = vadd.xlane.f32.xlu0 %v1322
    %v1324 = vpop.xlane.xlu0 %1323
    %v1325 = vmul.f32 %v1315, %v100
    %v1326 = vmul.f32 %v1318, %v100
    %v1327 = vmul.f32 %v1321, %v100
    %v1328 = vmul.f32 %v1324, %v100
    %v1329 = vadd.f32 %v1325, 1e-05
    %v1330 = vadd.f32 %v1326, 1e-05
    %v1331 = vadd.f32 %v1327, 1e-05
    %v1332 = vadd.f32 %v1328, 1e-05
    %v1333 = vrsqrt.pop %v1329
    %v1334 = vmul.f32 %v1333, %v1329
    %v1335 = vmul.f32 %v1334, %v1333
    %v1336 = vmul.f32 0.5, %v1335
    %v1337 = vsub.f32 1.5, %v1336
    %v1338 = vmul.f32 %v1333, %v1337
    %vm1339 = vweird.f32 %v1329
    %vm1340 = vweird.f32 %v1333
    %vm1341 = vmor %vm1339, %vm1340
    %v1342 = vsel %vm1341, %v1333, %v1338
    %v1343 = vrsqrt.pop %v1330
    %v1344 = vmul.f32 %v1343, %v1330
    %v1345 = vmul.f32 %v1344, %v1343
    %v1346 = vmul.f32 0.5, %v1345
    %v1347 = vsub.f32 1.5, %v1346
    %v1348 = vmul.f32 %v1343, %v1347
    %vm1349 = vweird.f32 %v1330
    %vm1350 = vweird.f32 %v1343
    %vm1351 = vmor %vm1349, %vm1350
    %v1352 = vsel %vm1351, %v1343, %v1348
    %v1353 = vrsqrt.pop %v1331
    %v1354 = vmul.f32 %v1353, %v1331
    %v1355 = vmul.f32 %v1354, %v1353
    %v1356 = vmul.f32 0.5, %v1355
    %v1357 = vsub.f32 1.5, %v1356
    %v1358 = vmul.f32 %v1353, %v1357
    %vm1359 = vweird.f32 %v1331
    %vm1360 = vweird.f32 %v1353
    %vm1361 = vmor %vm1359, %vm1360
    %v1362 = vsel %vm1361, %v1353, %v1358
    %v1363 = vrsqrt.pop %v1332
    %v1364 = vmul.f32 %v1363, %v1332
    %v1365 = vmul.f32 %v1364, %v1363
    %v1366 = vmul.f32 0.5, %v1365
    %v1367 = vsub.f32 1.5, %v1366
    %v1368 = vmul.f32 %v1363, %v1367
    %vm1369 = vweird.f32 %v1332
    %vm1370 = vweird.f32 %v1363
    %vm1371 = vmor %vm1369, %vm1370
    %v1372 = vsel %vm1371, %v1363, %v1368
    %v1373 = vmul.f32 %v1305, %v1342
    %v1374 = vmul.f32 %v1306, %v1352
    %v1375 = vmul.f32 %v1307, %v1362
    %v1376 = vmul.f32 %v1308, %v1372
    %v1378 = vperm.slane %v1286, 0
    %v1380 = vmul.f32 %v1373, %v1378
    %v1381 = vmul.f32 %v1374, %v1378
    %v1382 = vmul.f32 %v1375, %v1378
    %v1383 = vmul.f32 %v1376, %v1378
    %v1385 = vperm.slane %v1288, 0
    %v1387 = vadd.f32 %v1380, %v1385
    %v1388 = vadd.f32 %v1381, %v1385
    %v1389 = vadd.f32 %v1382, %v1385
    %v1390 = vadd.f32 %v1383, %v1385
    %s1391 = scalar_lea.vmem %s4, 288
    %v1392 = vld [vmem:[%s1391] sm:$0xff]
    %v1393 = vld [vmem:[%s1391 + $0x8] sm:$0xff]
    %v1394 = vld [vmem:[%s1391 + $0x10] sm:$0xff]
    %v1395 = vld [vmem:[%s1391 + $0x18] sm:$0xff]
    %v1396 = vld [vmem:[%s1391 + $0x20] sm:$0xff]
    %v1397 = vld [vmem:[%s1391 + $0x28] sm:$0xff]
    %v1398 = vld [vmem:[%s1391 + $0x30] sm:$0xff]
    %v1399 = vld [vmem:[%s1391 + $0x38] sm:$0xff]
    %v1400 = vld [vmem:[%s1391 + $0x40] sm:$0xff]
    %v1401 = vld [vmem:[%s1391 + $0x48] sm:$0xff]
    %v1402 = vld [vmem:[%s1391 + $0x50] sm:$0xff]
    %v1403 = vld [vmem:[%s1391 + $0x58] sm:$0xff]
    %v1404 = vld [vmem:[%s1391 + $0x60] sm:$0xff]
    %v1405 = vld [vmem:[%s1391 + $0x68] sm:$0xff]
    %v1406 = vld [vmem:[%s1391 + $0x70] sm:$0xff]
    %v1407 = vld [vmem:[%s1391 + $0x78] sm:$0xff]
    %v1408 = vld [vmem:[%s1391 + $0x80] sm:$0xff]
    %v1409 = vld [vmem:[%s1391 + $0x88] sm:$0xff]
    %v1410 = vld [vmem:[%s1391 + $0x90] sm:$0xff]
    %v1411 = vld [vmem:[%s1391 + $0x98] sm:$0xff]
    %v1412 = vld [vmem:[%s1391 + $0xa0] sm:$0xff]
    %v1413 = vld [vmem:[%s1391 + $0xa8] sm:$0xff]
    %v1414 = vld [vmem:[%s1391 + $0xb0] sm:$0xff]
    %v1415 = vld [vmem:[%s1391 + $0xb8] sm:$0xff]
    %v1416 = vld [vmem:[%s1391 + $0xc0] sm:$0xff]
    %v1417 = vld [vmem:[%s1391 + $0xc8] sm:$0xff]
    %v1418 = vld [vmem:[%s1391 + $0xd0] sm:$0xff]
    %v1419 = vld [vmem:[%s1391 + $0xd8] sm:$0xff]
    %v1420 = vld [vmem:[%s1391 + $0xe0] sm:$0xff]
    %v1421 = vld [vmem:[%s1391 + $0xe8] sm:$0xff]
    %v1422 = vld [vmem:[%s1391 + $0xf0] sm:$0xff]
    %v1423 = vld [vmem:[%s1391 + $0xf8] sm:$0xff]
    %v1424 = vld [vmem:[%s1391 + $0x100] sm:$0xff]
    %v1425 = vld [vmem:[%s1391 + $0x108] sm:$0xff]
    %v1426 = vld [vmem:[%s1391 + $0x110] sm:$0xff]
    %v1427 = vld [vmem:[%s1391 + $0x118] sm:$0xff]
    %v1429 = vsel %vm81, %v1387, 0
    %v1432 = vsel %vm81, %v1388, 0
    %v1435 = vsel %vm81, %v1389, 0
    %v1438 = vsel %vm81, %v1390, 0
    %1440 = vmatpush.msra.mxu0 0.0
    %1441 = vmatpush.msra.mxu0 0.0
    %1442 = vmatpush.msra.mxu0 0.0
    %1443 = vmatpush.msra.mxu0 0.0
    %1444 = vmatpush.msra.mxu0 %v1425
    %1445 = vmatpush.msra.mxu0 %v1422
    %1446 = vmatpush.msra.mxu0 %v1419
    %1447 = vmatpush.msra.mxu0 %v1416
    %1448 = vmatpush.msra.mxu0 %v1413
    %1449 = vmatpush.msra.mxu0 %v1410
    %1450 = vmatpush.msra.mxu0 %v1407
    %1451 = vmatpush.msra.mxu0 %v1404
    %1452 = vmatpush.msra.mxu0 %v1401
    %1453 = vmatpush.msra.mxu0 %v1398
    %1454 = vmatpush.msra.mxu0 %v1395
    %1455 = vmatpush.msra.mxu0 %v1392
    %1456 = vmatmul.f32.gmra.mxu0 %v1429
    %v1457 = vpop.f32.mrf.mxu0
    %v1458 = vadd.f32 0.0, %v1457
    %1459 = vmatmul.f32.gmra.mxu0 %v1432
    %v1460 = vpop.f32.mrf.mxu0
    %v1461 = vadd.f32 0.0, %v1460
    %1462 = vmatmul.f32.gmra.mxu0 %v1435
    %v1463 = vpop.f32.mrf.mxu0
    %v1464 = vadd.f32 0.0, %v1463
    %1465 = vmatmul.f32.gmra.mxu0 %v1438
    %v1466 = vpop.f32.mrf.mxu0
    %v1467 = vadd.f32 0.0, %v1466
    %1468 = vdwg.mxu0
    %1469 = vmatpush.msra.mxu0 0.0
    %1470 = vmatpush.msra.mxu0 0.0
    %1471 = vmatpush.msra.mxu0 0.0
    %1472 = vmatpush.msra.mxu0 0.0
    %1473 = vmatpush.msra.mxu0 %v1426
    %1474 = vmatpush.msra.mxu0 %v1423
    %1475 = vmatpush.msra.mxu0 %v1420
    %1476 = vmatpush.msra.mxu0 %v1417
    %1477 = vmatpush.msra.mxu0 %v1414
    %1478 = vmatpush.msra.mxu0 %v1411
    %1479 = vmatpush.msra.mxu0 %v1408
    %1480 = vmatpush.msra.mxu0 %v1405
    %1481 = vmatpush.msra.mxu0 %v1402
    %1482 = vmatpush.msra.mxu0 %v1399
    %1483 = vmatpush.msra.mxu0 %v1396
    %1484 = vmatpush.msra.mxu0 %v1393
    %1485 = vmatmul.f32.gmra.mxu0 %v1429
    %v1486 = vpop.f32.mrf.mxu0
    %v1487 = vadd.f32 0.0, %v1486
    %1488 = vmatmul.f32.gmra.mxu0 %v1432
    %v1489 = vpop.f32.mrf.mxu0
    %v1490 = vadd.f32 0.0, %v1489
    %1491 = vmatmul.f32.gmra.mxu0 %v1435
    %v1492 = vpop.f32.mrf.mxu0
    %v1493 = vadd.f32 0.0, %v1492
    %1494 = vmatmul.f32.gmra.mxu0 %v1438
    %v1495 = vpop.f32.mrf.mxu0
    %v1496 = vadd.f32 0.0, %v1495
    %1497 = vdwg.mxu0
    %1498 = vmatpush.msra.mxu0 0.0
    %1499 = vmatpush.msra.mxu0 0.0
    %1500 = vmatpush.msra.mxu0 0.0
    %1501 = vmatpush.msra.mxu0 0.0
    %1502 = vmatpush.msra.mxu0 %v1427
    %1503 = vmatpush.msra.mxu0 %v1424
    %1504 = vmatpush.msra.mxu0 %v1421
    %1505 = vmatpush.msra.mxu0 %v1418
    %1506 = vmatpush.msra.mxu0 %v1415
    %1507 = vmatpush.msra.mxu0 %v1412
    %1508 = vmatpush.msra.mxu0 %v1409
    %1509 = vmatpush.msra.mxu0 %v1406
    %1510 = vmatpush.msra.mxu0 %v1403
    %1511 = vmatpush.msra.mxu0 %v1400
    %1512 = vmatpush.msra.mxu0 %v1397
    %1513 = vmatpush.msra.mxu0 %v1394
    %1514 = vmatmul.f32.gmra.mxu0 %v1429
    %v1515 = vpop.f32.mrf.mxu0
    %v1516 = vadd.f32 0.0, %v1515
    %1517 = vmatmul.f32.gmra.mxu0 %v1432
    %v1518 = vpop.f32.mrf.mxu0
    %v1519 = vadd.f32 0.0, %v1518
    %1520 = vmatmul.f32.gmra.mxu0 %v1435
    %v1521 = vpop.f32.mrf.mxu0
    %v1522 = vadd.f32 0.0, %v1521
    %1523 = vmatmul.f32.gmra.mxu0 %v1438
    %v1524 = vpop.f32.mrf.mxu0
    %v1525 = vadd.f32 0.0, %v1524
    %1526 = vdwg.mxu0
    %1527 = vmax.xlane.f32.xlu0 %v1458
    %v1528 = vpop.xlane.xlu0 %1527
    %1529 = vmax.xlane.f32.xlu0 %v1461
    %v1530 = vpop.xlane.xlu0 %1529
    %1531 = vmax.xlane.f32.xlu0 %v1464
    %v1532 = vpop.xlane.xlu0 %1531
    %1533 = vmax.xlane.f32.xlu0 %v1467
    %v1534 = vpop.xlane.xlu0 %1533
    %v1535 = vsub.f32 %v1458, %v1528
    %v1536 = vsub.f32 %v1461, %v1530
    %v1537 = vsub.f32 %v1464, %v1532
    %v1538 = vsub.f32 %v1467, %v1534
    %v1539 = vmul.f32 %v1535, 1.442695
    %v1540 = vpow.pop %v1539
    %v1541 = vmul.f32 %v1536, 1.442695
    %v1542 = vpow.pop %v1541
    %v1543 = vmul.f32 %v1537, 1.442695
    %v1544 = vpow.pop %v1543
    %v1545 = vmul.f32 %v1538, 1.442695
    %v1546 = vpow.pop %v1545
    %1547 = vmatpush.msra.mxu0 %v810
    %1548 = vmatpush.msra.mxu0 %v809
    %1549 = vmatpush.msra.mxu0 %v808
    %1550 = vmatpush.msra.mxu0 %v807
    %1551 = vmatpush.msra.mxu0 %v806
    %1552 = vmatpush.msra.mxu0 %v805
    %1553 = vmatpush.msra.mxu0 %v804
    %1554 = vmatpush.msra.mxu0 %v803
    %1555 = vmatpush.msra.mxu0 %v802
    %1556 = vmatpush.msra.mxu0 %v801
    %1557 = vmatpush.msra.mxu0 %v800
    %1558 = vmatpush.msra.mxu0 %v799
    %1559 = vmatpush.msra.mxu0 %v798
    %1560 = vmatpush.msra.mxu0 %v797
    %1561 = vmatpush.msra.mxu0 %v796
    %1562 = vmatpush.msra.mxu0 %v795
    %1563 = vmatmul.f32.gmra.mxu0 %v1540
    %v1564 = vpop.f32.mrf.mxu0
    %v1565 = vadd.f32 0.0, %v1564
    %1566 = vmatmul.f32.gmra.mxu0 %v1542
    %v1567 = vpop.f32.mrf.mxu0
    %v1568 = vadd.f32 0.0, %v1567
    %1569 = vmatmul.f32.gmra.mxu0 %v1544
    %v1570 = vpop.f32.mrf.mxu0
    %v1571 = vadd.f32 0.0, %v1570
    %1572 = vmatmul.f32.gmra.mxu0 %v1546
    %v1573 = vpop.f32.mrf.mxu0
    %v1574 = vadd.f32 0.0, %v1573
    %1575 = vdwg.mxu0
    %v1576 = vmax.f32 %v1565, 1e-30
    %v1577 = vmax.f32 %v1568, 1e-30
    %v1578 = vmax.f32 %v1571, 1e-30
    %v1579 = vmax.f32 %v1574, 1e-30
    %v1580 = vrcp.pop %v1576
    %v1581 = vrcp.pop %v1577
    %v1582 = vrcp.pop %v1578
    %v1583 = vrcp.pop %v1579
    %v1584 = vmul.f32 %v1540, %v1580
    %v1585 = vmul.f32 %v1542, %v1581
    %v1586 = vmul.f32 %v1544, %v1582
    %v1587 = vmul.f32 %v1546, %v1583
    %v1588 = vmax.f32 %v1487, %v1490
    %v1589 = vrot.slane %v1588, 4
    %v1590 = vmax.f32 %v1588, %v1589
    %v1591 = vrot.slane %v1590, 2
    %v1592 = vmax.f32 %v1590, %v1591
    %v1593 = vrot.slane %v1592, 1
    %v1594 = vmax.f32 %v1592, %v1593
    %v1595 = vsub.f32 %v1487, %v1594
    %v1596 = vsub.f32 %v1490, %v1594
    %v1597 = vmul.f32 %v1595, 1.442695
    %v1598 = vpow.pop %v1597
    %v1599 = vmul.f32 %v1596, 1.442695
    %v1600 = vpow.pop %v1599
    %v1601 = vadd.f32 %v1598, %v1600
    %v1602 = vrot.slane %v1601, 4
    %v1603 = vadd.f32 %v1601, %v1602
    %v1604 = vrot.slane %v1603, 2
    %v1605 = vadd.f32 %v1603, %v1604
    %v1606 = vrot.slane %v1605, 1
    %v1607 = vadd.f32 %v1605, %v1606
    %v1608 = vrcp.pop %v1607
    %v1609 = vmul.f32 %v1598, %v1608
    %v1610 = vmul.f32 %v1600, %v1608
    %1611 = vxpose.xlu0.b32.start [1/16] %v1609, 128
    %1612 = vxpose.xlu0.b32.cont [2/16] %v1610, 128
    %1613 = vxpose.xlu0.b32.cont [3/16] 0.0, 128
    %1614 = vxpose.xlu0.b32.cont [4/16] 0.0, 128
    %1615 = vxpose.xlu0.b32.cont [5/16] 0.0, 128
    %1616 = vxpose.xlu0.b32.cont [6/16] 0.0, 128
    %1617 = vxpose.xlu0.b32.cont [7/16] 0.0, 128
    %1618 = vxpose.xlu0.b32.cont [8/16] 0.0, 128
    %1619 = vxpose.xlu0.b32.cont [9/16] 0.0, 128
    %1620 = vxpose.xlu0.b32.cont [10/16] 0.0, 128
    %1621 = vxpose.xlu0.b32.cont [11/16] 0.0, 128
    %1622 = vxpose.xlu0.b32.cont [12/16] 0.0, 128
    %1623 = vxpose.xlu0.b32.cont [13/16] 0.0, 128
    %1624 = vxpose.xlu0.b32.cont [14/16] 0.0, 128
    %1625 = vxpose.xlu0.b32.cont [15/16] 0.0, 128
    %1626 = vxpose.xlu0.b32.end [16/16] 0.0, 128
    %v1627 = vpop.trf.xlu0
    %v1628 = vpop.trf.xlu0
    %v1629 = vpop.trf.xlu0
    %v1630 = vpop.trf.xlu0
    %v1631 = vpop.trf.xlu0
    %v1632 = vpop.trf.xlu0
    %v1633 = vpop.trf.xlu0
    %v1634 = vpop.trf.xlu0
    %v1635 = vpop.trf.xlu0
    %v1636 = vpop.trf.xlu0
    %v1637 = vpop.trf.xlu0
    %v1638 = vpop.trf.xlu0
    %v1639 = vpop.trf.xlu0
    %v1640 = vpop.trf.xlu0
    %v1641 = vpop.trf.xlu0
    %v1642 = vpop.trf.xlu0
    %v1644 = vsel %vm458, %v1627, 0
    %v1647 = vsel %vm458, %v1628, 0
    %v1650 = vsel %vm458, %v1629, 0
    %v1653 = vsel %vm458, %v1630, 0
    %v1656 = vsel %vm458, %v1631, 0
    %v1659 = vsel %vm458, %v1632, 0
    %v1662 = vsel %vm458, %v1633, 0
    %v1665 = vsel %vm458, %v1634, 0
    %v1668 = vsel %vm458, %v1635, 0
    %v1671 = vsel %vm458, %v1636, 0
    %v1674 = vsel %vm458, %v1637, 0
    %v1677 = vsel %vm458, %v1638, 0
    %v1680 = vsel %vm458, %v1639, 0
    %v1683 = vsel %vm458, %v1640, 0
    %v1686 = vsel %vm458, %v1641, 0
    %v1689 = vsel %vm458, %v1642, 0
    %1691 = vmatpush.msra.mxu0 0.0
    %1692 = vmatpush.msra.mxu0 0.0
    %1693 = vmatpush.msra.mxu0 0.0
    %1694 = vmatpush.msra.mxu0 0.0
    %1695 = vmatpush.msra.mxu0 0.0
    %1696 = vmatpush.msra.mxu0 0.0
    %1697 = vmatpush.msra.mxu0 0.0
    %1698 = vmatpush.msra.mxu0 0.0
    %1699 = vmatpush.msra.mxu0 0.0
    %1700 = vmatpush.msra.mxu0 0.0
    %1701 = vmatpush.msra.mxu0 0.0
    %1702 = vmatpush.msra.mxu0 0.0
    %1703 = vmatpush.msra.mxu0 0.0
    %1704 = vmatpush.msra.mxu0 0.0
    %1705 = vmatpush.msra.mxu0 %v1519
    %1706 = vmatpush.msra.mxu0 %v1516
    %1707 = vmatmul.f32.gmra.mxu0 %v1644
    %v1708 = vpop.f32.mrf.mxu0
    %v1709 = vadd.f32 0.0, %v1708
    %1710 = vmatmul.f32.gmra.mxu0 %v1647
    %v1711 = vpop.f32.mrf.mxu0
    %v1712 = vadd.f32 0.0, %v1711
    %1713 = vmatmul.f32.gmra.mxu0 %v1650
    %v1714 = vpop.f32.mrf.mxu0
    %v1715 = vadd.f32 0.0, %v1714
    %1716 = vmatmul.f32.gmra.mxu0 %v1653
    %v1717 = vpop.f32.mrf.mxu0
    %v1718 = vadd.f32 0.0, %v1717
    %1719 = vmatmul.f32.gmra.mxu0 %v1656
    %v1720 = vpop.f32.mrf.mxu0
    %v1721 = vadd.f32 0.0, %v1720
    %1722 = vmatmul.f32.gmra.mxu0 %v1659
    %v1723 = vpop.f32.mrf.mxu0
    %v1724 = vadd.f32 0.0, %v1723
    %1725 = vmatmul.f32.gmra.mxu0 %v1662
    %v1726 = vpop.f32.mrf.mxu0
    %v1727 = vadd.f32 0.0, %v1726
    %1728 = vmatmul.f32.gmra.mxu0 %v1665
    %v1729 = vpop.f32.mrf.mxu0
    %v1730 = vadd.f32 0.0, %v1729
    %1731 = vmatmul.f32.gmra.mxu0 %v1668
    %v1732 = vpop.f32.mrf.mxu0
    %v1733 = vadd.f32 0.0, %v1732
    %1734 = vmatmul.f32.gmra.mxu0 %v1671
    %v1735 = vpop.f32.mrf.mxu0
    %v1736 = vadd.f32 0.0, %v1735
    %1737 = vmatmul.f32.gmra.mxu0 %v1674
    %v1738 = vpop.f32.mrf.mxu0
    %v1739 = vadd.f32 0.0, %v1738
    %1740 = vmatmul.f32.gmra.mxu0 %v1677
    %v1741 = vpop.f32.mrf.mxu0
    %v1742 = vadd.f32 0.0, %v1741
    %1743 = vmatmul.f32.gmra.mxu0 %v1680
    %v1744 = vpop.f32.mrf.mxu0
    %v1745 = vadd.f32 0.0, %v1744
    %1746 = vmatmul.f32.gmra.mxu0 %v1683
    %v1747 = vpop.f32.mrf.mxu0
    %v1748 = vadd.f32 0.0, %v1747
    %1749 = vmatmul.f32.gmra.mxu0 %v1686
    %v1750 = vpop.f32.mrf.mxu0
    %v1751 = vadd.f32 0.0, %v1750
    %1752 = vmatmul.f32.gmra.mxu0 %v1689
    %v1753 = vpop.f32.mrf.mxu0
    %v1754 = vadd.f32 0.0, %v1753
    %1755 = vdwg.mxu0
    %v1756 = vld [vmem:[#allocation2] sm:$0xff]
    %v1757 = vld [vmem:[#allocation2 + $0x8] sm:$0xff]
    %v1758 = vld [vmem:[#allocation2 + $0x10] sm:$0xff]
    %v1759 = vld [vmem:[#allocation2 + $0x18] sm:$0xff]
    %v1760 = vld [vmem:[#allocation2 + $0x20] sm:$0xff]
    %v1761 = vld [vmem:[#allocation2 + $0x28] sm:$0xff]
    %v1762 = vld [vmem:[#allocation2 + $0x30] sm:$0xff]
    %v1763 = vld [vmem:[#allocation2 + $0x38] sm:$0xff]
    %v1764 = vld [vmem:[#allocation2 + $0x40] sm:$0xff]
    %v1765 = vld [vmem:[#allocation2 + $0x48] sm:$0xff]
    %v1766 = vld [vmem:[#allocation2 + $0x50] sm:$0xff]
    %v1767 = vld [vmem:[#allocation2 + $0x58] sm:$0xff]
    %v1768 = vld [vmem:[#allocation2 + $0x60] sm:$0xff]
    %v1769 = vld [vmem:[#allocation2 + $0x68] sm:$0xff]
    %v1770 = vld [vmem:[#allocation2 + $0x70] sm:$0xff]
    %v1771 = vld [vmem:[#allocation2 + $0x78] sm:$0xff]
    %v1772 = vmul.f32 %v1709, %v1756
    %v1773 = vmul.f32 %v1712, %v1757
    %v1774 = vmul.f32 %v1715, %v1758
    %v1775 = vmul.f32 %v1718, %v1759
    %v1776 = vmul.f32 %v1721, %v1760
    %v1777 = vmul.f32 %v1724, %v1761
    %v1778 = vmul.f32 %v1727, %v1762
    %v1779 = vmul.f32 %v1730, %v1763
    %v1780 = vmul.f32 %v1733, %v1764
    %v1781 = vmul.f32 %v1736, %v1765
    %v1782 = vmul.f32 %v1739, %v1766
    %v1783 = vmul.f32 %v1742, %v1767
    %v1784 = vmul.f32 %v1745, %v1768
    %v1785 = vmul.f32 %v1748, %v1769
    %v1786 = vmul.f32 %v1751, %v1770
    %v1787 = vmul.f32 %v1754, %v1771
    %1788 = vmatpush.msra.mxu0 %v1787
    %1789 = vmatpush.msra.mxu0 %v1786
    %1790 = vmatpush.msra.mxu0 %v1785
    %1791 = vmatpush.msra.mxu0 %v1784
    %1792 = vmatpush.msra.mxu0 %v1783
    %1793 = vmatpush.msra.mxu0 %v1782
    %1794 = vmatpush.msra.mxu0 %v1781
    %1795 = vmatpush.msra.mxu0 %v1780
    %1796 = vmatpush.msra.mxu0 %v1779
    %1797 = vmatpush.msra.mxu0 %v1778
    %1798 = vmatpush.msra.mxu0 %v1777
    %1799 = vmatpush.msra.mxu0 %v1776
    %1800 = vmatpush.msra.mxu0 %v1775
    %1801 = vmatpush.msra.mxu0 %v1774
    %1802 = vmatpush.msra.mxu0 %v1773
    %1803 = vmatpush.msra.mxu0 %v1772
    %1804 = vmatmul.f32.gmra.mxu0 %v1584
    %v1805 = vpop.f32.mrf.mxu0
    %v1806 = vadd.f32 0.0, %v1805
    %1807 = vmatmul.f32.gmra.mxu0 %v1585
    %v1808 = vpop.f32.mrf.mxu0
    %v1809 = vadd.f32 0.0, %v1808
    %1810 = vdwg.mxu0
    %v1811 = vmax.f32 %v1493, %v1496
    %v1812 = vrot.slane %v1811, 4
    %v1813 = vmax.f32 %v1811, %v1812
    %v1814 = vrot.slane %v1813, 2
    %v1815 = vmax.f32 %v1813, %v1814
    %v1816 = vrot.slane %v1815, 1
    %v1817 = vmax.f32 %v1815, %v1816
    %v1818 = vsub.f32 %v1493, %v1817
    %v1819 = vsub.f32 %v1496, %v1817
    %v1820 = vmul.f32 %v1818, 1.442695
    %v1821 = vpow.pop %v1820
    %v1822 = vmul.f32 %v1819, 1.442695
    %v1823 = vpow.pop %v1822
    %v1824 = vadd.f32 %v1821, %v1823
    %v1825 = vrot.slane %v1824, 4
    %v1826 = vadd.f32 %v1824, %v1825
    %v1827 = vrot.slane %v1826, 2
    %v1828 = vadd.f32 %v1826, %v1827
    %v1829 = vrot.slane %v1828, 1
    %v1830 = vadd.f32 %v1828, %v1829
    %v1831 = vrcp.pop %v1830
    %v1832 = vmul.f32 %v1821, %v1831
    %v1833 = vmul.f32 %v1823, %v1831
    %1834 = vxpose.xlu0.b32.start [1/16] %v1832, 128
    %1835 = vxpose.xlu0.b32.cont [2/16] %v1833, 128
    %1836 = vxpose.xlu0.b32.cont [3/16] 0.0, 128
    %1837 = vxpose.xlu0.b32.cont [4/16] 0.0, 128
    %1838 = vxpose.xlu0.b32.cont [5/16] 0.0, 128
    %1839 = vxpose.xlu0.b32.cont [6/16] 0.0, 128
    %1840 = vxpose.xlu0.b32.cont [7/16] 0.0, 128
    %1841 = vxpose.xlu0.b32.cont [8/16] 0.0, 128
    %1842 = vxpose.xlu0.b32.cont [9/16] 0.0, 128
    %1843 = vxpose.xlu0.b32.cont [10/16] 0.0, 128
    %1844 = vxpose.xlu0.b32.cont [11/16] 0.0, 128
    %1845 = vxpose.xlu0.b32.cont [12/16] 0.0, 128
    %1846 = vxpose.xlu0.b32.cont [13/16] 0.0, 128
    %1847 = vxpose.xlu0.b32.cont [14/16] 0.0, 128
    %1848 = vxpose.xlu0.b32.cont [15/16] 0.0, 128
    %1849 = vxpose.xlu0.b32.end [16/16] 0.0, 128
    %v1850 = vpop.trf.xlu0
    %v1851 = vpop.trf.xlu0
    %v1852 = vpop.trf.xlu0
    %v1853 = vpop.trf.xlu0
    %v1854 = vpop.trf.xlu0
    %v1855 = vpop.trf.xlu0
    %v1856 = vpop.trf.xlu0
    %v1857 = vpop.trf.xlu0
    %v1858 = vpop.trf.xlu0
    %v1859 = vpop.trf.xlu0
    %v1860 = vpop.trf.xlu0
    %v1861 = vpop.trf.xlu0
    %v1862 = vpop.trf.xlu0
    %v1863 = vpop.trf.xlu0
    %v1864 = vpop.trf.xlu0
    %v1865 = vpop.trf.xlu0
    %v1867 = vsel %vm458, %v1850, 0
    %v1870 = vsel %vm458, %v1851, 0
    %v1873 = vsel %vm458, %v1852, 0
    %v1876 = vsel %vm458, %v1853, 0
    %v1879 = vsel %vm458, %v1854, 0
    %v1882 = vsel %vm458, %v1855, 0
    %v1885 = vsel %vm458, %v1856, 0
    %v1888 = vsel %vm458, %v1857, 0
    %v1891 = vsel %vm458, %v1858, 0
    %v1894 = vsel %vm458, %v1859, 0
    %v1897 = vsel %vm458, %v1860, 0
    %v1900 = vsel %vm458, %v1861, 0
    %v1903 = vsel %vm458, %v1862, 0
    %v1906 = vsel %vm458, %v1863, 0
    %v1909 = vsel %vm458, %v1864, 0
    %v1912 = vsel %vm458, %v1865, 0
    %1914 = vmatpush.msra.mxu0 0.0
    %1915 = vmatpush.msra.mxu0 0.0
    %1916 = vmatpush.msra.mxu0 0.0
    %1917 = vmatpush.msra.mxu0 0.0
    %1918 = vmatpush.msra.mxu0 0.0
    %1919 = vmatpush.msra.mxu0 0.0
    %1920 = vmatpush.msra.mxu0 0.0
    %1921 = vmatpush.msra.mxu0 0.0
    %1922 = vmatpush.msra.mxu0 0.0
    %1923 = vmatpush.msra.mxu0 0.0
    %1924 = vmatpush.msra.mxu0 0.0
    %1925 = vmatpush.msra.mxu0 0.0
    %1926 = vmatpush.msra.mxu0 0.0
    %1927 = vmatpush.msra.mxu0 0.0
    %1928 = vmatpush.msra.mxu0 %v1525
    %1929 = vmatpush.msra.mxu0 %v1522
    %1930 = vmatmul.f32.gmra.mxu0 %v1867
    %v1931 = vpop.f32.mrf.mxu0
    %v1932 = vadd.f32 0.0, %v1931
    %1933 = vmatmul.f32.gmra.mxu0 %v1870
    %v1934 = vpop.f32.mrf.mxu0
    %v1935 = vadd.f32 0.0, %v1934
    %1936 = vmatmul.f32.gmra.mxu0 %v1873
    %v1937 = vpop.f32.mrf.mxu0
    %v1938 = vadd.f32 0.0, %v1937
    %1939 = vmatmul.f32.gmra.mxu0 %v1876
    %v1940 = vpop.f32.mrf.mxu0
    %v1941 = vadd.f32 0.0, %v1940
    %1942 = vmatmul.f32.gmra.mxu0 %v1879
    %v1943 = vpop.f32.mrf.mxu0
    %v1944 = vadd.f32 0.0, %v1943
    %1945 = vmatmul.f32.gmra.mxu0 %v1882
    %v1946 = vpop.f32.mrf.mxu0
    %v1947 = vadd.f32 0.0, %v1946
    %1948 = vmatmul.f32.gmra.mxu0 %v1885
    %v1949 = vpop.f32.mrf.mxu0
    %v1950 = vadd.f32 0.0, %v1949
    %1951 = vmatmul.f32.gmra.mxu0 %v1888
    %v1952 = vpop.f32.mrf.mxu0
    %v1953 = vadd.f32 0.0, %v1952
    %1954 = vmatmul.f32.gmra.mxu0 %v1891
    %v1955 = vpop.f32.mrf.mxu0
    %v1956 = vadd.f32 0.0, %v1955
    %1957 = vmatmul.f32.gmra.mxu0 %v1894
    %v1958 = vpop.f32.mrf.mxu0
    %v1959 = vadd.f32 0.0, %v1958
    %1960 = vmatmul.f32.gmra.mxu0 %v1897
    %v1961 = vpop.f32.mrf.mxu0
    %v1962 = vadd.f32 0.0, %v1961
    %1963 = vmatmul.f32.gmra.mxu0 %v1900
    %v1964 = vpop.f32.mrf.mxu0
    %v1965 = vadd.f32 0.0, %v1964
    %1966 = vmatmul.f32.gmra.mxu0 %v1903
    %v1967 = vpop.f32.mrf.mxu0
    %v1968 = vadd.f32 0.0, %v1967
    %1969 = vmatmul.f32.gmra.mxu0 %v1906
    %v1970 = vpop.f32.mrf.mxu0
    %v1971 = vadd.f32 0.0, %v1970
    %1972 = vmatmul.f32.gmra.mxu0 %v1909
    %v1973 = vpop.f32.mrf.mxu0
    %v1974 = vadd.f32 0.0, %v1973
    %1975 = vmatmul.f32.gmra.mxu0 %v1912
    %v1976 = vpop.f32.mrf.mxu0
    %v1977 = vadd.f32 0.0, %v1976
    %1978 = vdwg.mxu0
    %v1979 = vld [vmem:[#allocation2] sm:$0xff]
    %v1980 = vld [vmem:[#allocation2 + $0x8] sm:$0xff]
    %v1981 = vld [vmem:[#allocation2 + $0x10] sm:$0xff]
    %v1982 = vld [vmem:[#allocation2 + $0x18] sm:$0xff]
    %v1983 = vld [vmem:[#allocation2 + $0x20] sm:$0xff]
    %v1984 = vld [vmem:[#allocation2 + $0x28] sm:$0xff]
    %v1985 = vld [vmem:[#allocation2 + $0x30] sm:$0xff]
    %v1986 = vld [vmem:[#allocation2 + $0x38] sm:$0xff]
    %v1987 = vld [vmem:[#allocation2 + $0x40] sm:$0xff]
    %v1988 = vld [vmem:[#allocation2 + $0x48] sm:$0xff]
    %v1989 = vld [vmem:[#allocation2 + $0x50] sm:$0xff]
    %v1990 = vld [vmem:[#allocation2 + $0x58] sm:$0xff]
    %v1991 = vld [vmem:[#allocation2 + $0x60] sm:$0xff]
    %v1992 = vld [vmem:[#allocation2 + $0x68] sm:$0xff]
    %v1993 = vld [vmem:[#allocation2 + $0x70] sm:$0xff]
    %v1994 = vld [vmem:[#allocation2 + $0x78] sm:$0xff]
    %v1995 = vmul.f32 %v1932, %v1979
    %v1996 = vmul.f32 %v1935, %v1980
    %v1997 = vmul.f32 %v1938, %v1981
    %v1998 = vmul.f32 %v1941, %v1982
    %v1999 = vmul.f32 %v1944, %v1983
    %v2000 = vmul.f32 %v1947, %v1984
    %v2001 = vmul.f32 %v1950, %v1985
    %v2002 = vmul.f32 %v1953, %v1986
    %v2003 = vmul.f32 %v1956, %v1987
    %v2004 = vmul.f32 %v1959, %v1988
    %v2005 = vmul.f32 %v1962, %v1989
    %v2006 = vmul.f32 %v1965, %v1990
    %v2007 = vmul.f32 %v1968, %v1991
    %v2008 = vmul.f32 %v1971, %v1992
    %v2009 = vmul.f32 %v1974, %v1993
    %v2010 = vmul.f32 %v1977, %v1994
    %2011 = vmatpush.msra.mxu0 %v2010
    %2012 = vmatpush.msra.mxu0 %v2009
    %2013 = vmatpush.msra.mxu0 %v2008
    %2014 = vmatpush.msra.mxu0 %v2007
    %2015 = vmatpush.msra.mxu0 %v2006
    %2016 = vmatpush.msra.mxu0 %v2005
    %2017 = vmatpush.msra.mxu0 %v2004
    %2018 = vmatpush.msra.mxu0 %v2003
    %2019 = vmatpush.msra.mxu0 %v2002
    %2020 = vmatpush.msra.mxu0 %v2001
    %2021 = vmatpush.msra.mxu0 %v2000
    %2022 = vmatpush.msra.mxu0 %v1999
    %2023 = vmatpush.msra.mxu0 %v1998
    %2024 = vmatpush.msra.mxu0 %v1997
    %2025 = vmatpush.msra.mxu0 %v1996
    %2026 = vmatpush.msra.mxu0 %v1995
    %2027 = vmatmul.f32.gmra.mxu0 %v1586
    %v2028 = vpop.f32.mrf.mxu0
    %v2029 = vadd.f32 0.0, %v2028
    %2030 = vmatmul.f32.gmra.mxu0 %v1587
    %v2031 = vpop.f32.mrf.mxu0
    %v2032 = vadd.f32 0.0, %v2031
    %2033 = vdwg.mxu0
    %s2034 = scalar_lea.vmem %s5, 128
    %v2035 = vld [vmem:[%s2034] sm:$0xff]
    %v2036 = vld [vmem:[%s2034 + $0x8] sm:$0xff]
    %v2037 = vld [vmem:[%s2034 + $0x10] sm:$0xff]
    %v2038 = vld [vmem:[%s2034 + $0x18] sm:$0xff]
    %v2039 = vld [vmem:[%s2034 + $0x20] sm:$0xff]
    %v2040 = vld [vmem:[%s2034 + $0x28] sm:$0xff]
    %v2041 = vld [vmem:[%s2034 + $0x30] sm:$0xff]
    %v2042 = vld [vmem:[%s2034 + $0x38] sm:$0xff]
    %v2043 = vld [vmem:[%s2034 + $0x40] sm:$0xff]
    %v2044 = vld [vmem:[%s2034 + $0x48] sm:$0xff]
    %v2045 = vld [vmem:[%s2034 + $0x50] sm:$0xff]
    %v2046 = vld [vmem:[%s2034 + $0x58] sm:$0xff]
    %v2047 = vld [vmem:[%s2034 + $0x60] sm:$0xff]
    %v2048 = vld [vmem:[%s2034 + $0x68] sm:$0xff]
    %v2049 = vld [vmem:[%s2034 + $0x70] sm:$0xff]
    %v2050 = vld [vmem:[%s2034 + $0x78] sm:$0xff]
    %2051 = vmatpush.msra.mxu0 %v2050
    %2052 = vmatpush.msra.mxu0 %v2049
    %2053 = vmatpush.msra.mxu0 %v2048
    %2054 = vmatpush.msra.mxu0 %v2047
    %2055 = vmatpush.msra.mxu0 %v2046
    %2056 = vmatpush.msra.mxu0 %v2045
    %2057 = vmatpush.msra.mxu0 %v2044
    %2058 = vmatpush.msra.mxu0 %v2043
    %2059 = vmatpush.msra.mxu0 %v2042
    %2060 = vmatpush.msra.mxu0 %v2041
    %2061 = vmatpush.msra.mxu0 %v2040
    %2062 = vmatpush.msra.mxu0 %v2039
    %2063 = vmatpush.msra.mxu0 %v2038
    %2064 = vmatpush.msra.mxu0 %v2037
    %2065 = vmatpush.msra.mxu0 %v2036
    %2066 = vmatpush.msra.mxu0 %v2035
    %2067 = vmatmul.f32.gmra.mxu0 %v1806
    %v2068 = vpop.f32.mrf.mxu0
    %v2069 = vadd.f32 0.0, %v2068
    %2070 = vmatmul.f32.gmra.mxu0 %v1809
    %v2071 = vpop.f32.mrf.mxu0
    %v2072 = vadd.f32 0.0, %v2071
    %2073 = vmatmul.f32.gmra.mxu0 %v2029
    %v2074 = vpop.f32.mrf.mxu0
    %v2075 = vadd.f32 0.0, %v2074
    %2076 = vmatmul.f32.gmra.mxu0 %v2032
    %v2077 = vpop.f32.mrf.mxu0
    %v2078 = vadd.f32 0.0, %v2077
    %2079 = vdwg.mxu0
    %v2080 = vadd.f32 %v1281, %v2069
    %v2081 = vadd.f32 %v1282, %v2072
    %v2082 = vadd.f32 %v1283, %v2075
    %v2083 = vadd.f32 %v1284, %v2078
    %s2084 = scalar_lea.vmem %s6, 1
    %v2085 = vld [vmem:[%s2084] sm:$0x1]
    %v2087 = vperm.slane %v2085, 0
    %v2089 = vadd.f32 %v2080, %v2087
    %v2090 = vadd.f32 %v2081, %v2087
    %v2091 = vadd.f32 %v2082, %v2087
    %v2092 = vadd.f32 %v2083, %v2087
    %s2093 = scalar_lea.vmem %s7, 1
    %v2094 = vld [vmem:[%s2093] sm:$0x1]
    %s2095 = scalar_lea.vmem %s8, 1
    %v2096 = vld [vmem:[%s2095] sm:$0x1]
    %v2097 = vsel %vm81, %v2089, 0.0
    %2098 = vadd.xlane.f32.xlu0 %v2097
    %v2099 = vpop.xlane.xlu0 %2098
    %v2100 = vsel %vm81, %v2090, 0.0
    %2101 = vadd.xlane.f32.xlu0 %v2100
    %v2102 = vpop.xlane.xlu0 %2101
    %v2103 = vsel %vm81, %v2091, 0.0
    %2104 = vadd.xlane.f32.xlu0 %v2103
    %v2105 = vpop.xlane.xlu0 %2104
    %v2106 = vsel %vm81, %v2092, 0.0
    %2107 = vadd.xlane.f32.xlu0 %v2106
    %v2108 = vpop.xlane.xlu0 %2107
    %v2109 = vmul.f32 %v2099, %v100
    %v2110 = vmul.f32 %v2102, %v100
    %v2111 = vmul.f32 %v2105, %v100
    %v2112 = vmul.f32 %v2108, %v100
    %v2113 = vsub.f32 %v2089, %v2109
    %v2114 = vsub.f32 %v2090, %v2110
    %v2115 = vsub.f32 %v2091, %v2111
    %v2116 = vsub.f32 %v2092, %v2112
    %v2117 = vmul.f32 %v2113, %v2113
    %v2118 = vmul.f32 %v2114, %v2114
    %v2119 = vmul.f32 %v2115, %v2115
    %v2120 = vmul.f32 %v2116, %v2116
    %v2121 = vsel %vm81, %v2117, 0.0
    %2122 = vadd.xlane.f32.xlu0 %v2121
    %v2123 = vpop.xlane.xlu0 %2122
    %v2124 = vsel %vm81, %v2118, 0.0
    %2125 = vadd.xlane.f32.xlu0 %v2124
    %v2126 = vpop.xlane.xlu0 %2125
    %v2127 = vsel %vm81, %v2119, 0.0
    %2128 = vadd.xlane.f32.xlu0 %v2127
    %v2129 = vpop.xlane.xlu0 %2128
    %v2130 = vsel %vm81, %v2120, 0.0
    %2131 = vadd.xlane.f32.xlu0 %v2130
    %v2132 = vpop.xlane.xlu0 %2131
    %v2133 = vmul.f32 %v2123, %v100
    %v2134 = vmul.f32 %v2126, %v100
    %v2135 = vmul.f32 %v2129, %v100
    %v2136 = vmul.f32 %v2132, %v100
    %v2137 = vadd.f32 %v2133, 1e-05
    %v2138 = vadd.f32 %v2134, 1e-05
    %v2139 = vadd.f32 %v2135, 1e-05
    %v2140 = vadd.f32 %v2136, 1e-05
    %v2141 = vrsqrt.pop %v2137
    %v2142 = vmul.f32 %v2141, %v2137
    %v2143 = vmul.f32 %v2142, %v2141
    %v2144 = vmul.f32 0.5, %v2143
    %v2145 = vsub.f32 1.5, %v2144
    %v2146 = vmul.f32 %v2141, %v2145
    %vm2147 = vweird.f32 %v2137
    %vm2148 = vweird.f32 %v2141
    %vm2149 = vmor %vm2147, %vm2148
    %v2150 = vsel %vm2149, %v2141, %v2146
    %v2151 = vrsqrt.pop %v2138
    %v2152 = vmul.f32 %v2151, %v2138
    %v2153 = vmul.f32 %v2152, %v2151
    %v2154 = vmul.f32 0.5, %v2153
    %v2155 = vsub.f32 1.5, %v2154
    %v2156 = vmul.f32 %v2151, %v2155
    %vm2157 = vweird.f32 %v2138
    %vm2158 = vweird.f32 %v2151
    %vm2159 = vmor %vm2157, %vm2158
    %v2160 = vsel %vm2159, %v2151, %v2156
    %v2161 = vrsqrt.pop %v2139
    %v2162 = vmul.f32 %v2161, %v2139
    %v2163 = vmul.f32 %v2162, %v2161
    %v2164 = vmul.f32 0.5, %v2163
    %v2165 = vsub.f32 1.5, %v2164
    %v2166 = vmul.f32 %v2161, %v2165
    %vm2167 = vweird.f32 %v2139
    %vm2168 = vweird.f32 %v2161
    %vm2169 = vmor %vm2167, %vm2168
    %v2170 = vsel %vm2169, %v2161, %v2166
    %v2171 = vrsqrt.pop %v2140
    %v2172 = vmul.f32 %v2171, %v2140
    %v2173 = vmul.f32 %v2172, %v2171
    %v2174 = vmul.f32 0.5, %v2173
    %v2175 = vsub.f32 1.5, %v2174
    %v2176 = vmul.f32 %v2171, %v2175
    %vm2177 = vweird.f32 %v2140
    %vm2178 = vweird.f32 %v2171
    %vm2179 = vmor %vm2177, %vm2178
    %v2180 = vsel %vm2179, %v2171, %v2176
    %v2181 = vmul.f32 %v2113, %v2150
    %v2182 = vmul.f32 %v2114, %v2160
    %v2183 = vmul.f32 %v2115, %v2170
    %v2184 = vmul.f32 %v2116, %v2180
    %v2186 = vperm.slane %v2094, 0
    %v2188 = vmul.f32 %v2181, %v2186
    %v2189 = vmul.f32 %v2182, %v2186
    %v2190 = vmul.f32 %v2183, %v2186
    %v2191 = vmul.f32 %v2184, %v2186
    %v2193 = vperm.slane %v2096, 0
    %v2195 = vadd.f32 %v2188, %v2193
    %v2196 = vadd.f32 %v2189, %v2193
    %v2197 = vadd.f32 %v2190, %v2193
    %v2198 = vadd.f32 %v2191, %v2193
    %s2199 = scalar_lea.vmem %s9, 96
    %v2200 = vld [vmem:[%s2199] sm:$0xff]
    %v2201 = vld [vmem:[%s2199 + $0x8] sm:$0xff]
    %v2202 = vld [vmem:[%s2199 + $0x10] sm:$0xff]
    %v2203 = vld [vmem:[%s2199 + $0x18] sm:$0xff]
    %v2204 = vld [vmem:[%s2199 + $0x20] sm:$0xff]
    %v2205 = vld [vmem:[%s2199 + $0x28] sm:$0xff]
    %v2206 = vld [vmem:[%s2199 + $0x30] sm:$0xff]
    %v2207 = vld [vmem:[%s2199 + $0x38] sm:$0xff]
    %v2208 = vld [vmem:[%s2199 + $0x40] sm:$0xff]
    %v2209 = vld [vmem:[%s2199 + $0x48] sm:$0xff]
    %v2210 = vld [vmem:[%s2199 + $0x50] sm:$0xff]
    %v2211 = vld [vmem:[%s2199 + $0x58] sm:$0xff]
    %s2212 = scalar_lea.vmem %s10, 1
    %v2213 = vld [vmem:[%s2212] sm:$0x1]
    %v2215 = vperm.slane %v2213, 0
    %v2218 = vsel %vm81, %v2195, 0
    %v2221 = vsel %vm81, %v2196, 0
    %v2224 = vsel %vm81, %v2197, 0
    %v2227 = vsel %vm81, %v2198, 0
    %2229 = vmatpush.msra.mxu0 0.0
    %2230 = vmatpush.msra.mxu0 0.0
    %2231 = vmatpush.msra.mxu0 0.0
    %2232 = vmatpush.msra.mxu0 0.0
    %2233 = vmatpush.msra.mxu0 %v2211
    %2234 = vmatpush.msra.mxu0 %v2210
    %2235 = vmatpush.msra.mxu0 %v2209
    %2236 = vmatpush.msra.mxu0 %v2208
    %2237 = vmatpush.msra.mxu0 %v2207
    %2238 = vmatpush.msra.mxu0 %v2206
    %2239 = vmatpush.msra.mxu0 %v2205
    %2240 = vmatpush.msra.mxu0 %v2204
    %2241 = vmatpush.msra.mxu0 %v2203
    %2242 = vmatpush.msra.mxu0 %v2202
    %2243 = vmatpush.msra.mxu0 %v2201
    %2244 = vmatpush.msra.mxu0 %v2200
    %2245 = vmatmul.f32.gmra.mxu0 %v2218
    %v2246 = vpop.f32.mrf.mxu0
    %v2247 = vadd.f32 %v2215, %v2246
    %2248 = vmatmul.f32.gmra.mxu0 %v2221
    %v2249 = vpop.f32.mrf.mxu0
    %v2250 = vadd.f32 %v2215, %v2249
    %2251 = vmatmul.f32.gmra.mxu0 %v2224
    %v2252 = vpop.f32.mrf.mxu0
    %v2253 = vadd.f32 %v2215, %v2252
    %2254 = vmatmul.f32.gmra.mxu0 %v2227
    %v2255 = vpop.f32.mrf.mxu0
    %v2256 = vadd.f32 %v2215, %v2255
    %2257 = vdwg.mxu0
    %v2258 = vmul.f32 %v2247, 0.5
    %v2259 = vmul.f32 %v2250, 0.5
    %v2260 = vmul.f32 %v2253, 0.5
    %v2261 = vmul.f32 %v2256, 0.5
    %v2262 = vmul.f32 %v2247, 0.70710677
    %v2263 = vmul.f32 %v2250, 0.70710677
    %v2264 = vmul.f32 %v2253, 0.70710677
    %v2265 = vmul.f32 %v2256, 0.70710677
    %vm2266 = vcmp.ge.f32.partialorder %v2262, 0.0
    %vm2267 = vcmp.ge.f32.partialorder %v2263, 0.0
    %vm2268 = vcmp.ge.f32.partialorder %v2264, 0.0
    %vm2269 = vcmp.ge.f32.partialorder %v2265, 0.0
    %v2270 = vsel %vm2266, 1.0, -1.0
    %v2271 = vsel %vm2267, 1.0, -1.0
    %v2272 = vsel %vm2268, 1.0, -1.0
    %v2273 = vsel %vm2269, 1.0, -1.0
    %v2274 = vand.u32 2147483647, %v2262
    %v2275 = vand.u32 2147483647, %v2263
    %v2276 = vand.u32 2147483647, %v2264
    %v2277 = vand.u32 2147483647, %v2265
    %v2278 = vmul.f32 %v2274, 0.3275911
    %v2279 = vmul.f32 %v2275, 0.3275911
    %v2280 = vmul.f32 %v2276, 0.3275911
    %v2281 = vmul.f32 %v2277, 0.3275911
    %v2282 = vadd.f32 %v2278, 1.0
    %v2283 = vadd.f32 %v2279, 1.0
    %v2284 = vadd.f32 %v2280, 1.0
    %v2285 = vadd.f32 %v2281, 1.0
    %v2286 = vrcp.pop %v2282
    %v2287 = vmul.f32 %v2282, %v2286
    %v2288 = vsub.f32 1.0, %v2287
    %v2289 = vmul.f32 %v2286, %v2288
    %v2290 = vadd.f32 %v2286, %v2289
    %vm2291 = vweird.f32 %v2282
    %vm2292 = vweird.f32 %v2286
    %vm2293 = vmor %vm2291, %vm2292
    %v2294 = vsel %vm2293, %v2286, %v2290
    %v2295 = vand.u32 2147483647, %v2282
    %vm2296 = vcmp.eq.f32.partialorder %v2295, 8.507059e+37
    %v2297 = vand.u32 %v2282, 2147483648
    %v2298 = vor.u32 1.1754944e-38, %v2297
    %v2299 = vsel %vm2296, %v2298, %v2294
    %v2300 = vmul.f32 1.0, %v2299
    %v2301 = vrcp.pop %v2283
    %v2302 = vmul.f32 %v2283, %v2301
    %v2303 = vsub.f32 1.0, %v2302
    %v2304 = vmul.f32 %v2301, %v2303
    %v2305 = vadd.f32 %v2301, %v2304
    %vm2306 = vweird.f32 %v2283
    %vm2307 = vweird.f32 %v2301
    %vm2308 = vmor %vm2306, %vm2307
    %v2309 = vsel %vm2308, %v2301, %v2305
    %v2310 = vand.u32 2147483647, %v2283
    %vm2311 = vcmp.eq.f32.partialorder %v2310, 8.507059e+37
    %v2312 = vand.u32 %v2283, 2147483648
    %v2313 = vor.u32 1.1754944e-38, %v2312
    %v2314 = vsel %vm2311, %v2313, %v2309
    %v2315 = vmul.f32 1.0, %v2314
    %v2316 = vrcp.pop %v2284
    %v2317 = vmul.f32 %v2284, %v2316
    %v2318 = vsub.f32 1.0, %v2317
    %v2319 = vmul.f32 %v2316, %v2318
    %v2320 = vadd.f32 %v2316, %v2319
    %vm2321 = vweird.f32 %v2284
    %vm2322 = vweird.f32 %v2316
    %vm2323 = vmor %vm2321, %vm2322
    %v2324 = vsel %vm2323, %v2316, %v2320
    %v2325 = vand.u32 2147483647, %v2284
    %vm2326 = vcmp.eq.f32.partialorder %v2325, 8.507059e+37
    %v2327 = vand.u32 %v2284, 2147483648
    %v2328 = vor.u32 1.1754944e-38, %v2327
    %v2329 = vsel %vm2326, %v2328, %v2324
    %v2330 = vmul.f32 1.0, %v2329
    %v2331 = vrcp.pop %v2285
    %v2332 = vmul.f32 %v2285, %v2331
    %v2333 = vsub.f32 1.0, %v2332
    %v2334 = vmul.f32 %v2331, %v2333
    %v2335 = vadd.f32 %v2331, %v2334
    %vm2336 = vweird.f32 %v2285
    %vm2337 = vweird.f32 %v2331
    %vm2338 = vmor %vm2336, %vm2337
    %v2339 = vsel %vm2338, %v2331, %v2335
    %v2340 = vand.u32 2147483647, %v2285
    %vm2341 = vcmp.eq.f32.partialorder %v2340, 8.507059e+37
    %v2342 = vand.u32 %v2285, 2147483648
    %v2343 = vor.u32 1.1754944e-38, %v2342
    %v2344 = vsel %vm2341, %v2343, %v2339
    %v2345 = vmul.f32 1.0, %v2344
    %v2346 = vmul.f32 %v2300, 1.0614054
    %v2347 = vmul.f32 %v2315, 1.0614054
    %v2348 = vmul.f32 %v2330, 1.0614054
    %v2349 = vmul.f32 %v2345, 1.0614054
    %v2350 = vadd.f32 %v2346, -1.4531521
    %v2351 = vadd.f32 %v2347, -1.4531521
    %v2352 = vadd.f32 %v2348, -1.4531521
    %v2353 = vadd.f32 %v2349, -1.4531521
    %v2354 = vmul.f32 %v2350, %v2300
    %v2355 = vmul.f32 %v2351, %v2315
    %v2356 = vmul.f32 %v2352, %v2330
    %v2357 = vmul.f32 %v2353, %v2345
    %v2358 = vadd.f32 %v2354, 1.4214138
    %v2359 = vadd.f32 %v2355, 1.4214138
    %v2360 = vadd.f32 %v2356, 1.4214138
    %v2361 = vadd.f32 %v2357, 1.4214138
    %v2362 = vmul.f32 %v2358, %v2300
    %v2363 = vmul.f32 %v2359, %v2315
    %v2364 = vmul.f32 %v2360, %v2330
    %v2365 = vmul.f32 %v2361, %v2345
    %v2366 = vadd.f32 %v2362, -0.28449672
    %v2367 = vadd.f32 %v2363, -0.28449672
    %v2368 = vadd.f32 %v2364, -0.28449672
    %v2369 = vadd.f32 %v2365, -0.28449672
    %v2370 = vmul.f32 %v2366, %v2300
    %v2371 = vmul.f32 %v2367, %v2315
    %v2372 = vmul.f32 %v2368, %v2330
    %v2373 = vmul.f32 %v2369, %v2345
    %v2374 = vadd.f32 %v2370, 0.2548296
    %v2375 = vadd.f32 %v2371, 0.2548296
    %v2376 = vadd.f32 %v2372, 0.2548296
    %v2377 = vadd.f32 %v2373, 0.2548296
    %v2378 = vmul.f32 %v2374, %v2300
    %v2379 = vmul.f32 %v2375, %v2315
    %v2380 = vmul.f32 %v2376, %v2330
    %v2381 = vmul.f32 %v2377, %v2345
    %v2382 = vsub.f32 0.0, %v2274
    %v2383 = vsub.f32 0.0, %v2275
    %v2384 = vsub.f32 0.0, %v2276
    %v2385 = vsub.f32 0.0, %v2277
    %v2386 = vmul.f32 %v2382, %v2274
    %v2387 = vmul.f32 %v2383, %v2275
    %v2388 = vmul.f32 %v2384, %v2276
    %v2389 = vmul.f32 %v2385, %v2277
    %v2390 = vmul.f32 %v2386, 1.442695
    %v2391 = vpow.pop %v2390
    %v2392 = vmul.f32 %v2387, 1.442695
    %v2393 = vpow.pop %v2392
    %v2394 = vmul.f32 %v2388, 1.442695
    %v2395 = vpow.pop %v2394
    %v2396 = vmul.f32 %v2389, 1.442695
    %v2397 = vpow.pop %v2396
    %v2398 = vmul.f32 %v2378, %v2391
    %v2399 = vmul.f32 %v2379, %v2393
    %v2400 = vmul.f32 %v2380, %v2395
    %v2401 = vmul.f32 %v2381, %v2397
    %v2402 = vsub.f32 1.0, %v2398
    %v2403 = vsub.f32 1.0, %v2399
    %v2404 = vsub.f32 1.0, %v2400
    %v2405 = vsub.f32 1.0, %v2401
    %v2406 = vmul.f32 %v2270, %v2402
    %v2407 = vmul.f32 %v2271, %v2403
    %v2408 = vmul.f32 %v2272, %v2404
    %v2409 = vmul.f32 %v2273, %v2405
    %v2410 = vadd.f32 %v2406, 1.0
    %v2411 = vadd.f32 %v2407, 1.0
    %v2412 = vadd.f32 %v2408, 1.0
    %v2413 = vadd.f32 %v2409, 1.0
    %v2414 = vmul.f32 %v2258, %v2410
    %v2415 = vmul.f32 %v2259, %v2411
    %v2416 = vmul.f32 %v2260, %v2412
    %v2417 = vmul.f32 %v2261, %v2413
    %s2418 = scalar_lea.vmem %s11, 128
    %v2419 = vld [vmem:[%s2418] sm:$0xff]
    %v2420 = vld [vmem:[%s2418 + $0x8] sm:$0xff]
    %v2421 = vld [vmem:[%s2418 + $0x10] sm:$0xff]
    %v2422 = vld [vmem:[%s2418 + $0x18] sm:$0xff]
    %v2423 = vld [vmem:[%s2418 + $0x20] sm:$0xff]
    %v2424 = vld [vmem:[%s2418 + $0x28] sm:$0xff]
    %v2425 = vld [vmem:[%s2418 + $0x30] sm:$0xff]
    %v2426 = vld [vmem:[%s2418 + $0x38] sm:$0xff]
    %v2427 = vld [vmem:[%s2418 + $0x40] sm:$0xff]
    %v2428 = vld [vmem:[%s2418 + $0x48] sm:$0xff]
    %v2429 = vld [vmem:[%s2418 + $0x50] sm:$0xff]
    %v2430 = vld [vmem:[%s2418 + $0x58] sm:$0xff]
    %v2431 = vld [vmem:[%s2418 + $0x60] sm:$0xff]
    %v2432 = vld [vmem:[%s2418 + $0x68] sm:$0xff]
    %v2433 = vld [vmem:[%s2418 + $0x70] sm:$0xff]
    %v2434 = vld [vmem:[%s2418 + $0x78] sm:$0xff]
    %2435 = vmatpush.msra.mxu0 %v2434
    %2436 = vmatpush.msra.mxu0 %v2433
    %2437 = vmatpush.msra.mxu0 %v2432
    %2438 = vmatpush.msra.mxu0 %v2431
    %2439 = vmatpush.msra.mxu0 %v2430
    %2440 = vmatpush.msra.mxu0 %v2429
    %2441 = vmatpush.msra.mxu0 %v2428
    %2442 = vmatpush.msra.mxu0 %v2427
    %2443 = vmatpush.msra.mxu0 %v2426
    %2444 = vmatpush.msra.mxu0 %v2425
    %2445 = vmatpush.msra.mxu0 %v2424
    %2446 = vmatpush.msra.mxu0 %v2423
    %2447 = vmatpush.msra.mxu0 %v2422
    %2448 = vmatpush.msra.mxu0 %v2421
    %2449 = vmatpush.msra.mxu0 %v2420
    %2450 = vmatpush.msra.mxu0 %v2419
    %2451 = vmatmul.f32.gmra.mxu0 %v2414
    %v2452 = vpop.f32.mrf.mxu0
    %v2453 = vadd.f32 0.0, %v2452
    %2454 = vmatmul.f32.gmra.mxu0 %v2415
    %v2455 = vpop.f32.mrf.mxu0
    %v2456 = vadd.f32 0.0, %v2455
    %2457 = vmatmul.f32.gmra.mxu0 %v2416
    %v2458 = vpop.f32.mrf.mxu0
    %v2459 = vadd.f32 0.0, %v2458
    %2460 = vmatmul.f32.gmra.mxu0 %v2417
    %v2461 = vpop.f32.mrf.mxu0
    %v2462 = vadd.f32 0.0, %v2461
    %2463 = vdwg.mxu0
    %v2464 = vadd.f32 %v2089, %v2453
    %v2465 = vadd.f32 %v2090, %v2456
    %v2466 = vadd.f32 %v2091, %v2459
    %v2467 = vadd.f32 %v2092, %v2462
    %s2468 = scalar_lea.vmem %s12, 1
    %v2469 = vld [vmem:[%s2468] sm:$0x1]
    %v2471 = vperm.slane %v2469, 0
    %v2473 = vadd.f32 %v2464, %v2471
    %v2474 = vadd.f32 %v2465, %v2471
    %v2475 = vadd.f32 %v2466, %v2471
    %v2476 = vadd.f32 %v2467, %v2471
    %v2477 = vld [vmem:[%s13] sm:$0x1]
    %v2478 = vld [vmem:[%s14] sm:$0x1]
    %v2479 = vsel %vm81, %v2473, 0.0
    %2480 = vadd.xlane.f32.xlu0 %v2479
    %v2481 = vpop.xlane.xlu0 %2480
    %v2482 = vsel %vm81, %v2474, 0.0
    %2483 = vadd.xlane.f32.xlu0 %v2482
    %v2484 = vpop.xlane.xlu0 %2483
    %v2485 = vsel %vm81, %v2475, 0.0
    %2486 = vadd.xlane.f32.xlu0 %v2485
    %v2487 = vpop.xlane.xlu0 %2486
    %v2488 = vsel %vm81, %v2476, 0.0
    %2489 = vadd.xlane.f32.xlu0 %v2488
    %v2490 = vpop.xlane.xlu0 %2489
    %v2491 = vmul.f32 %v2481, %v100
    %v2492 = vmul.f32 %v2484, %v100
    %v2493 = vmul.f32 %v2487, %v100
    %v2494 = vmul.f32 %v2490, %v100
    %v2495 = vsub.f32 %v2473, %v2491
    %v2496 = vsub.f32 %v2474, %v2492
    %v2497 = vsub.f32 %v2475, %v2493
    %v2498 = vsub.f32 %v2476, %v2494
    %v2499 = vmul.f32 %v2495, %v2495
    %v2500 = vmul.f32 %v2496, %v2496
    %v2501 = vmul.f32 %v2497, %v2497
    %v2502 = vmul.f32 %v2498, %v2498
    %v2503 = vsel %vm81, %v2499, 0.0
    %2504 = vadd.xlane.f32.xlu0 %v2503
    %v2505 = vpop.xlane.xlu0 %2504
    %v2506 = vsel %vm81, %v2500, 0.0
    %2507 = vadd.xlane.f32.xlu0 %v2506
    %v2508 = vpop.xlane.xlu0 %2507
    %v2509 = vsel %vm81, %v2501, 0.0
    %2510 = vadd.xlane.f32.xlu0 %v2509
    %v2511 = vpop.xlane.xlu0 %2510
    %v2512 = vsel %vm81, %v2502, 0.0
    %2513 = vadd.xlane.f32.xlu0 %v2512
    %v2514 = vpop.xlane.xlu0 %2513
    %v2515 = vmul.f32 %v2505, %v100
    %v2516 = vmul.f32 %v2508, %v100
    %v2517 = vmul.f32 %v2511, %v100
    %v2518 = vmul.f32 %v2514, %v100
    %v2519 = vadd.f32 %v2515, 1e-05
    %v2520 = vadd.f32 %v2516, 1e-05
    %v2521 = vadd.f32 %v2517, 1e-05
    %v2522 = vadd.f32 %v2518, 1e-05
    %v2523 = vrsqrt.pop %v2519
    %v2524 = vmul.f32 %v2523, %v2519
    %v2525 = vmul.f32 %v2524, %v2523
    %v2526 = vmul.f32 0.5, %v2525
    %v2527 = vsub.f32 1.5, %v2526
    %v2528 = vmul.f32 %v2523, %v2527
    %vm2529 = vweird.f32 %v2519
    %vm2530 = vweird.f32 %v2523
    %vm2531 = vmor %vm2529, %vm2530
    %v2532 = vsel %vm2531, %v2523, %v2528
    %v2533 = vrsqrt.pop %v2520
    %v2534 = vmul.f32 %v2533, %v2520
    %v2535 = vmul.f32 %v2534, %v2533
    %v2536 = vmul.f32 0.5, %v2535
    %v2537 = vsub.f32 1.5, %v2536
    %v2538 = vmul.f32 %v2533, %v2537
    %vm2539 = vweird.f32 %v2520
    %vm2540 = vweird.f32 %v2533
    %vm2541 = vmor %vm2539, %vm2540
    %v2542 = vsel %vm2541, %v2533, %v2538
    %v2543 = vrsqrt.pop %v2521
    %v2544 = vmul.f32 %v2543, %v2521
    %v2545 = vmul.f32 %v2544, %v2543
    %v2546 = vmul.f32 0.5, %v2545
    %v2547 = vsub.f32 1.5, %v2546
    %v2548 = vmul.f32 %v2543, %v2547
    %vm2549 = vweird.f32 %v2521
    %vm2550 = vweird.f32 %v2543
    %vm2551 = vmor %vm2549, %vm2550
    %v2552 = vsel %vm2551, %v2543, %v2548
    %v2553 = vrsqrt.pop %v2522
    %v2554 = vmul.f32 %v2553, %v2522
    %v2555 = vmul.f32 %v2554, %v2553
    %v2556 = vmul.f32 0.5, %v2555
    %v2557 = vsub.f32 1.5, %v2556
    %v2558 = vmul.f32 %v2553, %v2557
    %vm2559 = vweird.f32 %v2522
    %vm2560 = vweird.f32 %v2553
    %vm2561 = vmor %vm2559, %vm2560
    %v2562 = vsel %vm2561, %v2553, %v2558
    %v2563 = vmul.f32 %v2495, %v2532
    %v2564 = vmul.f32 %v2496, %v2542
    %v2565 = vmul.f32 %v2497, %v2552
    %v2566 = vmul.f32 %v2498, %v2562
    %v2568 = vperm.slane %v2477, 0
    %v2570 = vmul.f32 %v2563, %v2568
    %v2571 = vmul.f32 %v2564, %v2568
    %v2572 = vmul.f32 %v2565, %v2568
    %v2573 = vmul.f32 %v2566, %v2568
    %v2575 = vperm.slane %v2478, 0
    %v2577 = vadd.f32 %v2570, %v2575
    %v2578 = vadd.f32 %v2571, %v2575
    %v2579 = vadd.f32 %v2572, %v2575
    %v2580 = vadd.f32 %v2573, %v2575
    %2581 = vst.msk [vmem:[#allocation5] sm:$0xff] %vm81, %v2577
    %2582 = vst.msk [vmem:[#allocation5 + $0x8] sm:$0xff] %vm81, %v2578
    %2583 = vst.msk [vmem:[#allocation5 + $0x10] sm:$0xff] %vm81, %v2579
    %2584 = vst.msk [vmem:[#allocation5 + $0x18] sm:$0xff] %vm81, %v2580
    %v2585 = vld [vmem:[%s15] sm:$0xff]
    %v2586 = vld [vmem:[%s15 + $0x8] sm:$0xff]
    %v2587 = vld [vmem:[%s15 + $0x10] sm:$0xff]
    %v2588 = vld [vmem:[%s15 + $0x18] sm:$0xff]
    %v2589 = vld [vmem:[%s15 + $0x20] sm:$0xff]
    %v2590 = vld [vmem:[%s15 + $0x28] sm:$0xff]
    %v2591 = vld [vmem:[%s15 + $0x30] sm:$0xff]
    %v2592 = vld [vmem:[%s15 + $0x38] sm:$0xff]
    %v2593 = vld [vmem:[%s15 + $0x40] sm:$0xff]
    %v2594 = vld [vmem:[%s15 + $0x48] sm:$0xff]
    %v2595 = vld [vmem:[%s15 + $0x50] sm:$0xff]
    %v2596 = vld [vmem:[%s15 + $0x58] sm:$0xff]
    %v2597 = vld [vmem:[%s16] sm:$0x1]
    %v2599 = vperm.slane %v2597, 0
    %v2602 = vsel %vm81, %v2577, 0
    %v2605 = vsel %vm81, %v2578, 0
    %v2608 = vsel %vm81, %v2579, 0
    %v2611 = vsel %vm81, %v2580, 0
    %2613 = vmatpush.msra.mxu0 0.0
    %2614 = vmatpush.msra.mxu0 0.0
    %2615 = vmatpush.msra.mxu0 0.0
    %2616 = vmatpush.msra.mxu0 0.0
    %2617 = vmatpush.msra.mxu0 %v2596
    %2618 = vmatpush.msra.mxu0 %v2595
    %2619 = vmatpush.msra.mxu0 %v2594
    %2620 = vmatpush.msra.mxu0 %v2593
    %2621 = vmatpush.msra.mxu0 %v2592
    %2622 = vmatpush.msra.mxu0 %v2591
    %2623 = vmatpush.msra.mxu0 %v2590
    %2624 = vmatpush.msra.mxu0 %v2589
    %2625 = vmatpush.msra.mxu0 %v2588
    %2626 = vmatpush.msra.mxu0 %v2587
    %2627 = vmatpush.msra.mxu0 %v2586
    %2628 = vmatpush.msra.mxu0 %v2585
    %2629 = vmatmul.f32.gmra.mxu0 %v2602
    %v2630 = vpop.f32.mrf.mxu0
    %v2631 = vadd.f32 %v2599, %v2630
    %2632 = vmatmul.f32.gmra.mxu0 %v2605
    %v2633 = vpop.f32.mrf.mxu0
    %v2634 = vadd.f32 %v2599, %v2633
    %2635 = vmatmul.f32.gmra.mxu0 %v2608
    %v2636 = vpop.f32.mrf.mxu0
    %v2637 = vadd.f32 %v2599, %v2636
    %2638 = vmatmul.f32.gmra.mxu0 %v2611
    %v2639 = vpop.f32.mrf.mxu0
    %v2640 = vadd.f32 %v2599, %v2639
    %2641 = vdwg.mxu0
    %2642 = vst.msk [vmem:[%s18] sm:$0xff] %vm458, %v2631
    %2643 = vst.msk [vmem:[%s18 + $0x8] sm:$0xff] %vm458, %v2634
    %2644 = vst.msk [vmem:[%s18 + $0x10] sm:$0xff] %vm458, %v2637
    %2645 = vst.msk [vmem:[%s18 + $0x18] sm:$0xff] %vm458, %v2640
    // Predicated region
    $region74: #{tpu_custom_call.1} parent=1 // pred_check
      _
    $region75: #{tpu_custom_call.1} parent=1 // pred_check_branch
      %2647 = sbr.rel (0) target = $region77
    $region76: #{tpu_custom_call.1} parent=1 // pred_region
      %2649 = vsyncadd [#allocation4], 0
      %s2650 = sshll.u32 [#allocation5], 4
      %s2651 = int_to_ptr.vmem [resolvable:$true] %s2650
      %s2652 = sshll.u32 %s17, 4
      %s2653 = int_to_ptr.hbm [resolvable:$true] %s2652
      %2658 = dma.vmem_to_hbm [thread:$0]  %s2651, 512, %s2653, [#allocation4], 128, 128, 8
    $region77: #{tpu_custom_call.1} parent=1 // pred_fallthru
      _
    // Predicated region
    $region78: #{tpu_custom_call.1} parent=1 // pred_check
      _
    $region79: #{tpu_custom_call.1} parent=1 // pred_check_branch
      %2660 = sbr.rel (0) target = $region81
    $region80: #{tpu_custom_call.1} parent=1 // pred_region
      _
    $region81: #{tpu_custom_call.1} parent=1 // pred_fallthru
      _
    // Predicated region
    $region82: #{tpu_custom_call.1} parent=1 // pred_check
      _
    $region83: #{tpu_custom_call.1} parent=1 // pred_check_branch
      %2662 = sbr.rel (0) target = $region85
    $region84: #{tpu_custom_call.1} parent=1 // pred_region
      %2664 = dma.done [#allocation4], 512
    $region85: #{tpu_custom_call.1} parent=1 // pred_fallthru
      _
    // Predicated region
    $region86: #{tpu_custom_call.1} parent=1 // pred_check
      _
    $region87: #{tpu_custom_call.1} parent=1 // pred_check_branch
      %2666 = sbr.rel (0) target = $region89
    $region88: #{tpu_custom_call.1} parent=1 // pred_region
      _
    $region89: #{tpu_custom_call.1} parent=1 // pred_fallthru
      _
    %2667 = vsyncpa [#allocation3], 1
    %2668 = vsyncpa [#allocation4], 1

</llo_original>
